<compile_context>
chip_gen: v6e
topology: v6e:2x2x1
jax: 0.10.0
libtpu: 0.0.40
codegen_flags: <defaults>
</compile_context>

<pallas_src>
import jax
import jax.numpy as jnp
from jax.experimental import pallas as pl
from jax.experimental.pallas import tpu as pltpu

D_IN, D_H, D_OUT = 1152, 512, 1000
D_OUT_PAD = 1024          # layer-3 matmul N dim padded to a multiple of 128
EPS = 1e-5
MAX_BATCH_TILE = 512      # ~85% of HBM roofline in tile sweeps; fits VMEM easily


def tag_decoder_kernel(z_ref,
                       w1_ref, b1_ref,
                       w2_ref, b2_ref,
                       w3_ref, b3_ref,
                       o_ref):
    # Layer 1: Linear (BN scale pre-folded into w1) + bias/shift + ReLU.
    # z arrives as f32; cast to bf16 here so the wrapper never materializes a
    # separate bf16 copy of z in HBM.
    z = z_ref[...].astype(jnp.bfloat16)
    h = jnp.dot(z, w1_ref[...], preferred_element_type=jnp.float32)
    h = jnp.maximum(h + b1_ref[...], 0.0)
    # Dropout(0.25): identity in eval mode.
    # TODO(synk): training-mode dropout would use pltpu.prng_seed/prng_random_bits.

    # Layer 2
    h = jnp.dot(h.astype(jnp.bfloat16), w2_ref[...],
                preferred_element_type=jnp.float32)
    h = jnp.maximum(h + b2_ref[...], 0.0)

    # Layer 3 (+ Sigmoid).  w3 is padded to 1024 columns so the MXU N dim is
    # 128-aligned; the 24 zero columns are dropped before the bias / sigmoid
    # epilogue so the stored output block is exactly 1000 wide (only the
    # final vreg store is masked — no wrapper re-slice pass).
    h = jnp.dot(h.astype(jnp.bfloat16), w3_ref[...],
                preferred_element_type=jnp.float32)
    x = h[:, :D_OUT] + b3_ref[...]
    # sigmoid(x) = 1 / (1 + exp(-x)); exp and reciprocal both run on the EUP.
    sig = pl.reciprocal(1.0 + jnp.exp(-x), approx=True)
    o_ref[...] = sig.astype(o_ref.dtype)


def _round_up(x, m):
    return ((x + m - 1) // m) * m


def _choose_batch_tile(n):
    """16-row granularity (bf16 sublane pack); >=2 grid steps for larger N."""
    n16 = _round_up(max(n, 1), 16)
    if n16 <= 128:
        return n16                                        # one small tile
    # Guarantee at least 2 grid steps (v7x has 2 TensorCores; also enables
    # DMA/compute pipelining), cap the tile at 512 rows.
    return min(MAX_BATCH_TILE, _round_up(pl.cdiv(n16, 2), 16))


def _vmem_limit_bytes(bt):
    """Right-sized scoped-VMEM request: blocks + weights + intermediates."""
    inout = 2 * bt * D_IN * 4 + 2 * bt * D_OUT_PAD * 2        # dbl-buffered z / out
    weights = (D_IN * D_H + D_H * D_H + D_H * D_OUT_PAD) * 2  # single-buffered bf16
    biases = 3 * 8 * D_OUT_PAD * 4                            # sublane-padded f32
    interm = bt * (2 * D_H + D_OUT_PAD) * 4 + bt * (D_IN + 2 * D_H) * 2
    total = inout + weights + biases + interm
    return max(int(total * 1.25) + (4 << 20), 16 << 20)


@jax.jit
def tag_decoder_forward(z, params):
    """z: (N, 1152) float32.  Returns (N, 1000) bfloat16 tag probabilities."""
    N = z.shape[0]
    bt = _choose_batch_tile(N)
    n_tiles = pl.cdiv(N, bt)
    n_pad = n_tiles * bt
    if n_pad != N:
        z = jnp.pad(z, ((0, n_pad - N), (0, 0)))   # keep OOB rows defined (no NaNs)

    w1, b1 = params["w1"], params["b1"]
    w2, b2 = params["w2"], params["b2"]
    w3, b3 = params["w3"], params["b3"]

    # Weights / biases never change across the batch grid -> single-buffer.
    const = lambda shape: pl.BlockSpec(shape, lambda i: (0, 0),
                                       pipeline_mode=pl.Buffered(1))

    flops = 2 * n_pad * (D_IN * D_H + D_H * D_H + D_H * D_OUT_PAD)
    bytes_accessed = (
        n_pad * D_IN * 4                              # f32 input read
        + (w1.size + w2.size + w3.size) * 2           # bf16 weights
        + (b1.size + b2.size + b3.size) * 4           # f32 biases
        + n_pad * D_OUT * 2                           # bf16 output write
    )
    cost = pl.CostEstimate(flops=flops,
                           transcendentals=n_pad * D_OUT,
                           bytes_accessed=bytes_accessed)

    out = pl.pallas_call(
        tag_decoder_kernel,
        out_shape=jax.ShapeDtypeStruct((n_pad, D_OUT), jnp.bfloat16),
        grid_spec=pltpu.PrefetchScalarGridSpec(
            num_scalar_prefetch=0,
            grid=(n_tiles,),
            in_specs=[
                pl.BlockSpec((bt, D_IN), lambda i: (i, 0)),   # z tile (f32)
                const((D_IN, D_H)), const((1, D_H)),          # layer 1
                const((D_H, D_H)), const((1, D_H)),           # layer 2
                const((D_H, D_OUT_PAD)), const((1, D_OUT)),   # layer 3
            ],
            out_specs=pl.BlockSpec((bt, D_OUT), lambda i: (i, 0)),
        ),
        compiler_params=pltpu.CompilerParams(
            dimension_semantics=("parallel",),
            vmem_limit_bytes=_vmem_limit_bytes(bt),
        ),
        cost_estimate=cost,
    )(z, w1, b1, w2, b2, w3, b3)

    if n_pad != N:
        out = out[:N]
    return out


def make_params(key):
    """Deterministic synthetic params; Linear+BN(eval) folded per layer.

    Returns (kernel_params, ref_params):
      kernel_params: bf16 folded weights (BN scale folded into columns),
                     f32 biases; layer-3 weight padded to 1024 output cols,
                     layer-3 bias kept at the true 1000 width.
      ref_params:    f32 folded weights/biases at original widths (checking).
    """
    def layer(key, d_in, d_out):
        kw, kb, kg, kbeta, km, kv = jax.random.split(key, 6)
        w = jax.random.normal(kw, (d_in, d_out), jnp.float32) / jnp.sqrt(d_in)
        b = jax.random.normal(kb, (d_out,), jnp.float32) * 0.01
        gamma = 1.0 + 0.1 * jax.random.normal(kg, (d_out,), jnp.float32)
        beta = 0.1 * jax.random.normal(kbeta, (d_out,), jnp.float32)
        r_mean = 0.1 * jax.random.normal(km, (d_out,), jnp.float32)
        r_var = jnp.abs(1.0 + 0.1 * jax.random.normal(kv, (d_out,), jnp.float32))
        scale = gamma / jnp.sqrt(r_var + EPS)          # per-feature BN scale
        w_fold = w * scale[None, :]                    # fold scale into weight cols
        b_fold = (b - r_mean) * scale + beta           # fold Linear bias + BN shift
        return w_fold, b_fold.reshape(1, d_out)

    k1, k2, k3 = jax.random.split(key, 3)
    w1, b1 = layer(k1, D_IN, D_H)
    w2, b2 = layer(k2, D_H, D_H)
    w3, b3 = layer(k3, D_H, D_OUT)

    # Pad layer-3 weight to a 128-aligned MXU N dim (zero columns).
    w3p = jnp.pad(w3, ((0, 0), (0, D_OUT_PAD - D_OUT)))

    kernel_params = dict(
        w1=w1.astype(jnp.bfloat16), b1=b1,
        w2=w2.astype(jnp.bfloat16), b2=b2,
        w3=w3p.astype(jnp.bfloat16), b3=b3,
    )
    ref_params = dict(w1=w1, b1=b1, w2=w2, b2=b2, w3=w3, b3=b3)
    return kernel_params, ref_params


def reference_forward(z, p):
    h = jnp.maximum(z @ p["w1"] + p["b1"], 0.0)
    h = jnp.maximum(h @ p["w2"] + p["b2"], 0.0)
    return jax.nn.sigmoid(h @ p["w3"] + p["b3"])


if __name__ == "__main__":
    key = jax.random.PRNGKey(0)
    kz, kp = jax.random.split(key)

    N = 8  # small test batch; wrapper pads to one 16-row tile (not 256)
    z = jax.random.normal(kz, (N, D_IN), jnp.float32)
    kernel_params, ref_params = make_params(kp)

    out = tag_decoder_forward(z, kernel_params)
    out = jax.block_until_ready(out)

    ref = reference_forward(z, ref_params)
    assert out.shape == (N, D_OUT)
    assert out.dtype == jnp.bfloat16
    # bf16 matmul inputs + bf16 output vs full-f32 reference (intentional
    # precision contract for tag probabilities).
    err = jnp.max(jnp.abs(out.astype(jnp.float32) - ref))
    assert bool(err < 4e-2), float(err)

    print("KERNEL_OK")
</pallas_src>

<mosaic_0001>
module attributes {stable_mosaic.version = 11 : i64} {
  func.func @tag_decoder_kernel(%arg0: i32, %arg1: memref<16x1152xf32, #tpu.memory_space<vmem>>, %arg2: memref<1152x512xbf16, #tpu.memory_space<vmem>>, %arg3: memref<1x512xf32, #tpu.memory_space<vmem>>, %arg4: memref<512x512xbf16, #tpu.memory_space<vmem>>, %arg5: memref<1x512xf32, #tpu.memory_space<vmem>>, %arg6: memref<512x1024xbf16, #tpu.memory_space<vmem>>, %arg7: memref<1x1000xf32, #tpu.memory_space<vmem>>, %arg8: memref<16x1000xbf16, #tpu.memory_space<vmem>>) attributes {dimension_semantics = [#tpu.dimension_semantics<parallel>], iteration_bounds = array<i64: 1>, scalar_prefetch = 0 : i64, scratch_operands = 0 : i64, tpu.core_type = #tpu.core_type<tc>, window_params = [{transform_indices = @transform_0, window_bounds = array<i64: 16, 1152>}, {pipeline_mode = #tpu.pipeline_mode<synchronous>, transform_indices = @transform_1, window_bounds = array<i64: 1152, 512>}, {pipeline_mode = #tpu.pipeline_mode<synchronous>, transform_indices = @transform_2, window_bounds = array<i64: 1, 512>}, {pipeline_mode = #tpu.pipeline_mode<synchronous>, transform_indices = @transform_3, window_bounds = array<i64: 512, 512>}, {pipeline_mode = #tpu.pipeline_mode<synchronous>, transform_indices = @transform_4, window_bounds = array<i64: 1, 512>}, {pipeline_mode = #tpu.pipeline_mode<synchronous>, transform_indices = @transform_5, window_bounds = array<i64: 512, 1024>}, {pipeline_mode = #tpu.pipeline_mode<synchronous>, transform_indices = @transform_6, window_bounds = array<i64: 1, 1000>}, {transform_indices = @transform_7, window_bounds = array<i64: 16, 1000>}]} {
    %c0 = arith.constant 0 : index
    %c0_0 = arith.constant 0 : index
    %0 = vector.load %arg1[%c0, %c0_0] : memref<16x1152xf32, #tpu.memory_space<vmem>>, vector<16x1152xf32>
    %1 = arith.truncf %0 : vector<16x1152xf32> to vector<16x1152xbf16>
    %c0_1 = arith.constant 0 : index
    %c0_2 = arith.constant 0 : index
    %2 = vector.load %arg2[%c0_1, %c0_2] : memref<1152x512xbf16, #tpu.memory_space<vmem>>, vector<1152x512xbf16>
    %cst = arith.constant dense<0.000000e+00> : vector<16x512xf32>
    %3 = tpu.matmul %1, %2, %cst {dimension_numbers = #tpu.dot_dimension_numbers<[1], [0], [0], [1], [0, 0, 1, 1], [], []>} : vector<16x1152xbf16>, vector<1152x512xbf16>, vector<16x512xf32> -> vector<16x512xf32>
    %c0_3 = arith.constant 0 : index
    %c0_4 = arith.constant 0 : index
    %4 = vector.load %arg3[%c0_3, %c0_4] : memref<1x512xf32, #tpu.memory_space<vmem>>, vector<1x512xf32>
    %5 = vector.broadcast %4 : vector<1x512xf32> to vector<16x512xf32>
    %6 = arith.addf %3, %5 : vector<16x512xf32>
    %cst_5 = arith.constant 0.000000e+00 : f32
    %7 = vector.broadcast %cst_5 : f32 to vector<16x512xf32>
    %8 = arith.maximumf %6, %7 : vector<16x512xf32>
    %9 = arith.truncf %8 : vector<16x512xf32> to vector<16x512xbf16>
    %c0_6 = arith.constant 0 : index
    %c0_7 = arith.constant 0 : index
    %10 = vector.load %arg4[%c0_6, %c0_7] : memref<512x512xbf16, #tpu.memory_space<vmem>>, vector<512x512xbf16>
    %cst_8 = arith.constant dense<0.000000e+00> : vector<16x512xf32>
    %11 = tpu.matmul %9, %10, %cst_8 {dimension_numbers = #tpu.dot_dimension_numbers<[1], [0], [0], [1], [0, 0, 1, 1], [], []>} : vector<16x512xbf16>, vector<512x512xbf16>, vector<16x512xf32> -> vector<16x512xf32>
    %c0_9 = arith.constant 0 : index
    %c0_10 = arith.constant 0 : index
    %12 = vector.load %arg5[%c0_9, %c0_10] : memref<1x512xf32, #tpu.memory_space<vmem>>, vector<1x512xf32>
    %13 = vector.broadcast %12 : vector<1x512xf32> to vector<16x512xf32>
    %14 = arith.addf %11, %13 : vector<16x512xf32>
    %cst_11 = arith.constant 0.000000e+00 : f32
    %15 = vector.broadcast %cst_11 : f32 to vector<16x512xf32>
    %16 = arith.maximumf %14, %15 : vector<16x512xf32>
    %17 = arith.truncf %16 : vector<16x512xf32> to vector<16x512xbf16>
    %c0_12 = arith.constant 0 : index
    %c0_13 = arith.constant 0 : index
    %18 = vector.load %arg6[%c0_12, %c0_13] : memref<512x1024xbf16, #tpu.memory_space<vmem>>, vector<512x1024xbf16>
    %cst_14 = arith.constant dense<0.000000e+00> : vector<16x1024xf32>
    %19 = tpu.matmul %17, %18, %cst_14 {dimension_numbers = #tpu.dot_dimension_numbers<[1], [0], [0], [1], [0, 0, 1, 1], [], []>} : vector<16x512xbf16>, vector<512x1024xbf16>, vector<16x1024xf32> -> vector<16x1024xf32>
    %20 = vector.extract_strided_slice %19 {offsets = [0, 0], sizes = [16, 1000], strides = [1, 1]} : vector<16x1024xf32> to vector<16x1000xf32>
    %c0_15 = arith.constant 0 : index
    %c0_16 = arith.constant 0 : index
    %21 = vector.load %arg7[%c0_15, %c0_16] : memref<1x1000xf32, #tpu.memory_space<vmem>>, vector<1x1000xf32>
    %22 = vector.broadcast %21 : vector<1x1000xf32> to vector<16x1000xf32>
    %23 = arith.addf %20, %22 : vector<16x1000xf32>
    %cst_17 = arith.constant 0.000000e+00 : f32
    %24 = vector.broadcast %cst_17 : f32 to vector<16x1000xf32>
    %25 = arith.subf %24, %23 : vector<16x1000xf32>
    %26 = math.exp %25 : vector<16x1000xf32>
    %cst_18 = arith.constant 1.000000e+00 : f32
    %27 = vector.broadcast %cst_18 : f32 to vector<16x1000xf32>
    %28 = arith.addf %27, %26 : vector<16x1000xf32>
    %29 = tpu.reciprocal %28 {approx = true} : vector<16x1000xf32> -> vector<16x1000xf32>
    %30 = arith.truncf %29 : vector<16x1000xf32> to vector<16x1000xbf16>
    %c0_19 = arith.constant 0 : index
    %c0_20 = arith.constant 0 : index
    %31 = vector.load %arg8[%c0_19, %c0_20] : memref<16x1000xbf16, #tpu.memory_space<vmem>>, vector<16x1000xbf16>
    tpu.vector_store %arg8[%c0_19, %c0_20], %30 {strides = array<i32>} : memref<16x1000xbf16, #tpu.memory_space<vmem>>, vector<16x1000xbf16>,
    return
  }
  func.func @transform_0(%arg0: i32) -> (i32, i32) {
    %c0_i32 = arith.constant 0 : i32
    %c0_i32_0 = arith.constant 0 : i32
    return %arg0, %c0_i32 : i32, i32
  }
  func.func @transform_1(%arg0: i32) -> (i32, i32) {
    %c0_i32 = arith.constant 0 : i32
    %c0_i32_0 = arith.constant 0 : i32
    %c0_i32_1 = arith.constant 0 : i32
    return %c0_i32, %c0_i32_0 : i32, i32
  }
  func.func @transform_2(%arg0: i32) -> (i32, i32) {
    %c0_i32 = arith.constant 0 : i32
    %c0_i32_0 = arith.constant 0 : i32
    %c0_i32_1 = arith.constant 0 : i32
    return %c0_i32, %c0_i32_0 : i32, i32
  }
  func.func @transform_3(%arg0: i32) -> (i32, i32) {
    %c0_i32 = arith.constant 0 : i32
    %c0_i32_0 = arith.constant 0 : i32
    %c0_i32_1 = arith.constant 0 : i32
    return %c0_i32, %c0_i32_0 : i32, i32
  }
  func.func @transform_4(%arg0: i32) -> (i32, i32) {
    %c0_i32 = arith.constant 0 : i32
    %c0_i32_0 = arith.constant 0 : i32
    %c0_i32_1 = arith.constant 0 : i32
    return %c0_i32, %c0_i32_0 : i32, i32
  }
  func.func @transform_5(%arg0: i32) -> (i32, i32) {
    %c0_i32 = arith.constant 0 : i32
    %c0_i32_0 = arith.constant 0 : i32
    %c0_i32_1 = arith.constant 0 : i32
    return %c0_i32, %c0_i32_0 : i32, i32
  }
  func.func @transform_6(%arg0: i32) -> (i32, i32) {
    %c0_i32 = arith.constant 0 : i32
    %c0_i32_0 = arith.constant 0 : i32
    %c0_i32_1 = arith.constant 0 : i32
    return %c0_i32, %c0_i32_0 : i32, i32
  }
  func.func @transform_7(%arg0: i32) -> (i32, i32) {
    %c0_i32 = arith.constant 0 : i32
    %c0_i32_0 = arith.constant 0 : i32
    return %arg0, %c0_i32 : i32, i32
  }
}

</mosaic_0001>

<llo_original>
// kernel: tag_decoder_forward.1
$region0: #{tag_decoder_forward.1}
  #allocation0 [shape = 'u32[]', space=smem, size = 0x4, offset = 0x4, fixed_abs, tag = 'smem constant byte address 0x4 - core index']
  #allocation1 [shape = 'u32[144,128]{1,0:T(1,128)}', space=vmem, size = 0x12000, scoped, tag = 'internal scratch']
  %s0 = inlined_call_operand.vmem [shape: f32[16,1152], index: 0, kind: input, shape index: {}]
  %s1 = inlined_call_operand.hbm [shape: bf16[1152,512], index: 1, kind: input, shape index: {}]
  %s2 = inlined_call_operand.hbm [shape: f32[1,512], index: 2, kind: input, shape index: {}]
  %s3 = inlined_call_operand.hbm [shape: bf16[512,512], index: 3, kind: input, shape index: {}]
  %s4 = inlined_call_operand.hbm [shape: f32[1,512], index: 4, kind: input, shape index: {}]
  %s5 = inlined_call_operand.hbm [shape: bf16[512,1024], index: 5, kind: input, shape index: {}]
  %s6 = inlined_call_operand.hbm [shape: f32[1,1000], index: 6, kind: input, shape index: {}]
  %s7 = inlined_call_operand.vmem [shape: bf16[16,1000], index: 7, kind: output, shape index: {}]
  %s8 = sld [smem:[#allocation0]]
  $region62: #{tag_decoder_forward.1} parent=0
    _
  %s10 = ssub.s32 1, %s8
  %s11 = scalar_select 0, %s10, %s8
  $region1: #{tag_decoder_forward.1} parent=0
    #allocation2 [shape = 'u8[1179648]{0}', space=vmem, size = 0x120000, scoped, tag = 'input window, operand 1, single buffered']
    #allocation3 [shape = 's32[1]{0}', space=sflag, size = 0x4, scoped, tag = 'scoped memory for tag_decoder_forward.1']
    #allocation4 [shape = 'u8[2048]{0}', space=vmem, size = 0x800, scoped, tag = 'input window, operand 2, single buffered']
    #allocation5 [shape = 's32[1]{0}', space=sflag, size = 0x4, scoped, tag = 'scoped memory for tag_decoder_forward.1']
    #allocation6 [shape = 'u8[524288]{0}', space=vmem, size = 0x80000, scoped, tag = 'input window, operand 3, single buffered']
    #allocation7 [shape = 'u8[2048]{0}', space=vmem, size = 0x800, scoped, tag = 'input window, operand 4, single buffered']
    #allocation8 [shape = 's32[1]{0}', space=sflag, size = 0x4, scoped, tag = 'scoped memory for tag_decoder_forward.1']
    #allocation9 [shape = 'u8[1048576]{0}', space=vmem, size = 0x100000, scoped, tag = 'input window, operand 5, single buffered']
    #allocation10 [shape = 'u8[4096]{0}', space=vmem, size = 0x1000, scoped, tag = 'input window, operand 6, single buffered']
    #allocation11 [shape = 's32[1]{0}', space=sflag, size = 0x4, scoped, tag = 'scoped memory for tag_decoder_forward.1']
    %12 = vsyncpa [#allocation3], 0
    %13 = vsyncpa [#allocation5], 0
    %14 = vsyncpa [#allocation8], 0
    %15 = vsyncpa [#allocation11], 0
    // Predicated region
    $region2: #{tag_decoder_forward.1} parent=1 // pred_check
      _
    $region3: #{tag_decoder_forward.1} parent=1 // pred_check_branch
      %17 = sbr.rel (0) target = $region5
    $region4: #{tag_decoder_forward.1} parent=1 // pred_region
      _
    $region5: #{tag_decoder_forward.1} parent=1 // pred_fallthru
      _
    // Predicated region
    $region6: #{tag_decoder_forward.1} parent=1 // pred_check
      _
    $region7: #{tag_decoder_forward.1} parent=1 // pred_check_branch
      %19 = sbr.rel (0) target = $region9
    $region8: #{tag_decoder_forward.1} parent=1 // pred_region
      %s21 = ssub.s32 36864, 36864
      %22 = vsyncadd [#allocation3], %s21
      %s23 = sshll.u32 [#allocation2], 4
      %s24 = int_to_ptr.vmem [resolvable:$true] %s23
      %29 = dma.hbm_to_vmem [thread:$0]  %s1, 36864, %s24, [#allocation3], 256, 256, 16
    $region9: #{tag_decoder_forward.1} parent=1 // pred_fallthru
      _
    // Predicated region
    $region10: #{tag_decoder_forward.1} parent=1 // pred_check
      _
    $region11: #{tag_decoder_forward.1} parent=1 // pred_check_branch
      %31 = sbr.rel (0) target = $region13
    $region12: #{tag_decoder_forward.1} parent=1 // pred_region
      %s33 = ssub.s32 64, 64
      %34 = vsyncadd [#allocation5], %s33
      %s36 = sshll.u32 [#allocation4], 4
      %s37 = int_to_ptr.vmem [resolvable:$true] %s36
      %39 = dma.hbm_to_vmem [thread:$0]  %s2, 64, %s37, [#allocation5]
    $region13: #{tag_decoder_forward.1} parent=1 // pred_fallthru
      _
    // Predicated region
    $region14: #{tag_decoder_forward.1} parent=1 // pred_check
      _
    $region15: #{tag_decoder_forward.1} parent=1 // pred_check_branch
      %41 = sbr.rel (0) target = $region17
    $region16: #{tag_decoder_forward.1} parent=1 // pred_region
      %s43 = ssub.s32 16384, 16384
      %44 = vsyncadd [#allocation5], %s43
      %s45 = sshll.u32 [#allocation6], 4
      %s46 = int_to_ptr.vmem [resolvable:$true] %s45
      %51 = dma.hbm_to_vmem [thread:$0]  %s3, 16384, %s46, [#allocation5], 256, 256, 16
    $region17: #{tag_decoder_forward.1} parent=1 // pred_fallthru
      _
    // Predicated region
    $region18: #{tag_decoder_forward.1} parent=1 // pred_check
      _
    $region19: #{tag_decoder_forward.1} parent=1 // pred_check_branch
      %53 = sbr.rel (0) target = $region21
    $region20: #{tag_decoder_forward.1} parent=1 // pred_region
      %s55 = ssub.s32 64, 64
      %56 = vsyncadd [#allocation8], %s55
      %s58 = sshll.u32 [#allocation7], 4
      %s59 = int_to_ptr.vmem [resolvable:$true] %s58
      %61 = dma.hbm_to_vmem [thread:$0]  %s4, 64, %s59, [#allocation8]
    $region21: #{tag_decoder_forward.1} parent=1 // pred_fallthru
      _
    // Predicated region
    $region22: #{tag_decoder_forward.1} parent=1 // pred_check
      _
    $region23: #{tag_decoder_forward.1} parent=1 // pred_check_branch
      %63 = sbr.rel (0) target = $region25
    $region24: #{tag_decoder_forward.1} parent=1 // pred_region
      %s65 = ssub.s32 32768, 32768
      %66 = vsyncadd [#allocation8], %s65
      %s67 = sshll.u32 [#allocation9], 4
      %s68 = int_to_ptr.vmem [resolvable:$true] %s67
      %73 = dma.hbm_to_vmem [thread:$0]  %s5, 32768, %s68, [#allocation8], 512, 512, 32
    $region25: #{tag_decoder_forward.1} parent=1 // pred_fallthru
      _
    // Predicated region
    $region26: #{tag_decoder_forward.1} parent=1 // pred_check
      _
    $region27: #{tag_decoder_forward.1} parent=1 // pred_check_branch
      %75 = sbr.rel (0) target = $region29
    $region28: #{tag_decoder_forward.1} parent=1 // pred_region
      %s77 = ssub.s32 128, 128
      %78 = vsyncadd [#allocation11], %s77
      %s80 = sshll.u32 [#allocation10], 4
      %s81 = int_to_ptr.vmem [resolvable:$true] %s80
      %83 = dma.hbm_to_vmem [thread:$0]  %s6, 128, %s81, [#allocation11]
    $region29: #{tag_decoder_forward.1} parent=1 // pred_fallthru
      _
    // Predicated region
    $region30: #{tag_decoder_forward.1} parent=1 // pred_check
      _
    $region31: #{tag_decoder_forward.1} parent=1 // pred_check_branch
      %85 = sbr.rel (0) target = $region33
    $region32: #{tag_decoder_forward.1} parent=1 // pred_region
      %86 = dma.done [#allocation3], 36864
    $region33: #{tag_decoder_forward.1} parent=1 // pred_fallthru
      _
    // Predicated region
    $region34: #{tag_decoder_forward.1} parent=1 // pred_check
      _
    $region35: #{tag_decoder_forward.1} parent=1 // pred_check_branch
      %88 = sbr.rel (0) target = $region37
    $region36: #{tag_decoder_forward.1} parent=1 // pred_region
      %89 = dma.done [#allocation5], 64
    $region37: #{tag_decoder_forward.1} parent=1 // pred_fallthru
      _
    // Predicated region
    $region38: #{tag_decoder_forward.1} parent=1 // pred_check
      _
    $region39: #{tag_decoder_forward.1} parent=1 // pred_check_branch
      %91 = sbr.rel (0) target = $region41
    $region40: #{tag_decoder_forward.1} parent=1 // pred_region
      %92 = dma.done [#allocation5], 16384
    $region41: #{tag_decoder_forward.1} parent=1 // pred_fallthru
      _
    // Predicated region
    $region42: #{tag_decoder_forward.1} parent=1 // pred_check
      _
    $region43: #{tag_decoder_forward.1} parent=1 // pred_check_branch
      %94 = sbr.rel (0) target = $region45
    $region44: #{tag_decoder_forward.1} parent=1 // pred_region
      %95 = dma.done [#allocation8], 64
    $region45: #{tag_decoder_forward.1} parent=1 // pred_fallthru
      _
    // Predicated region
    $region46: #{tag_decoder_forward.1} parent=1 // pred_check
      _
    $region47: #{tag_decoder_forward.1} parent=1 // pred_check_branch
      %97 = sbr.rel (0) target = $region49
    $region48: #{tag_decoder_forward.1} parent=1 // pred_region
      %98 = dma.done [#allocation8], 32768
    $region49: #{tag_decoder_forward.1} parent=1 // pred_fallthru
      _
    // Predicated region
    $region50: #{tag_decoder_forward.1} parent=1 // pred_check
      _
    $region51: #{tag_decoder_forward.1} parent=1 // pred_check_branch
      %100 = sbr.rel (0) target = $region53
    $region52: #{tag_decoder_forward.1} parent=1 // pred_region
      %101 = dma.done [#allocation11], 128
    $region53: #{tag_decoder_forward.1} parent=1 // pred_fallthru
      _
    %v103 = vld [vmem:[%s0] sm:$0xff]
    %v104 = vld [vmem:[%s0 + $0x8] sm:$0xff]
    %v105 = vld [vmem:[%s0 + $0x10] sm:$0xff]
    %v106 = vld [vmem:[%s0 + $0x18] sm:$0xff]
    %v107 = vld [vmem:[%s0 + $0x20] sm:$0xff]
    %v108 = vld [vmem:[%s0 + $0x28] sm:$0xff]
    %v109 = vld [vmem:[%s0 + $0x30] sm:$0xff]
    %v110 = vld [vmem:[%s0 + $0x38] sm:$0xff]
    %v111 = vld [vmem:[%s0 + $0x40] sm:$0xff]
    %v112 = vld [vmem:[%s0 + $0x48] sm:$0xff]
    %v113 = vld [vmem:[%s0 + $0x50] sm:$0xff]
    %v114 = vld [vmem:[%s0 + $0x58] sm:$0xff]
    %v115 = vld [vmem:[%s0 + $0x60] sm:$0xff]
    %v116 = vld [vmem:[%s0 + $0x68] sm:$0xff]
    %v117 = vld [vmem:[%s0 + $0x70] sm:$0xff]
    %v118 = vld [vmem:[%s0 + $0x78] sm:$0xff]
    %v119 = vld [vmem:[%s0 + $0x80] sm:$0xff]
    %v120 = vld [vmem:[%s0 + $0x88] sm:$0xff]
    %v121 = vpack.c.bf16 %v112, %v103
    %v122 = vpack.c.bf16 %v113, %v104
    %v123 = vpack.c.bf16 %v114, %v105
    %v124 = vpack.c.bf16 %v115, %v106
    %v125 = vpack.c.bf16 %v116, %v107
    %v126 = vpack.c.bf16 %v117, %v108
    %v127 = vpack.c.bf16 %v118, %v109
    %v128 = vpack.c.bf16 %v119, %v110
    %v129 = vpack.c.bf16 %v120, %v111
    %v130 = vld [vmem:[#allocation2] sm:$0xff]
    %v131 = vld [vmem:[#allocation2 + $0x8] sm:$0xff]
    %v132 = vld [vmem:[#allocation2 + $0x10] sm:$0xff]
    %v133 = vld [vmem:[#allocation2 + $0x18] sm:$0xff]
    %v134 = vld [vmem:[#allocation2 + $0x20] sm:$0xff]
    %v135 = vld [vmem:[#allocation2 + $0x28] sm:$0xff]
    %v136 = vld [vmem:[#allocation2 + $0x30] sm:$0xff]
    %v137 = vld [vmem:[#allocation2 + $0x38] sm:$0xff]
    %v138 = vld [vmem:[#allocation2 + $0x40] sm:$0xff]
    %v139 = vld [vmem:[#allocation2 + $0x48] sm:$0xff]
    %v140 = vld [vmem:[#allocation2 + $0x50] sm:$0xff]
    %v141 = vld [vmem:[#allocation2 + $0x58] sm:$0xff]
    %v142 = vld [vmem:[#allocation2 + $0x60] sm:$0xff]
    %v143 = vld [vmem:[#allocation2 + $0x68] sm:$0xff]
    %v144 = vld [vmem:[#allocation2 + $0x70] sm:$0xff]
    %v145 = vld [vmem:[#allocation2 + $0x78] sm:$0xff]
    %v146 = vld [vmem:[#allocation2 + $0x80] sm:$0xff]
    %v147 = vld [vmem:[#allocation2 + $0x88] sm:$0xff]
    %v148 = vld [vmem:[#allocation2 + $0x90] sm:$0xff]
    %v149 = vld [vmem:[#allocation2 + $0x98] sm:$0xff]
    %v150 = vld [vmem:[#allocation2 + $0xa0] sm:$0xff]
    %v151 = vld [vmem:[#allocation2 + $0xa8] sm:$0xff]
    %v152 = vld [vmem:[#allocation2 + $0xb0] sm:$0xff]
    %v153 = vld [vmem:[#allocation2 + $0xb8] sm:$0xff]
    %v154 = vld [vmem:[#allocation2 + $0xc0] sm:$0xff]
    %v155 = vld [vmem:[#allocation2 + $0xc8] sm:$0xff]
    %v156 = vld [vmem:[#allocation2 + $0xd0] sm:$0xff]
    %v157 = vld [vmem:[#allocation2 + $0xd8] sm:$0xff]
    %v158 = vld [vmem:[#allocation2 + $0xe0] sm:$0xff]
    %v159 = vld [vmem:[#allocation2 + $0xe8] sm:$0xff]
    %v160 = vld [vmem:[#allocation2 + $0xf0] sm:$0xff]
    %v161 = vld [vmem:[#allocation2 + $0xf8] sm:$0xff]
    %v162 = vld [vmem:[#allocation2 + $0x100] sm:$0xff]
    %v163 = vld [vmem:[#allocation2 + $0x108] sm:$0xff]
    %v164 = vld [vmem:[#allocation2 + $0x110] sm:$0xff]
    %v165 = vld [vmem:[#allocation2 + $0x118] sm:$0xff]
    %v166 = vld [vmem:[#allocation2 + $0x120] sm:$0xff]
    %v167 = vld [vmem:[#allocation2 + $0x128] sm:$0xff]
    %v168 = vld [vmem:[#allocation2 + $0x130] sm:$0xff]
    %v169 = vld [vmem:[#allocation2 + $0x138] sm:$0xff]
    %v170 = vld [vmem:[#allocation2 + $0x140] sm:$0xff]
    %v171 = vld [vmem:[#allocation2 + $0x148] sm:$0xff]
    %v172 = vld [vmem:[#allocation2 + $0x150] sm:$0xff]
    %v173 = vld [vmem:[#allocation2 + $0x158] sm:$0xff]
    %v174 = vld [vmem:[#allocation2 + $0x160] sm:$0xff]
    %v175 = vld [vmem:[#allocation2 + $0x168] sm:$0xff]
    %v176 = vld [vmem:[#allocation2 + $0x170] sm:$0xff]
    %v177 = vld [vmem:[#allocation2 + $0x178] sm:$0xff]
    %v178 = vld [vmem:[#allocation2 + $0x180] sm:$0xff]
    %v179 = vld [vmem:[#allocation2 + $0x188] sm:$0xff]
    %v180 = vld [vmem:[#allocation2 + $0x190] sm:$0xff]
    %v181 = vld [vmem:[#allocation2 + $0x198] sm:$0xff]
    %v182 = vld [vmem:[#allocation2 + $0x1a0] sm:$0xff]
    %v183 = vld [vmem:[#allocation2 + $0x1a8] sm:$0xff]
    %v184 = vld [vmem:[#allocation2 + $0x1b0] sm:$0xff]
    %v185 = vld [vmem:[#allocation2 + $0x1b8] sm:$0xff]
    %v186 = vld [vmem:[#allocation2 + $0x1c0] sm:$0xff]
    %v187 = vld [vmem:[#allocation2 + $0x1c8] sm:$0xff]
    %v188 = vld [vmem:[#allocation2 + $0x1d0] sm:$0xff]
    %v189 = vld [vmem:[#allocation2 + $0x1d8] sm:$0xff]
    %v190 = vld [vmem:[#allocation2 + $0x1e0] sm:$0xff]
    %v191 = vld [vmem:[#allocation2 + $0x1e8] sm:$0xff]
    %v192 = vld [vmem:[#allocation2 + $0x1f0] sm:$0xff]
    %v193 = vld [vmem:[#allocation2 + $0x1f8] sm:$0xff]
    %v194 = vld [vmem:[#allocation2 + $0x200] sm:$0xff]
    %v195 = vld [vmem:[#allocation2 + $0x208] sm:$0xff]
    %v196 = vld [vmem:[#allocation2 + $0x210] sm:$0xff]
    %v197 = vld [vmem:[#allocation2 + $0x218] sm:$0xff]
    %v198 = vld [vmem:[#allocation2 + $0x220] sm:$0xff]
    %v199 = vld [vmem:[#allocation2 + $0x228] sm:$0xff]
    %v200 = vld [vmem:[#allocation2 + $0x230] sm:$0xff]
    %v201 = vld [vmem:[#allocation2 + $0x238] sm:$0xff]
    %v202 = vld [vmem:[#allocation2 + $0x240] sm:$0xff]
    %v203 = vld [vmem:[#allocation2 + $0x248] sm:$0xff]
    %v204 = vld [vmem:[#allocation2 + $0x250] sm:$0xff]
    %v205 = vld [vmem:[#allocation2 + $0x258] sm:$0xff]
    %v206 = vld [vmem:[#allocation2 + $0x260] sm:$0xff]
    %v207 = vld [vmem:[#allocation2 + $0x268] sm:$0xff]
    %v208 = vld [vmem:[#allocation2 + $0x270] sm:$0xff]
    %v209 = vld [vmem:[#allocation2 + $0x278] sm:$0xff]
    %v210 = vld [vmem:[#allocation2 + $0x280] sm:$0xff]
    %v211 = vld [vmem:[#allocation2 + $0x288] sm:$0xff]
    %v212 = vld [vmem:[#allocation2 + $0x290] sm:$0xff]
    %v213 = vld [vmem:[#allocation2 + $0x298] sm:$0xff]
    %v214 = vld [vmem:[#allocation2 + $0x2a0] sm:$0xff]
    %v215 = vld [vmem:[#allocation2 + $0x2a8] sm:$0xff]
    %v216 = vld [vmem:[#allocation2 + $0x2b0] sm:$0xff]
    %v217 = vld [vmem:[#allocation2 + $0x2b8] sm:$0xff]
    %v218 = vld [vmem:[#allocation2 + $0x2c0] sm:$0xff]
    %v219 = vld [vmem:[#allocation2 + $0x2c8] sm:$0xff]
    %v220 = vld [vmem:[#allocation2 + $0x2d0] sm:$0xff]
    %v221 = vld [vmem:[#allocation2 + $0x2d8] sm:$0xff]
    %v222 = vld [vmem:[#allocation2 + $0x2e0] sm:$0xff]
    %v223 = vld [vmem:[#allocation2 + $0x2e8] sm:$0xff]
    %v224 = vld [vmem:[#allocation2 + $0x2f0] sm:$0xff]
    %v225 = vld [vmem:[#allocation2 + $0x2f8] sm:$0xff]
    %v226 = vld [vmem:[#allocation2 + $0x300] sm:$0xff]
    %v227 = vld [vmem:[#allocation2 + $0x308] sm:$0xff]
    %v228 = vld [vmem:[#allocation2 + $0x310] sm:$0xff]
    %v229 = vld [vmem:[#allocation2 + $0x318] sm:$0xff]
    %v230 = vld [vmem:[#allocation2 + $0x320] sm:$0xff]
    %v231 = vld [vmem:[#allocation2 + $0x328] sm:$0xff]
    %v232 = vld [vmem:[#allocation2 + $0x330] sm:$0xff]
    %v233 = vld [vmem:[#allocation2 + $0x338] sm:$0xff]
    %v234 = vld [vmem:[#allocation2 + $0x340] sm:$0xff]
    %v235 = vld [vmem:[#allocation2 + $0x348] sm:$0xff]
    %v236 = vld [vmem:[#allocation2 + $0x350] sm:$0xff]
    %v237 = vld [vmem:[#allocation2 + $0x358] sm:$0xff]
    %v238 = vld [vmem:[#allocation2 + $0x360] sm:$0xff]
    %v239 = vld [vmem:[#allocation2 + $0x368] sm:$0xff]
    %v240 = vld [vmem:[#allocation2 + $0x370] sm:$0xff]
    %v241 = vld [vmem:[#allocation2 + $0x378] sm:$0xff]
    %v242 = vld [vmem:[#allocation2 + $0x380] sm:$0xff]
    %v243 = vld [vmem:[#allocation2 + $0x388] sm:$0xff]
    %v244 = vld [vmem:[#allocation2 + $0x390] sm:$0xff]
    %v245 = vld [vmem:[#allocation2 + $0x398] sm:$0xff]
    %v246 = vld [vmem:[#allocation2 + $0x3a0] sm:$0xff]
    %v247 = vld [vmem:[#allocation2 + $0x3a8] sm:$0xff]
    %v248 = vld [vmem:[#allocation2 + $0x3b0] sm:$0xff]
    %v249 = vld [vmem:[#allocation2 + $0x3b8] sm:$0xff]
    %v250 = vld [vmem:[#allocation2 + $0x3c0] sm:$0xff]
    %v251 = vld [vmem:[#allocation2 + $0x3c8] sm:$0xff]
    %v252 = vld [vmem:[#allocation2 + $0x3d0] sm:$0xff]
    %v253 = vld [vmem:[#allocation2 + $0x3d8] sm:$0xff]
    %v254 = vld [vmem:[#allocation2 + $0x3e0] sm:$0xff]
    %v255 = vld [vmem:[#allocation2 + $0x3e8] sm:$0xff]
    %v256 = vld [vmem:[#allocation2 + $0x3f0] sm:$0xff]
    %v257 = vld [vmem:[#allocation2 + $0x3f8] sm:$0xff]
    %v258 = vld [vmem:[#allocation2 + $0x400] sm:$0xff]
    %v259 = vld [vmem:[#allocation2 + $0x408] sm:$0xff]
    %v260 = vld [vmem:[#allocation2 + $0x410] sm:$0xff]
    %v261 = vld [vmem:[#allocation2 + $0x418] sm:$0xff]
    %v262 = vld [vmem:[#allocation2 + $0x420] sm:$0xff]
    %v263 = vld [vmem:[#allocation2 + $0x428] sm:$0xff]
    %v264 = vld [vmem:[#allocation2 + $0x430] sm:$0xff]
    %v265 = vld [vmem:[#allocation2 + $0x438] sm:$0xff]
    %v266 = vld [vmem:[#allocation2 + $0x440] sm:$0xff]
    %v267 = vld [vmem:[#allocation2 + $0x448] sm:$0xff]
    %v268 = vld [vmem:[#allocation2 + $0x450] sm:$0xff]
    %v269 = vld [vmem:[#allocation2 + $0x458] sm:$0xff]
    %v270 = vld [vmem:[#allocation2 + $0x460] sm:$0xff]
    %v271 = vld [vmem:[#allocation2 + $0x468] sm:$0xff]
    %v272 = vld [vmem:[#allocation2 + $0x470] sm:$0xff]
    %v273 = vld [vmem:[#allocation2 + $0x478] sm:$0xff]
    %v274 = vld [vmem:[#allocation2 + $0x480] sm:$0xff]
    %v275 = vld [vmem:[#allocation2 + $0x488] sm:$0xff]
    %v276 = vld [vmem:[#allocation2 + $0x490] sm:$0xff]
    %v277 = vld [vmem:[#allocation2 + $0x498] sm:$0xff]
    %v278 = vld [vmem:[#allocation2 + $0x4a0] sm:$0xff]
    %v279 = vld [vmem:[#allocation2 + $0x4a8] sm:$0xff]
    %v280 = vld [vmem:[#allocation2 + $0x4b0] sm:$0xff]
    %v281 = vld [vmem:[#allocation2 + $0x4b8] sm:$0xff]
    %v282 = vld [vmem:[#allocation2 + $0x4c0] sm:$0xff]
    %v283 = vld [vmem:[#allocation2 + $0x4c8] sm:$0xff]
    %v284 = vld [vmem:[#allocation2 + $0x4d0] sm:$0xff]
    %v285 = vld [vmem:[#allocation2 + $0x4d8] sm:$0xff]
    %v286 = vld [vmem:[#allocation2 + $0x4e0] sm:$0xff]
    %v287 = vld [vmem:[#allocation2 + $0x4e8] sm:$0xff]
    %v288 = vld [vmem:[#allocation2 + $0x4f0] sm:$0xff]
    %v289 = vld [vmem:[#allocation2 + $0x4f8] sm:$0xff]
    %v290 = vld [vmem:[#allocation2 + $0x500] sm:$0xff]
    %v291 = vld [vmem:[#allocation2 + $0x508] sm:$0xff]
    %v292 = vld [vmem:[#allocation2 + $0x510] sm:$0xff]
    %v293 = vld [vmem:[#allocation2 + $0x518] sm:$0xff]
    %v294 = vld [vmem:[#allocation2 + $0x520] sm:$0xff]
    %v295 = vld [vmem:[#allocation2 + $0x528] sm:$0xff]
    %v296 = vld [vmem:[#allocation2 + $0x530] sm:$0xff]
    %v297 = vld [vmem:[#allocation2 + $0x538] sm:$0xff]
    %v298 = vld [vmem:[#allocation2 + $0x540] sm:$0xff]
    %v299 = vld [vmem:[#allocation2 + $0x548] sm:$0xff]
    %v300 = vld [vmem:[#allocation2 + $0x550] sm:$0xff]
    %v301 = vld [vmem:[#allocation2 + $0x558] sm:$0xff]
    %v302 = vld [vmem:[#allocation2 + $0x560] sm:$0xff]
    %v303 = vld [vmem:[#allocation2 + $0x568] sm:$0xff]
    %v304 = vld [vmem:[#allocation2 + $0x570] sm:$0xff]
    %v305 = vld [vmem:[#allocation2 + $0x578] sm:$0xff]
    %v306 = vld [vmem:[#allocation2 + $0x580] sm:$0xff]
    %v307 = vld [vmem:[#allocation2 + $0x588] sm:$0xff]
    %v308 = vld [vmem:[#allocation2 + $0x590] sm:$0xff]
    %v309 = vld [vmem:[#allocation2 + $0x598] sm:$0xff]
    %v310 = vld [vmem:[#allocation2 + $0x5a0] sm:$0xff]
    %v311 = vld [vmem:[#allocation2 + $0x5a8] sm:$0xff]
    %v312 = vld [vmem:[#allocation2 + $0x5b0] sm:$0xff]
    %v313 = vld [vmem:[#allocation2 + $0x5b8] sm:$0xff]
    %v314 = vld [vmem:[#allocation2 + $0x5c0] sm:$0xff]
    %v315 = vld [vmem:[#allocation2 + $0x5c8] sm:$0xff]
    %v316 = vld [vmem:[#allocation2 + $0x5d0] sm:$0xff]
    %v317 = vld [vmem:[#allocation2 + $0x5d8] sm:$0xff]
    %v318 = vld [vmem:[#allocation2 + $0x5e0] sm:$0xff]
    %v319 = vld [vmem:[#allocation2 + $0x5e8] sm:$0xff]
    %v320 = vld [vmem:[#allocation2 + $0x5f0] sm:$0xff]
    %v321 = vld [vmem:[#allocation2 + $0x5f8] sm:$0xff]
    %v322 = vld [vmem:[#allocation2 + $0x600] sm:$0xff]
    %v323 = vld [vmem:[#allocation2 + $0x608] sm:$0xff]
    %v324 = vld [vmem:[#allocation2 + $0x610] sm:$0xff]
    %v325 = vld [vmem:[#allocation2 + $0x618] sm:$0xff]
    %v326 = vld [vmem:[#allocation2 + $0x620] sm:$0xff]
    %v327 = vld [vmem:[#allocation2 + $0x628] sm:$0xff]
    %v328 = vld [vmem:[#allocation2 + $0x630] sm:$0xff]
    %v329 = vld [vmem:[#allocation2 + $0x638] sm:$0xff]
    %v330 = vld [vmem:[#allocation2 + $0x640] sm:$0xff]
    %v331 = vld [vmem:[#allocation2 + $0x648] sm:$0xff]
    %v332 = vld [vmem:[#allocation2 + $0x650] sm:$0xff]
    %v333 = vld [vmem:[#allocation2 + $0x658] sm:$0xff]
    %v334 = vld [vmem:[#allocation2 + $0x660] sm:$0xff]
    %v335 = vld [vmem:[#allocation2 + $0x668] sm:$0xff]
    %v336 = vld [vmem:[#allocation2 + $0x670] sm:$0xff]
    %v337 = vld [vmem:[#allocation2 + $0x678] sm:$0xff]
    %v338 = vld [vmem:[#allocation2 + $0x680] sm:$0xff]
    %v339 = vld [vmem:[#allocation2 + $0x688] sm:$0xff]
    %v340 = vld [vmem:[#allocation2 + $0x690] sm:$0xff]
    %v341 = vld [vmem:[#allocation2 + $0x698] sm:$0xff]
    %v342 = vld [vmem:[#allocation2 + $0x6a0] sm:$0xff]
    %v343 = vld [vmem:[#allocation2 + $0x6a8] sm:$0xff]
    %v344 = vld [vmem:[#allocation2 + $0x6b0] sm:$0xff]
    %v345 = vld [vmem:[#allocation2 + $0x6b8] sm:$0xff]
    %v346 = vld [vmem:[#allocation2 + $0x6c0] sm:$0xff]
    %v347 = vld [vmem:[#allocation2 + $0x6c8] sm:$0xff]
    %v348 = vld [vmem:[#allocation2 + $0x6d0] sm:$0xff]
    %v349 = vld [vmem:[#allocation2 + $0x6d8] sm:$0xff]
    %v350 = vld [vmem:[#allocation2 + $0x6e0] sm:$0xff]
    %v351 = vld [vmem:[#allocation2 + $0x6e8] sm:$0xff]
    %v352 = vld [vmem:[#allocation2 + $0x6f0] sm:$0xff]
    %v353 = vld [vmem:[#allocation2 + $0x6f8] sm:$0xff]
    %v354 = vld [vmem:[#allocation2 + $0x700] sm:$0xff]
    %v355 = vld [vmem:[#allocation2 + $0x708] sm:$0xff]
    %v356 = vld [vmem:[#allocation2 + $0x710] sm:$0xff]
    %v357 = vld [vmem:[#allocation2 + $0x718] sm:$0xff]
    %v358 = vld [vmem:[#allocation2 + $0x720] sm:$0xff]
    %v359 = vld [vmem:[#allocation2 + $0x728] sm:$0xff]
    %v360 = vld [vmem:[#allocation2 + $0x730] sm:$0xff]
    %v361 = vld [vmem:[#allocation2 + $0x738] sm:$0xff]
    %v362 = vld [vmem:[#allocation2 + $0x740] sm:$0xff]
    %v363 = vld [vmem:[#allocation2 + $0x748] sm:$0xff]
    %v364 = vld [vmem:[#allocation2 + $0x750] sm:$0xff]
    %v365 = vld [vmem:[#allocation2 + $0x758] sm:$0xff]
    %v366 = vld [vmem:[#allocation2 + $0x760] sm:$0xff]
    %v367 = vld [vmem:[#allocation2 + $0x768] sm:$0xff]
    %v368 = vld [vmem:[#allocation2 + $0x770] sm:$0xff]
    %v369 = vld [vmem:[#allocation2 + $0x778] sm:$0xff]
    %v370 = vld [vmem:[#allocation2 + $0x780] sm:$0xff]
    %v371 = vld [vmem:[#allocation2 + $0x788] sm:$0xff]
    %v372 = vld [vmem:[#allocation2 + $0x790] sm:$0xff]
    %v373 = vld [vmem:[#allocation2 + $0x798] sm:$0xff]
    %v374 = vld [vmem:[#allocation2 + $0x7a0] sm:$0xff]
    %v375 = vld [vmem:[#allocation2 + $0x7a8] sm:$0xff]
    %v376 = vld [vmem:[#allocation2 + $0x7b0] sm:$0xff]
    %v377 = vld [vmem:[#allocation2 + $0x7b8] sm:$0xff]
    %v378 = vld [vmem:[#allocation2 + $0x7c0] sm:$0xff]
    %v379 = vld [vmem:[#allocation2 + $0x7c8] sm:$0xff]
    %v380 = vld [vmem:[#allocation2 + $0x7d0] sm:$0xff]
    %v381 = vld [vmem:[#allocation2 + $0x7d8] sm:$0xff]
    %v382 = vld [vmem:[#allocation2 + $0x7e0] sm:$0xff]
    %v383 = vld [vmem:[#allocation2 + $0x7e8] sm:$0xff]
    %v384 = vld [vmem:[#allocation2 + $0x7f0] sm:$0xff]
    %v385 = vld [vmem:[#allocation2 + $0x7f8] sm:$0xff]
    %v386 = vld [vmem:[#allocation2 + $0x800] sm:$0xff]
    %v387 = vld [vmem:[#allocation2 + $0x808] sm:$0xff]
    %v388 = vld [vmem:[#allocation2 + $0x810] sm:$0xff]
    %v389 = vld [vmem:[#allocation2 + $0x818] sm:$0xff]
    %v390 = vld [vmem:[#allocation2 + $0x820] sm:$0xff]
    %v391 = vld [vmem:[#allocation2 + $0x828] sm:$0xff]
    %v392 = vld [vmem:[#allocation2 + $0x830] sm:$0xff]
    %v393 = vld [vmem:[#allocation2 + $0x838] sm:$0xff]
    %v394 = vld [vmem:[#allocation2 + $0x840] sm:$0xff]
    %v395 = vld [vmem:[#allocation2 + $0x848] sm:$0xff]
    %v396 = vld [vmem:[#allocation2 + $0x850] sm:$0xff]
    %v397 = vld [vmem:[#allocation2 + $0x858] sm:$0xff]
    %v398 = vld [vmem:[#allocation2 + $0x860] sm:$0xff]
    %v399 = vld [vmem:[#allocation2 + $0x868] sm:$0xff]
    %v400 = vld [vmem:[#allocation2 + $0x870] sm:$0xff]
    %v401 = vld [vmem:[#allocation2 + $0x878] sm:$0xff]
    %v402 = vld [vmem:[#allocation2 + $0x880] sm:$0xff]
    %v403 = vld [vmem:[#allocation2 + $0x888] sm:$0xff]
    %v404 = vld [vmem:[#allocation2 + $0x890] sm:$0xff]
    %v405 = vld [vmem:[#allocation2 + $0x898] sm:$0xff]
    %v406 = vld [vmem:[#allocation2 + $0x8a0] sm:$0xff]
    %v407 = vld [vmem:[#allocation2 + $0x8a8] sm:$0xff]
    %v408 = vld [vmem:[#allocation2 + $0x8b0] sm:$0xff]
    %v409 = vld [vmem:[#allocation2 + $0x8b8] sm:$0xff]
    %v410 = vld [vmem:[#allocation2 + $0x8c0] sm:$0xff]
    %v411 = vld [vmem:[#allocation2 + $0x8c8] sm:$0xff]
    %v412 = vld [vmem:[#allocation2 + $0x8d0] sm:$0xff]
    %v413 = vld [vmem:[#allocation2 + $0x8d8] sm:$0xff]
    %v414 = vld [vmem:[#allocation2 + $0x8e0] sm:$0xff]
    %v415 = vld [vmem:[#allocation2 + $0x8e8] sm:$0xff]
    %v416 = vld [vmem:[#allocation2 + $0x8f0] sm:$0xff]
    %v417 = vld [vmem:[#allocation2 + $0x8f8] sm:$0xff]
    %v418 = vld [vmem:[#allocation4] sm:$0xf]
    %v420 = vlaneseq
    %v421 = vshrl.u32 %v420, 7
    %v422 = vsub.s32 0, %v421
    %v423 = vrot.slane %v418, %v422
    %v424 = vlaneseq
    %v425 = vshrl.u32 %v424, 7
    %v426 = vsub.s32 1, %v425
    %v427 = vrot.slane %v418, %v426
    %v428 = vlaneseq
    %v429 = vshrl.u32 %v428, 7
    %v430 = vsub.s32 2, %v429
    %v431 = vrot.slane %v418, %v430
    %v432 = vlaneseq
    %v433 = vshrl.u32 %v432, 7
    %v434 = vsub.s32 3, %v433
    %v435 = vrot.slane %v418, %v434
    %v728 = vunpack.c.l.b16 %v130
    %v729 = vunpack.c.h.b16 %v130
    %v730 = vunpack.c.l.b16 %v131
    %v731 = vunpack.c.h.b16 %v131
    %v732 = vunpack.c.l.b16 %v132
    %v733 = vunpack.c.h.b16 %v132
    %v734 = vunpack.c.l.b16 %v133
    %v735 = vunpack.c.h.b16 %v133
    %v736 = vunpack.c.l.b16 %v134
    %v737 = vunpack.c.h.b16 %v134
    %v738 = vunpack.c.l.b16 %v135
    %v739 = vunpack.c.h.b16 %v135
    %v740 = vunpack.c.l.b16 %v136
    %v741 = vunpack.c.h.b16 %v136
    %v742 = vunpack.c.l.b16 %v137
    %v743 = vunpack.c.h.b16 %v137
    %v744 = vunpack.c.l.b16 %v138
    %v745 = vunpack.c.h.b16 %v138
    %v746 = vunpack.c.l.b16 %v139
    %v747 = vunpack.c.h.b16 %v139
    %v748 = vunpack.c.l.b16 %v140
    %v749 = vunpack.c.h.b16 %v140
    %v750 = vunpack.c.l.b16 %v141
    %v751 = vunpack.c.h.b16 %v141
    %v752 = vunpack.c.l.b16 %v142
    %v753 = vunpack.c.h.b16 %v142
    %v754 = vunpack.c.l.b16 %v143
    %v755 = vunpack.c.h.b16 %v143
    %v756 = vunpack.c.l.b16 %v144
    %v757 = vunpack.c.h.b16 %v144
    %v758 = vunpack.c.l.b16 %v145
    %v759 = vunpack.c.h.b16 %v145
    %v760 = vunpack.c.l.b16 %v146
    %v761 = vunpack.c.h.b16 %v146
    %v762 = vunpack.c.l.b16 %v147
    %v763 = vunpack.c.h.b16 %v147
    %v764 = vunpack.c.l.b16 %v148
    %v765 = vunpack.c.h.b16 %v148
    %v766 = vunpack.c.l.b16 %v149
    %v767 = vunpack.c.h.b16 %v149
    %v768 = vunpack.c.l.b16 %v150
    %v769 = vunpack.c.h.b16 %v150
    %v770 = vunpack.c.l.b16 %v151
    %v771 = vunpack.c.h.b16 %v151
    %v772 = vunpack.c.l.b16 %v152
    %v773 = vunpack.c.h.b16 %v152
    %v774 = vunpack.c.l.b16 %v153
    %v775 = vunpack.c.h.b16 %v153
    %v776 = vunpack.c.l.b16 %v154
    %v777 = vunpack.c.h.b16 %v154
    %v778 = vunpack.c.l.b16 %v155
    %v779 = vunpack.c.h.b16 %v155
    %v780 = vunpack.c.l.b16 %v156
    %v781 = vunpack.c.h.b16 %v156
    %v782 = vunpack.c.l.b16 %v157
    %v783 = vunpack.c.h.b16 %v157
    %v784 = vunpack.c.l.b16 %v158
    %v785 = vunpack.c.h.b16 %v158
    %v786 = vunpack.c.l.b16 %v159
    %v787 = vunpack.c.h.b16 %v159
    %v788 = vunpack.c.l.b16 %v160
    %v789 = vunpack.c.h.b16 %v160
    %v790 = vunpack.c.l.b16 %v161
    %v791 = vunpack.c.h.b16 %v161
    %v792 = vunpack.c.l.b16 %v162
    %v793 = vunpack.c.h.b16 %v162
    %v794 = vunpack.c.l.b16 %v163
    %v795 = vunpack.c.h.b16 %v163
    %v796 = vunpack.c.l.b16 %v164
    %v797 = vunpack.c.h.b16 %v164
    %v798 = vunpack.c.l.b16 %v165
    %v799 = vunpack.c.h.b16 %v165
    %v800 = vunpack.c.l.b16 %v166
    %v801 = vunpack.c.h.b16 %v166
    %v802 = vunpack.c.l.b16 %v167
    %v803 = vunpack.c.h.b16 %v167
    %v804 = vunpack.c.l.b16 %v168
    %v805 = vunpack.c.h.b16 %v168
    %v806 = vunpack.c.l.b16 %v169
    %v807 = vunpack.c.h.b16 %v169
    %v808 = vunpack.c.l.b16 %v170
    %v809 = vunpack.c.h.b16 %v170
    %v810 = vunpack.c.l.b16 %v171
    %v811 = vunpack.c.h.b16 %v171
    %v812 = vunpack.c.l.b16 %v172
    %v813 = vunpack.c.h.b16 %v172
    %v814 = vunpack.c.l.b16 %v173
    %v815 = vunpack.c.h.b16 %v173
    %v816 = vunpack.c.l.b16 %v174
    %v817 = vunpack.c.h.b16 %v174
    %v818 = vunpack.c.l.b16 %v175
    %v819 = vunpack.c.h.b16 %v175
    %v820 = vunpack.c.l.b16 %v176
    %v821 = vunpack.c.h.b16 %v176
    %v822 = vunpack.c.l.b16 %v177
    %v823 = vunpack.c.h.b16 %v177
    %v824 = vunpack.c.l.b16 %v178
    %v825 = vunpack.c.h.b16 %v178
    %v826 = vunpack.c.l.b16 %v179
    %v827 = vunpack.c.h.b16 %v179
    %v828 = vunpack.c.l.b16 %v180
    %v829 = vunpack.c.h.b16 %v180
    %v830 = vunpack.c.l.b16 %v181
    %v831 = vunpack.c.h.b16 %v181
    %v832 = vunpack.c.l.b16 %v182
    %v833 = vunpack.c.h.b16 %v182
    %v834 = vunpack.c.l.b16 %v183
    %v835 = vunpack.c.h.b16 %v183
    %v836 = vunpack.c.l.b16 %v184
    %v837 = vunpack.c.h.b16 %v184
    %v838 = vunpack.c.l.b16 %v185
    %v839 = vunpack.c.h.b16 %v185
    %v840 = vunpack.c.l.b16 %v186
    %v841 = vunpack.c.h.b16 %v186
    %v842 = vunpack.c.l.b16 %v187
    %v843 = vunpack.c.h.b16 %v187
    %v844 = vunpack.c.l.b16 %v188
    %v845 = vunpack.c.h.b16 %v188
    %v846 = vunpack.c.l.b16 %v189
    %v847 = vunpack.c.h.b16 %v189
    %v848 = vunpack.c.l.b16 %v190
    %v849 = vunpack.c.h.b16 %v190
    %v850 = vunpack.c.l.b16 %v191
    %v851 = vunpack.c.h.b16 %v191
    %v852 = vunpack.c.l.b16 %v192
    %v853 = vunpack.c.h.b16 %v192
    %v854 = vunpack.c.l.b16 %v193
    %v855 = vunpack.c.h.b16 %v193
    %v856 = vunpack.c.l.b16 %v194
    %v857 = vunpack.c.h.b16 %v194
    %v858 = vunpack.c.l.b16 %v195
    %v859 = vunpack.c.h.b16 %v195
    %v860 = vunpack.c.l.b16 %v196
    %v861 = vunpack.c.h.b16 %v196
    %v862 = vunpack.c.l.b16 %v197
    %v863 = vunpack.c.h.b16 %v197
    %v864 = vunpack.c.l.b16 %v198
    %v865 = vunpack.c.h.b16 %v198
    %v866 = vunpack.c.l.b16 %v199
    %v867 = vunpack.c.h.b16 %v199
    %v868 = vunpack.c.l.b16 %v200
    %v869 = vunpack.c.h.b16 %v200
    %v870 = vunpack.c.l.b16 %v201
    %v871 = vunpack.c.h.b16 %v201
    %v872 = vunpack.c.l.b16 %v202
    %v873 = vunpack.c.h.b16 %v202
    %v874 = vunpack.c.l.b16 %v203
    %v875 = vunpack.c.h.b16 %v203
    %v876 = vunpack.c.l.b16 %v204
    %v877 = vunpack.c.h.b16 %v204
    %v878 = vunpack.c.l.b16 %v205
    %v879 = vunpack.c.h.b16 %v205
    %v880 = vunpack.c.l.b16 %v206
    %v881 = vunpack.c.h.b16 %v206
    %v882 = vunpack.c.l.b16 %v207
    %v883 = vunpack.c.h.b16 %v207
    %v884 = vunpack.c.l.b16 %v208
    %v885 = vunpack.c.h.b16 %v208
    %v886 = vunpack.c.l.b16 %v209
    %v887 = vunpack.c.h.b16 %v209
    %v888 = vunpack.c.l.b16 %v210
    %v889 = vunpack.c.h.b16 %v210
    %v890 = vunpack.c.l.b16 %v211
    %v891 = vunpack.c.h.b16 %v211
    %v892 = vunpack.c.l.b16 %v212
    %v893 = vunpack.c.h.b16 %v212
    %v894 = vunpack.c.l.b16 %v213
    %v895 = vunpack.c.h.b16 %v213
    %v896 = vunpack.c.l.b16 %v214
    %v897 = vunpack.c.h.b16 %v214
    %v898 = vunpack.c.l.b16 %v215
    %v899 = vunpack.c.h.b16 %v215
    %v900 = vunpack.c.l.b16 %v216
    %v901 = vunpack.c.h.b16 %v216
    %v902 = vunpack.c.l.b16 %v217
    %v903 = vunpack.c.h.b16 %v217
    %v904 = vunpack.c.l.b16 %v218
    %v905 = vunpack.c.h.b16 %v218
    %v906 = vunpack.c.l.b16 %v219
    %v907 = vunpack.c.h.b16 %v219
    %v908 = vunpack.c.l.b16 %v220
    %v909 = vunpack.c.h.b16 %v220
    %v910 = vunpack.c.l.b16 %v221
    %v911 = vunpack.c.h.b16 %v221
    %v912 = vunpack.c.l.b16 %v222
    %v913 = vunpack.c.h.b16 %v222
    %v914 = vunpack.c.l.b16 %v223
    %v915 = vunpack.c.h.b16 %v223
    %v916 = vunpack.c.l.b16 %v224
    %v917 = vunpack.c.h.b16 %v224
    %v918 = vunpack.c.l.b16 %v225
    %v919 = vunpack.c.h.b16 %v225
    %v920 = vunpack.c.l.b16 %v226
    %v921 = vunpack.c.h.b16 %v226
    %v922 = vunpack.c.l.b16 %v227
    %v923 = vunpack.c.h.b16 %v227
    %v924 = vunpack.c.l.b16 %v228
    %v925 = vunpack.c.h.b16 %v228
    %v926 = vunpack.c.l.b16 %v229
    %v927 = vunpack.c.h.b16 %v229
    %v928 = vunpack.c.l.b16 %v230
    %v929 = vunpack.c.h.b16 %v230
    %v930 = vunpack.c.l.b16 %v231
    %v931 = vunpack.c.h.b16 %v231
    %v932 = vunpack.c.l.b16 %v232
    %v933 = vunpack.c.h.b16 %v232
    %v934 = vunpack.c.l.b16 %v233
    %v935 = vunpack.c.h.b16 %v233
    %v936 = vunpack.c.l.b16 %v234
    %v937 = vunpack.c.h.b16 %v234
    %v938 = vunpack.c.l.b16 %v235
    %v939 = vunpack.c.h.b16 %v235
    %v940 = vunpack.c.l.b16 %v236
    %v941 = vunpack.c.h.b16 %v236
    %v942 = vunpack.c.l.b16 %v237
    %v943 = vunpack.c.h.b16 %v237
    %v944 = vunpack.c.l.b16 %v238
    %v945 = vunpack.c.h.b16 %v238
    %v946 = vunpack.c.l.b16 %v239
    %v947 = vunpack.c.h.b16 %v239
    %v948 = vunpack.c.l.b16 %v240
    %v949 = vunpack.c.h.b16 %v240
    %v950 = vunpack.c.l.b16 %v241
    %v951 = vunpack.c.h.b16 %v241
    %v952 = vunpack.c.l.b16 %v242
    %v953 = vunpack.c.h.b16 %v242
    %v954 = vunpack.c.l.b16 %v243
    %v955 = vunpack.c.h.b16 %v243
    %v956 = vunpack.c.l.b16 %v244
    %v957 = vunpack.c.h.b16 %v244
    %v958 = vunpack.c.l.b16 %v245
    %v959 = vunpack.c.h.b16 %v245
    %v960 = vunpack.c.l.b16 %v246
    %v961 = vunpack.c.h.b16 %v246
    %v962 = vunpack.c.l.b16 %v247
    %v963 = vunpack.c.h.b16 %v247
    %v964 = vunpack.c.l.b16 %v248
    %v965 = vunpack.c.h.b16 %v248
    %v966 = vunpack.c.l.b16 %v249
    %v967 = vunpack.c.h.b16 %v249
    %v968 = vunpack.c.l.b16 %v250
    %v969 = vunpack.c.h.b16 %v250
    %v970 = vunpack.c.l.b16 %v251
    %v971 = vunpack.c.h.b16 %v251
    %v972 = vunpack.c.l.b16 %v252
    %v973 = vunpack.c.h.b16 %v252
    %v974 = vunpack.c.l.b16 %v253
    %v975 = vunpack.c.h.b16 %v253
    %v976 = vunpack.c.l.b16 %v254
    %v977 = vunpack.c.h.b16 %v254
    %v978 = vunpack.c.l.b16 %v255
    %v979 = vunpack.c.h.b16 %v255
    %v980 = vunpack.c.l.b16 %v256
    %v981 = vunpack.c.h.b16 %v256
    %v982 = vunpack.c.l.b16 %v257
    %v983 = vunpack.c.h.b16 %v257
    %v984 = vunpack.c.l.b16 %v258
    %v985 = vunpack.c.h.b16 %v258
    %v986 = vunpack.c.l.b16 %v259
    %v987 = vunpack.c.h.b16 %v259
    %v988 = vunpack.c.l.b16 %v260
    %v989 = vunpack.c.h.b16 %v260
    %v990 = vunpack.c.l.b16 %v261
    %v991 = vunpack.c.h.b16 %v261
    %v992 = vunpack.c.l.b16 %v262
    %v993 = vunpack.c.h.b16 %v262
    %v994 = vunpack.c.l.b16 %v263
    %v995 = vunpack.c.h.b16 %v263
    %v996 = vunpack.c.l.b16 %v264
    %v997 = vunpack.c.h.b16 %v264
    %v998 = vunpack.c.l.b16 %v265
    %v999 = vunpack.c.h.b16 %v265
    %v1000 = vunpack.c.l.b16 %v266
    %v1001 = vunpack.c.h.b16 %v266
    %v1002 = vunpack.c.l.b16 %v267
    %v1003 = vunpack.c.h.b16 %v267
    %v1004 = vunpack.c.l.b16 %v268
    %v1005 = vunpack.c.h.b16 %v268
    %v1006 = vunpack.c.l.b16 %v269
    %v1007 = vunpack.c.h.b16 %v269
    %v1008 = vunpack.c.l.b16 %v270
    %v1009 = vunpack.c.h.b16 %v270
    %v1010 = vunpack.c.l.b16 %v271
    %v1011 = vunpack.c.h.b16 %v271
    %v1012 = vunpack.c.l.b16 %v272
    %v1013 = vunpack.c.h.b16 %v272
    %v1014 = vunpack.c.l.b16 %v273
    %v1015 = vunpack.c.h.b16 %v273
    %v1016 = vunpack.c.l.b16 %v274
    %v1017 = vunpack.c.h.b16 %v274
    %v1018 = vunpack.c.l.b16 %v275
    %v1019 = vunpack.c.h.b16 %v275
    %v1020 = vunpack.c.l.b16 %v276
    %v1021 = vunpack.c.h.b16 %v276
    %v1022 = vunpack.c.l.b16 %v277
    %v1023 = vunpack.c.h.b16 %v277
    %v1024 = vunpack.c.l.b16 %v278
    %v1025 = vunpack.c.h.b16 %v278
    %v1026 = vunpack.c.l.b16 %v279
    %v1027 = vunpack.c.h.b16 %v279
    %v1028 = vunpack.c.l.b16 %v280
    %v1029 = vunpack.c.h.b16 %v280
    %v1030 = vunpack.c.l.b16 %v281
    %v1031 = vunpack.c.h.b16 %v281
    %v1032 = vunpack.c.l.b16 %v282
    %v1033 = vunpack.c.h.b16 %v282
    %v1034 = vunpack.c.l.b16 %v283
    %v1035 = vunpack.c.h.b16 %v283
    %v1036 = vunpack.c.l.b16 %v284
    %v1037 = vunpack.c.h.b16 %v284
    %v1038 = vunpack.c.l.b16 %v285
    %v1039 = vunpack.c.h.b16 %v285
    %v1040 = vunpack.c.l.b16 %v286
    %v1041 = vunpack.c.h.b16 %v286
    %v1042 = vunpack.c.l.b16 %v287
    %v1043 = vunpack.c.h.b16 %v287
    %v1044 = vunpack.c.l.b16 %v288
    %v1045 = vunpack.c.h.b16 %v288
    %v1046 = vunpack.c.l.b16 %v289
    %v1047 = vunpack.c.h.b16 %v289
    %v1048 = vunpack.c.l.b16 %v290
    %v1049 = vunpack.c.h.b16 %v290
    %v1050 = vunpack.c.l.b16 %v291
    %v1051 = vunpack.c.h.b16 %v291
    %v1052 = vunpack.c.l.b16 %v292
    %v1053 = vunpack.c.h.b16 %v292
    %v1054 = vunpack.c.l.b16 %v293
    %v1055 = vunpack.c.h.b16 %v293
    %v1056 = vunpack.c.l.b16 %v294
    %v1057 = vunpack.c.h.b16 %v294
    %v1058 = vunpack.c.l.b16 %v295
    %v1059 = vunpack.c.h.b16 %v295
    %v1060 = vunpack.c.l.b16 %v296
    %v1061 = vunpack.c.h.b16 %v296
    %v1062 = vunpack.c.l.b16 %v297
    %v1063 = vunpack.c.h.b16 %v297
    %v1064 = vunpack.c.l.b16 %v298
    %v1065 = vunpack.c.h.b16 %v298
    %v1066 = vunpack.c.l.b16 %v299
    %v1067 = vunpack.c.h.b16 %v299
    %v1068 = vunpack.c.l.b16 %v300
    %v1069 = vunpack.c.h.b16 %v300
    %v1070 = vunpack.c.l.b16 %v301
    %v1071 = vunpack.c.h.b16 %v301
    %v1072 = vunpack.c.l.b16 %v302
    %v1073 = vunpack.c.h.b16 %v302
    %v1074 = vunpack.c.l.b16 %v303
    %v1075 = vunpack.c.h.b16 %v303
    %v1076 = vunpack.c.l.b16 %v304
    %v1077 = vunpack.c.h.b16 %v304
    %v1078 = vunpack.c.l.b16 %v305
    %v1079 = vunpack.c.h.b16 %v305
    %v1080 = vunpack.c.l.b16 %v306
    %v1081 = vunpack.c.h.b16 %v306
    %v1082 = vunpack.c.l.b16 %v307
    %v1083 = vunpack.c.h.b16 %v307
    %v1084 = vunpack.c.l.b16 %v308
    %v1085 = vunpack.c.h.b16 %v308
    %v1086 = vunpack.c.l.b16 %v309
    %v1087 = vunpack.c.h.b16 %v309
    %v1088 = vunpack.c.l.b16 %v310
    %v1089 = vunpack.c.h.b16 %v310
    %v1090 = vunpack.c.l.b16 %v311
    %v1091 = vunpack.c.h.b16 %v311
    %v1092 = vunpack.c.l.b16 %v312
    %v1093 = vunpack.c.h.b16 %v312
    %v1094 = vunpack.c.l.b16 %v313
    %v1095 = vunpack.c.h.b16 %v313
    %v1096 = vunpack.c.l.b16 %v314
    %v1097 = vunpack.c.h.b16 %v314
    %v1098 = vunpack.c.l.b16 %v315
    %v1099 = vunpack.c.h.b16 %v315
    %v1100 = vunpack.c.l.b16 %v316
    %v1101 = vunpack.c.h.b16 %v316
    %v1102 = vunpack.c.l.b16 %v317
    %v1103 = vunpack.c.h.b16 %v317
    %v1104 = vunpack.c.l.b16 %v318
    %v1105 = vunpack.c.h.b16 %v318
    %v1106 = vunpack.c.l.b16 %v319
    %v1107 = vunpack.c.h.b16 %v319
    %v1108 = vunpack.c.l.b16 %v320
    %v1109 = vunpack.c.h.b16 %v320
    %v1110 = vunpack.c.l.b16 %v321
    %v1111 = vunpack.c.h.b16 %v321
    %v1112 = vunpack.c.l.b16 %v322
    %v1113 = vunpack.c.h.b16 %v322
    %v1114 = vunpack.c.l.b16 %v323
    %v1115 = vunpack.c.h.b16 %v323
    %v1116 = vunpack.c.l.b16 %v324
    %v1117 = vunpack.c.h.b16 %v324
    %v1118 = vunpack.c.l.b16 %v325
    %v1119 = vunpack.c.h.b16 %v325
    %v1120 = vunpack.c.l.b16 %v326
    %v1121 = vunpack.c.h.b16 %v326
    %v1122 = vunpack.c.l.b16 %v327
    %v1123 = vunpack.c.h.b16 %v327
    %v1124 = vunpack.c.l.b16 %v328
    %v1125 = vunpack.c.h.b16 %v328
    %v1126 = vunpack.c.l.b16 %v329
    %v1127 = vunpack.c.h.b16 %v329
    %v1128 = vunpack.c.l.b16 %v330
    %v1129 = vunpack.c.h.b16 %v330
    %v1130 = vunpack.c.l.b16 %v331
    %v1131 = vunpack.c.h.b16 %v331
    %v1132 = vunpack.c.l.b16 %v332
    %v1133 = vunpack.c.h.b16 %v332
    %v1134 = vunpack.c.l.b16 %v333
    %v1135 = vunpack.c.h.b16 %v333
    %v1136 = vunpack.c.l.b16 %v334
    %v1137 = vunpack.c.h.b16 %v334
    %v1138 = vunpack.c.l.b16 %v335
    %v1139 = vunpack.c.h.b16 %v335
    %v1140 = vunpack.c.l.b16 %v336
    %v1141 = vunpack.c.h.b16 %v336
    %v1142 = vunpack.c.l.b16 %v337
    %v1143 = vunpack.c.h.b16 %v337
    %v1144 = vunpack.c.l.b16 %v338
    %v1145 = vunpack.c.h.b16 %v338
    %v1146 = vunpack.c.l.b16 %v339
    %v1147 = vunpack.c.h.b16 %v339
    %v1148 = vunpack.c.l.b16 %v340
    %v1149 = vunpack.c.h.b16 %v340
    %v1150 = vunpack.c.l.b16 %v341
    %v1151 = vunpack.c.h.b16 %v341
    %v1152 = vunpack.c.l.b16 %v342
    %v1153 = vunpack.c.h.b16 %v342
    %v1154 = vunpack.c.l.b16 %v343
    %v1155 = vunpack.c.h.b16 %v343
    %v1156 = vunpack.c.l.b16 %v344
    %v1157 = vunpack.c.h.b16 %v344
    %v1158 = vunpack.c.l.b16 %v345
    %v1159 = vunpack.c.h.b16 %v345
    %v1160 = vunpack.c.l.b16 %v346
    %v1161 = vunpack.c.h.b16 %v346
    %v1162 = vunpack.c.l.b16 %v347
    %v1163 = vunpack.c.h.b16 %v347
    %v1164 = vunpack.c.l.b16 %v348
    %v1165 = vunpack.c.h.b16 %v348
    %v1166 = vunpack.c.l.b16 %v349
    %v1167 = vunpack.c.h.b16 %v349
    %v1168 = vunpack.c.l.b16 %v350
    %v1169 = vunpack.c.h.b16 %v350
    %v1170 = vunpack.c.l.b16 %v351
    %v1171 = vunpack.c.h.b16 %v351
    %v1172 = vunpack.c.l.b16 %v352
    %v1173 = vunpack.c.h.b16 %v352
    %v1174 = vunpack.c.l.b16 %v353
    %v1175 = vunpack.c.h.b16 %v353
    %v1176 = vunpack.c.l.b16 %v354
    %v1177 = vunpack.c.h.b16 %v354
    %v1178 = vunpack.c.l.b16 %v355
    %v1179 = vunpack.c.h.b16 %v355
    %v1180 = vunpack.c.l.b16 %v356
    %v1181 = vunpack.c.h.b16 %v356
    %v1182 = vunpack.c.l.b16 %v357
    %v1183 = vunpack.c.h.b16 %v357
    %v1184 = vunpack.c.l.b16 %v358
    %v1185 = vunpack.c.h.b16 %v358
    %v1186 = vunpack.c.l.b16 %v359
    %v1187 = vunpack.c.h.b16 %v359
    %v1188 = vunpack.c.l.b16 %v360
    %v1189 = vunpack.c.h.b16 %v360
    %v1190 = vunpack.c.l.b16 %v361
    %v1191 = vunpack.c.h.b16 %v361
    %v1192 = vunpack.c.l.b16 %v362
    %v1193 = vunpack.c.h.b16 %v362
    %v1194 = vunpack.c.l.b16 %v363
    %v1195 = vunpack.c.h.b16 %v363
    %v1196 = vunpack.c.l.b16 %v364
    %v1197 = vunpack.c.h.b16 %v364
    %v1198 = vunpack.c.l.b16 %v365
    %v1199 = vunpack.c.h.b16 %v365
    %v1200 = vunpack.c.l.b16 %v366
    %v1201 = vunpack.c.h.b16 %v366
    %v1202 = vunpack.c.l.b16 %v367
    %v1203 = vunpack.c.h.b16 %v367
    %v1204 = vunpack.c.l.b16 %v368
    %v1205 = vunpack.c.h.b16 %v368
    %v1206 = vunpack.c.l.b16 %v369
    %v1207 = vunpack.c.h.b16 %v369
    %v1208 = vunpack.c.l.b16 %v370
    %v1209 = vunpack.c.h.b16 %v370
    %v1210 = vunpack.c.l.b16 %v371
    %v1211 = vunpack.c.h.b16 %v371
    %v1212 = vunpack.c.l.b16 %v372
    %v1213 = vunpack.c.h.b16 %v372
    %v1214 = vunpack.c.l.b16 %v373
    %v1215 = vunpack.c.h.b16 %v373
    %v1216 = vunpack.c.l.b16 %v374
    %v1217 = vunpack.c.h.b16 %v374
    %v1218 = vunpack.c.l.b16 %v375
    %v1219 = vunpack.c.h.b16 %v375
    %v1220 = vunpack.c.l.b16 %v376
    %v1221 = vunpack.c.h.b16 %v376
    %v1222 = vunpack.c.l.b16 %v377
    %v1223 = vunpack.c.h.b16 %v377
    %v1224 = vunpack.c.l.b16 %v378
    %v1225 = vunpack.c.h.b16 %v378
    %v1226 = vunpack.c.l.b16 %v379
    %v1227 = vunpack.c.h.b16 %v379
    %v1228 = vunpack.c.l.b16 %v380
    %v1229 = vunpack.c.h.b16 %v380
    %v1230 = vunpack.c.l.b16 %v381
    %v1231 = vunpack.c.h.b16 %v381
    %v1232 = vunpack.c.l.b16 %v382
    %v1233 = vunpack.c.h.b16 %v382
    %v1234 = vunpack.c.l.b16 %v383
    %v1235 = vunpack.c.h.b16 %v383
    %v1236 = vunpack.c.l.b16 %v384
    %v1237 = vunpack.c.h.b16 %v384
    %v1238 = vunpack.c.l.b16 %v385
    %v1239 = vunpack.c.h.b16 %v385
    %v1240 = vunpack.c.l.b16 %v386
    %v1241 = vunpack.c.h.b16 %v386
    %v1242 = vunpack.c.l.b16 %v387
    %v1243 = vunpack.c.h.b16 %v387
    %v1244 = vunpack.c.l.b16 %v388
    %v1245 = vunpack.c.h.b16 %v388
    %v1246 = vunpack.c.l.b16 %v389
    %v1247 = vunpack.c.h.b16 %v389
    %v1248 = vunpack.c.l.b16 %v390
    %v1249 = vunpack.c.h.b16 %v390
    %v1250 = vunpack.c.l.b16 %v391
    %v1251 = vunpack.c.h.b16 %v391
    %v1252 = vunpack.c.l.b16 %v392
    %v1253 = vunpack.c.h.b16 %v392
    %v1254 = vunpack.c.l.b16 %v393
    %v1255 = vunpack.c.h.b16 %v393
    %v1256 = vunpack.c.l.b16 %v394
    %v1257 = vunpack.c.h.b16 %v394
    %v1258 = vunpack.c.l.b16 %v395
    %v1259 = vunpack.c.h.b16 %v395
    %v1260 = vunpack.c.l.b16 %v396
    %v1261 = vunpack.c.h.b16 %v396
    %v1262 = vunpack.c.l.b16 %v397
    %v1263 = vunpack.c.h.b16 %v397
    %v1264 = vunpack.c.l.b16 %v398
    %v1265 = vunpack.c.h.b16 %v398
    %v1266 = vunpack.c.l.b16 %v399
    %v1267 = vunpack.c.h.b16 %v399
    %v1268 = vunpack.c.l.b16 %v400
    %v1269 = vunpack.c.h.b16 %v400
    %v1270 = vunpack.c.l.b16 %v401
    %v1271 = vunpack.c.h.b16 %v401
    %v1272 = vunpack.c.l.b16 %v402
    %v1273 = vunpack.c.h.b16 %v402
    %v1274 = vunpack.c.l.b16 %v403
    %v1275 = vunpack.c.h.b16 %v403
    %v1276 = vunpack.c.l.b16 %v404
    %v1277 = vunpack.c.h.b16 %v404
    %v1278 = vunpack.c.l.b16 %v405
    %v1279 = vunpack.c.h.b16 %v405
    %v1280 = vunpack.c.l.b16 %v406
    %v1281 = vunpack.c.h.b16 %v406
    %v1282 = vunpack.c.l.b16 %v407
    %v1283 = vunpack.c.h.b16 %v407
    %v1284 = vunpack.c.l.b16 %v408
    %v1285 = vunpack.c.h.b16 %v408
    %v1286 = vunpack.c.l.b16 %v409
    %v1287 = vunpack.c.h.b16 %v409
    %v1288 = vunpack.c.l.b16 %v410
    %v1289 = vunpack.c.h.b16 %v410
    %v1290 = vunpack.c.l.b16 %v411
    %v1291 = vunpack.c.h.b16 %v411
    %v1292 = vunpack.c.l.b16 %v412
    %v1293 = vunpack.c.h.b16 %v412
    %v1294 = vunpack.c.l.b16 %v413
    %v1295 = vunpack.c.h.b16 %v413
    %v1296 = vunpack.c.l.b16 %v414
    %v1297 = vunpack.c.h.b16 %v414
    %v1298 = vunpack.c.l.b16 %v415
    %v1299 = vunpack.c.h.b16 %v415
    %v1300 = vunpack.c.l.b16 %v416
    %v1301 = vunpack.c.h.b16 %v416
    %v1302 = vunpack.c.l.b16 %v417
    %v1303 = vunpack.c.h.b16 %v417
    %v1304 = vpack.c.b16 %v732, %v728
    %v1305 = vpack.c.b16 %v733, %v729
    %v1306 = vpack.c.b16 %v734, %v730
    %v1307 = vpack.c.b16 %v735, %v731
    %v1308 = vpack.c.b16 %v740, %v736
    %v1309 = vpack.c.b16 %v741, %v737
    %v1310 = vpack.c.b16 %v742, %v738
    %v1311 = vpack.c.b16 %v743, %v739
    %v1312 = vpack.c.b16 %v748, %v744
    %v1313 = vpack.c.b16 %v749, %v745
    %v1314 = vpack.c.b16 %v750, %v746
    %v1315 = vpack.c.b16 %v751, %v747
    %v1316 = vpack.c.b16 %v756, %v752
    %v1317 = vpack.c.b16 %v757, %v753
    %v1318 = vpack.c.b16 %v758, %v754
    %v1319 = vpack.c.b16 %v759, %v755
    %v1320 = vpack.c.b16 %v764, %v760
    %v1321 = vpack.c.b16 %v765, %v761
    %v1322 = vpack.c.b16 %v766, %v762
    %v1323 = vpack.c.b16 %v767, %v763
    %v1324 = vpack.c.b16 %v772, %v768
    %v1325 = vpack.c.b16 %v773, %v769
    %v1326 = vpack.c.b16 %v774, %v770
    %v1327 = vpack.c.b16 %v775, %v771
    %v1328 = vpack.c.b16 %v780, %v776
    %v1329 = vpack.c.b16 %v781, %v777
    %v1330 = vpack.c.b16 %v782, %v778
    %v1331 = vpack.c.b16 %v783, %v779
    %v1332 = vpack.c.b16 %v788, %v784
    %v1333 = vpack.c.b16 %v789, %v785
    %v1334 = vpack.c.b16 %v790, %v786
    %v1335 = vpack.c.b16 %v791, %v787
    %v1336 = vpack.c.b16 %v796, %v792
    %v1337 = vpack.c.b16 %v797, %v793
    %v1338 = vpack.c.b16 %v798, %v794
    %v1339 = vpack.c.b16 %v799, %v795
    %v1340 = vpack.c.b16 %v804, %v800
    %v1341 = vpack.c.b16 %v805, %v801
    %v1342 = vpack.c.b16 %v806, %v802
    %v1343 = vpack.c.b16 %v807, %v803
    %v1344 = vpack.c.b16 %v812, %v808
    %v1345 = vpack.c.b16 %v813, %v809
    %v1346 = vpack.c.b16 %v814, %v810
    %v1347 = vpack.c.b16 %v815, %v811
    %v1348 = vpack.c.b16 %v820, %v816
    %v1349 = vpack.c.b16 %v821, %v817
    %v1350 = vpack.c.b16 %v822, %v818
    %v1351 = vpack.c.b16 %v823, %v819
    %v1352 = vpack.c.b16 %v828, %v824
    %v1353 = vpack.c.b16 %v829, %v825
    %v1354 = vpack.c.b16 %v830, %v826
    %v1355 = vpack.c.b16 %v831, %v827
    %v1356 = vpack.c.b16 %v836, %v832
    %v1357 = vpack.c.b16 %v837, %v833
    %v1358 = vpack.c.b16 %v838, %v834
    %v1359 = vpack.c.b16 %v839, %v835
    %v1360 = vpack.c.b16 %v844, %v840
    %v1361 = vpack.c.b16 %v845, %v841
    %v1362 = vpack.c.b16 %v846, %v842
    %v1363 = vpack.c.b16 %v847, %v843
    %v1364 = vpack.c.b16 %v852, %v848
    %v1365 = vpack.c.b16 %v853, %v849
    %v1366 = vpack.c.b16 %v854, %v850
    %v1367 = vpack.c.b16 %v855, %v851
    %v1368 = vpack.c.b16 %v860, %v856
    %v1369 = vpack.c.b16 %v861, %v857
    %v1370 = vpack.c.b16 %v862, %v858
    %v1371 = vpack.c.b16 %v863, %v859
    %v1372 = vpack.c.b16 %v868, %v864
    %v1373 = vpack.c.b16 %v869, %v865
    %v1374 = vpack.c.b16 %v870, %v866
    %v1375 = vpack.c.b16 %v871, %v867
    %v1376 = vpack.c.b16 %v876, %v872
    %v1377 = vpack.c.b16 %v877, %v873
    %v1378 = vpack.c.b16 %v878, %v874
    %v1379 = vpack.c.b16 %v879, %v875
    %v1380 = vpack.c.b16 %v884, %v880
    %v1381 = vpack.c.b16 %v885, %v881
    %v1382 = vpack.c.b16 %v886, %v882
    %v1383 = vpack.c.b16 %v887, %v883
    %v1384 = vpack.c.b16 %v892, %v888
    %v1385 = vpack.c.b16 %v893, %v889
    %v1386 = vpack.c.b16 %v894, %v890
    %v1387 = vpack.c.b16 %v895, %v891
    %v1388 = vpack.c.b16 %v900, %v896
    %v1389 = vpack.c.b16 %v901, %v897
    %v1390 = vpack.c.b16 %v902, %v898
    %v1391 = vpack.c.b16 %v903, %v899
    %v1392 = vpack.c.b16 %v908, %v904
    %v1393 = vpack.c.b16 %v909, %v905
    %v1394 = vpack.c.b16 %v910, %v906
    %v1395 = vpack.c.b16 %v911, %v907
    %v1396 = vpack.c.b16 %v916, %v912
    %v1397 = vpack.c.b16 %v917, %v913
    %v1398 = vpack.c.b16 %v918, %v914
    %v1399 = vpack.c.b16 %v919, %v915
    %v1400 = vpack.c.b16 %v924, %v920
    %v1401 = vpack.c.b16 %v925, %v921
    %v1402 = vpack.c.b16 %v926, %v922
    %v1403 = vpack.c.b16 %v927, %v923
    %v1404 = vpack.c.b16 %v932, %v928
    %v1405 = vpack.c.b16 %v933, %v929
    %v1406 = vpack.c.b16 %v934, %v930
    %v1407 = vpack.c.b16 %v935, %v931
    %v1408 = vpack.c.b16 %v940, %v936
    %v1409 = vpack.c.b16 %v941, %v937
    %v1410 = vpack.c.b16 %v942, %v938
    %v1411 = vpack.c.b16 %v943, %v939
    %v1412 = vpack.c.b16 %v948, %v944
    %v1413 = vpack.c.b16 %v949, %v945
    %v1414 = vpack.c.b16 %v950, %v946
    %v1415 = vpack.c.b16 %v951, %v947
    %v1416 = vpack.c.b16 %v956, %v952
    %v1417 = vpack.c.b16 %v957, %v953
    %v1418 = vpack.c.b16 %v958, %v954
    %v1419 = vpack.c.b16 %v959, %v955
    %v1420 = vpack.c.b16 %v964, %v960
    %v1421 = vpack.c.b16 %v965, %v961
    %v1422 = vpack.c.b16 %v966, %v962
    %v1423 = vpack.c.b16 %v967, %v963
    %v1424 = vpack.c.b16 %v972, %v968
    %v1425 = vpack.c.b16 %v973, %v969
    %v1426 = vpack.c.b16 %v974, %v970
    %v1427 = vpack.c.b16 %v975, %v971
    %v1428 = vpack.c.b16 %v980, %v976
    %v1429 = vpack.c.b16 %v981, %v977
    %v1430 = vpack.c.b16 %v982, %v978
    %v1431 = vpack.c.b16 %v983, %v979
    %v1432 = vpack.c.b16 %v988, %v984
    %v1433 = vpack.c.b16 %v989, %v985
    %v1434 = vpack.c.b16 %v990, %v986
    %v1435 = vpack.c.b16 %v991, %v987
    %v1436 = vpack.c.b16 %v996, %v992
    %v1437 = vpack.c.b16 %v997, %v993
    %v1438 = vpack.c.b16 %v998, %v994
    %v1439 = vpack.c.b16 %v999, %v995
    %v1440 = vpack.c.b16 %v1004, %v1000
    %v1441 = vpack.c.b16 %v1005, %v1001
    %v1442 = vpack.c.b16 %v1006, %v1002
    %v1443 = vpack.c.b16 %v1007, %v1003
    %v1444 = vpack.c.b16 %v1012, %v1008
    %v1445 = vpack.c.b16 %v1013, %v1009
    %v1446 = vpack.c.b16 %v1014, %v1010
    %v1447 = vpack.c.b16 %v1015, %v1011
    %v1448 = vpack.c.b16 %v1020, %v1016
    %v1449 = vpack.c.b16 %v1021, %v1017
    %v1450 = vpack.c.b16 %v1022, %v1018
    %v1451 = vpack.c.b16 %v1023, %v1019
    %v1452 = vpack.c.b16 %v1028, %v1024
    %v1453 = vpack.c.b16 %v1029, %v1025
    %v1454 = vpack.c.b16 %v1030, %v1026
    %v1455 = vpack.c.b16 %v1031, %v1027
    %v1456 = vpack.c.b16 %v1036, %v1032
    %v1457 = vpack.c.b16 %v1037, %v1033
    %v1458 = vpack.c.b16 %v1038, %v1034
    %v1459 = vpack.c.b16 %v1039, %v1035
    %v1460 = vpack.c.b16 %v1044, %v1040
    %v1461 = vpack.c.b16 %v1045, %v1041
    %v1462 = vpack.c.b16 %v1046, %v1042
    %v1463 = vpack.c.b16 %v1047, %v1043
    %v1464 = vpack.c.b16 %v1052, %v1048
    %v1465 = vpack.c.b16 %v1053, %v1049
    %v1466 = vpack.c.b16 %v1054, %v1050
    %v1467 = vpack.c.b16 %v1055, %v1051
    %v1468 = vpack.c.b16 %v1060, %v1056
    %v1469 = vpack.c.b16 %v1061, %v1057
    %v1470 = vpack.c.b16 %v1062, %v1058
    %v1471 = vpack.c.b16 %v1063, %v1059
    %v1472 = vpack.c.b16 %v1068, %v1064
    %v1473 = vpack.c.b16 %v1069, %v1065
    %v1474 = vpack.c.b16 %v1070, %v1066
    %v1475 = vpack.c.b16 %v1071, %v1067
    %v1476 = vpack.c.b16 %v1076, %v1072
    %v1477 = vpack.c.b16 %v1077, %v1073
    %v1478 = vpack.c.b16 %v1078, %v1074
    %v1479 = vpack.c.b16 %v1079, %v1075
    %v1480 = vpack.c.b16 %v1084, %v1080
    %v1481 = vpack.c.b16 %v1085, %v1081
    %v1482 = vpack.c.b16 %v1086, %v1082
    %v1483 = vpack.c.b16 %v1087, %v1083
    %v1484 = vpack.c.b16 %v1092, %v1088
    %v1485 = vpack.c.b16 %v1093, %v1089
    %v1486 = vpack.c.b16 %v1094, %v1090
    %v1487 = vpack.c.b16 %v1095, %v1091
    %v1488 = vpack.c.b16 %v1100, %v1096
    %v1489 = vpack.c.b16 %v1101, %v1097
    %v1490 = vpack.c.b16 %v1102, %v1098
    %v1491 = vpack.c.b16 %v1103, %v1099
    %v1492 = vpack.c.b16 %v1108, %v1104
    %v1493 = vpack.c.b16 %v1109, %v1105
    %v1494 = vpack.c.b16 %v1110, %v1106
    %v1495 = vpack.c.b16 %v1111, %v1107
    %v1496 = vpack.c.b16 %v1116, %v1112
    %v1497 = vpack.c.b16 %v1117, %v1113
    %v1498 = vpack.c.b16 %v1118, %v1114
    %v1499 = vpack.c.b16 %v1119, %v1115
    %v1500 = vpack.c.b16 %v1124, %v1120
    %v1501 = vpack.c.b16 %v1125, %v1121
    %v1502 = vpack.c.b16 %v1126, %v1122
    %v1503 = vpack.c.b16 %v1127, %v1123
    %v1504 = vpack.c.b16 %v1132, %v1128
    %v1505 = vpack.c.b16 %v1133, %v1129
    %v1506 = vpack.c.b16 %v1134, %v1130
    %v1507 = vpack.c.b16 %v1135, %v1131
    %v1508 = vpack.c.b16 %v1140, %v1136
    %v1509 = vpack.c.b16 %v1141, %v1137
    %v1510 = vpack.c.b16 %v1142, %v1138
    %v1511 = vpack.c.b16 %v1143, %v1139
    %v1512 = vpack.c.b16 %v1148, %v1144
    %v1513 = vpack.c.b16 %v1149, %v1145
    %v1514 = vpack.c.b16 %v1150, %v1146
    %v1515 = vpack.c.b16 %v1151, %v1147
    %v1516 = vpack.c.b16 %v1156, %v1152
    %v1517 = vpack.c.b16 %v1157, %v1153
    %v1518 = vpack.c.b16 %v1158, %v1154
    %v1519 = vpack.c.b16 %v1159, %v1155
    %v1520 = vpack.c.b16 %v1164, %v1160
    %v1521 = vpack.c.b16 %v1165, %v1161
    %v1522 = vpack.c.b16 %v1166, %v1162
    %v1523 = vpack.c.b16 %v1167, %v1163
    %v1524 = vpack.c.b16 %v1172, %v1168
    %v1525 = vpack.c.b16 %v1173, %v1169
    %v1526 = vpack.c.b16 %v1174, %v1170
    %v1527 = vpack.c.b16 %v1175, %v1171
    %v1528 = vpack.c.b16 %v1180, %v1176
    %v1529 = vpack.c.b16 %v1181, %v1177
    %v1530 = vpack.c.b16 %v1182, %v1178
    %v1531 = vpack.c.b16 %v1183, %v1179
    %v1532 = vpack.c.b16 %v1188, %v1184
    %v1533 = vpack.c.b16 %v1189, %v1185
    %v1534 = vpack.c.b16 %v1190, %v1186
    %v1535 = vpack.c.b16 %v1191, %v1187
    %v1536 = vpack.c.b16 %v1196, %v1192
    %v1537 = vpack.c.b16 %v1197, %v1193
    %v1538 = vpack.c.b16 %v1198, %v1194
    %v1539 = vpack.c.b16 %v1199, %v1195
    %v1540 = vpack.c.b16 %v1204, %v1200
    %v1541 = vpack.c.b16 %v1205, %v1201
    %v1542 = vpack.c.b16 %v1206, %v1202
    %v1543 = vpack.c.b16 %v1207, %v1203
    %v1544 = vpack.c.b16 %v1212, %v1208
    %v1545 = vpack.c.b16 %v1213, %v1209
    %v1546 = vpack.c.b16 %v1214, %v1210
    %v1547 = vpack.c.b16 %v1215, %v1211
    %v1548 = vpack.c.b16 %v1220, %v1216
    %v1549 = vpack.c.b16 %v1221, %v1217
    %v1550 = vpack.c.b16 %v1222, %v1218
    %v1551 = vpack.c.b16 %v1223, %v1219
    %v1552 = vpack.c.b16 %v1228, %v1224
    %v1553 = vpack.c.b16 %v1229, %v1225
    %v1554 = vpack.c.b16 %v1230, %v1226
    %v1555 = vpack.c.b16 %v1231, %v1227
    %v1556 = vpack.c.b16 %v1236, %v1232
    %v1557 = vpack.c.b16 %v1237, %v1233
    %v1558 = vpack.c.b16 %v1238, %v1234
    %v1559 = vpack.c.b16 %v1239, %v1235
    %v1560 = vpack.c.b16 %v1244, %v1240
    %v1561 = vpack.c.b16 %v1245, %v1241
    %v1562 = vpack.c.b16 %v1246, %v1242
    %v1563 = vpack.c.b16 %v1247, %v1243
    %v1564 = vpack.c.b16 %v1252, %v1248
    %v1565 = vpack.c.b16 %v1253, %v1249
    %v1566 = vpack.c.b16 %v1254, %v1250
    %v1567 = vpack.c.b16 %v1255, %v1251
    %v1568 = vpack.c.b16 %v1260, %v1256
    %v1569 = vpack.c.b16 %v1261, %v1257
    %v1570 = vpack.c.b16 %v1262, %v1258
    %v1571 = vpack.c.b16 %v1263, %v1259
    %v1572 = vpack.c.b16 %v1268, %v1264
    %v1573 = vpack.c.b16 %v1269, %v1265
    %v1574 = vpack.c.b16 %v1270, %v1266
    %v1575 = vpack.c.b16 %v1271, %v1267
    %v1576 = vpack.c.b16 %v1276, %v1272
    %v1577 = vpack.c.b16 %v1277, %v1273
    %v1578 = vpack.c.b16 %v1278, %v1274
    %v1579 = vpack.c.b16 %v1279, %v1275
    %v1580 = vpack.c.b16 %v1284, %v1280
    %v1581 = vpack.c.b16 %v1285, %v1281
    %v1582 = vpack.c.b16 %v1286, %v1282
    %v1583 = vpack.c.b16 %v1287, %v1283
    %v1584 = vpack.c.b16 %v1292, %v1288
    %v1585 = vpack.c.b16 %v1293, %v1289
    %v1586 = vpack.c.b16 %v1294, %v1290
    %v1587 = vpack.c.b16 %v1295, %v1291
    %v1588 = vpack.c.b16 %v1300, %v1296
    %v1589 = vpack.c.b16 %v1301, %v1297
    %v1590 = vpack.c.b16 %v1302, %v1298
    %v1591 = vpack.c.b16 %v1303, %v1299
    %1880 = vmatprep.subr.bf16.mxu0 %v1333
    %1881 = vmatpush1.bf16.msra.mxu0 %v1332
    %1882 = vmatprep.subr.bf16.mxu0 %v1329
    %1883 = vmatpush1.bf16.msra.mxu0 %v1328
    %1884 = vmatprep.subr.bf16.mxu0 %v1325
    %1885 = vmatpush1.bf16.msra.mxu0 %v1324
    %1886 = vmatprep.subr.bf16.mxu0 %v1321
    %1887 = vmatpush1.bf16.msra.mxu0 %v1320
    %1888 = vmatprep.subr.bf16.mxu0 %v1317
    %1889 = vmatpush1.bf16.msra.mxu0 %v1316
    %1890 = vmatprep.subr.bf16.mxu0 %v1313
    %1891 = vmatpush1.bf16.msra.mxu0 %v1312
    %1892 = vmatprep.subr.bf16.mxu0 %v1309
    %1893 = vmatpush1.bf16.msra.mxu0 %v1308
    %1894 = vmatprep.subr.bf16.mxu0 %v1305
    %1895 = vmatpush1.bf16.msra.mxu0 %v1304
    %1896 = vmatprep.subr.bf16.mxu0 %v1365
    %1897 = vmatpush2.bf16.msra.mxu0 %v1364
    %1898 = vmatprep.subr.bf16.mxu0 %v1361
    %1899 = vmatpush2.bf16.msra.mxu0 %v1360
    %1900 = vmatprep.subr.bf16.mxu0 %v1357
    %1901 = vmatpush2.bf16.msra.mxu0 %v1356
    %1902 = vmatprep.subr.bf16.mxu0 %v1353
    %1903 = vmatpush2.bf16.msra.mxu0 %v1352
    %1904 = vmatprep.subr.bf16.mxu0 %v1349
    %1905 = vmatpush2.bf16.msra.mxu0 %v1348
    %1906 = vmatprep.subr.bf16.mxu0 %v1345
    %1907 = vmatpush2.bf16.msra.mxu0 %v1344
    %1908 = vmatprep.subr.bf16.mxu0 %v1341
    %1909 = vmatpush2.bf16.msra.mxu0 %v1340
    %1910 = vmatprep.subr.bf16.mxu0 %v1337
    %1911 = vmatpush2.bf16.msra.mxu0 %v1336
    %1912 = vmatprep.mubr.bf16.mxu0 %v122
    %1913 = vmatmul.mubr.bf16.gmra.mxu0 %v121
    %v1914 = vpop.f32.mrf.mxu0
    %v1915 = vadd.f32 %v423, %v1914
    %v1916 = vpop.f32.mrf.mxu0
    %v1917 = vadd.f32 %v427, %v1916
    %v1918 = vpop.f32.mrf.mxu0
    %v1919 = vadd.f32 %v423, %v1918
    %v1920 = vpop.f32.mrf.mxu0
    %v1921 = vadd.f32 %v427, %v1920
    %1922 = vdwg.mxu0
    %1923 = vmatprep.subr.bf16.mxu0 %v1397
    %1924 = vmatpush1.bf16.msra.mxu0 %v1396
    %1925 = vmatprep.subr.bf16.mxu0 %v1393
    %1926 = vmatpush1.bf16.msra.mxu0 %v1392
    %1927 = vmatprep.subr.bf16.mxu0 %v1389
    %1928 = vmatpush1.bf16.msra.mxu0 %v1388
    %1929 = vmatprep.subr.bf16.mxu0 %v1385
    %1930 = vmatpush1.bf16.msra.mxu0 %v1384
    %1931 = vmatprep.subr.bf16.mxu0 %v1381
    %1932 = vmatpush1.bf16.msra.mxu0 %v1380
    %1933 = vmatprep.subr.bf16.mxu0 %v1377
    %1934 = vmatpush1.bf16.msra.mxu0 %v1376
    %1935 = vmatprep.subr.bf16.mxu0 %v1373
    %1936 = vmatpush1.bf16.msra.mxu0 %v1372
    %1937 = vmatprep.subr.bf16.mxu0 %v1369
    %1938 = vmatpush1.bf16.msra.mxu0 %v1368
    %1939 = vmatprep.subr.bf16.mxu0 %v1429
    %1940 = vmatpush2.bf16.msra.mxu0 %v1428
    %1941 = vmatprep.subr.bf16.mxu0 %v1425
    %1942 = vmatpush2.bf16.msra.mxu0 %v1424
    %1943 = vmatprep.subr.bf16.mxu0 %v1421
    %1944 = vmatpush2.bf16.msra.mxu0 %v1420
    %1945 = vmatprep.subr.bf16.mxu0 %v1417
    %1946 = vmatpush2.bf16.msra.mxu0 %v1416
    %1947 = vmatprep.subr.bf16.mxu0 %v1413
    %1948 = vmatpush2.bf16.msra.mxu0 %v1412
    %1949 = vmatprep.subr.bf16.mxu0 %v1409
    %1950 = vmatpush2.bf16.msra.mxu0 %v1408
    %1951 = vmatprep.subr.bf16.mxu0 %v1405
    %1952 = vmatpush2.bf16.msra.mxu0 %v1404
    %1953 = vmatprep.subr.bf16.mxu0 %v1401
    %1954 = vmatpush2.bf16.msra.mxu0 %v1400
    %1955 = vmatprep.mubr.bf16.mxu0 %v124
    %1956 = vmatmul.mubr.bf16.gmra.mxu0 %v123
    %v1957 = vpop.f32.mrf.mxu0
    %v1958 = vadd.f32 %v1915, %v1957
    %v1959 = vpop.f32.mrf.mxu0
    %v1960 = vadd.f32 %v1917, %v1959
    %v1961 = vpop.f32.mrf.mxu0
    %v1962 = vadd.f32 %v1919, %v1961
    %v1963 = vpop.f32.mrf.mxu0
    %v1964 = vadd.f32 %v1921, %v1963
    %1965 = vdwg.mxu0
    %1966 = vmatprep.subr.bf16.mxu0 %v1461
    %1967 = vmatpush1.bf16.msra.mxu0 %v1460
    %1968 = vmatprep.subr.bf16.mxu0 %v1457
    %1969 = vmatpush1.bf16.msra.mxu0 %v1456
    %1970 = vmatprep.subr.bf16.mxu0 %v1453
    %1971 = vmatpush1.bf16.msra.mxu0 %v1452
    %1972 = vmatprep.subr.bf16.mxu0 %v1449
    %1973 = vmatpush1.bf16.msra.mxu0 %v1448
    %1974 = vmatprep.subr.bf16.mxu0 %v1445
    %1975 = vmatpush1.bf16.msra.mxu0 %v1444
    %1976 = vmatprep.subr.bf16.mxu0 %v1441
    %1977 = vmatpush1.bf16.msra.mxu0 %v1440
    %1978 = vmatprep.subr.bf16.mxu0 %v1437
    %1979 = vmatpush1.bf16.msra.mxu0 %v1436
    %1980 = vmatprep.subr.bf16.mxu0 %v1433
    %1981 = vmatpush1.bf16.msra.mxu0 %v1432
    %1982 = vmatprep.subr.bf16.mxu0 %v1493
    %1983 = vmatpush2.bf16.msra.mxu0 %v1492
    %1984 = vmatprep.subr.bf16.mxu0 %v1489
    %1985 = vmatpush2.bf16.msra.mxu0 %v1488
    %1986 = vmatprep.subr.bf16.mxu0 %v1485
    %1987 = vmatpush2.bf16.msra.mxu0 %v1484
    %1988 = vmatprep.subr.bf16.mxu0 %v1481
    %1989 = vmatpush2.bf16.msra.mxu0 %v1480
    %1990 = vmatprep.subr.bf16.mxu0 %v1477
    %1991 = vmatpush2.bf16.msra.mxu0 %v1476
    %1992 = vmatprep.subr.bf16.mxu0 %v1473
    %1993 = vmatpush2.bf16.msra.mxu0 %v1472
    %1994 = vmatprep.subr.bf16.mxu0 %v1469
    %1995 = vmatpush2.bf16.msra.mxu0 %v1468
    %1996 = vmatprep.subr.bf16.mxu0 %v1465
    %1997 = vmatpush2.bf16.msra.mxu0 %v1464
    %1998 = vmatprep.mubr.bf16.mxu0 %v126
    %1999 = vmatmul.mubr.bf16.gmra.mxu0 %v125
    %v2000 = vpop.f32.mrf.mxu0
    %v2001 = vadd.f32 %v1958, %v2000
    %v2002 = vpop.f32.mrf.mxu0
    %v2003 = vadd.f32 %v1960, %v2002
    %v2004 = vpop.f32.mrf.mxu0
    %v2005 = vadd.f32 %v1962, %v2004
    %v2006 = vpop.f32.mrf.mxu0
    %v2007 = vadd.f32 %v1964, %v2006
    %2008 = vdwg.mxu0
    %2009 = vmatprep.subr.bf16.mxu0 %v1525
    %2010 = vmatpush1.bf16.msra.mxu0 %v1524
    %2011 = vmatprep.subr.bf16.mxu0 %v1521
    %2012 = vmatpush1.bf16.msra.mxu0 %v1520
    %2013 = vmatprep.subr.bf16.mxu0 %v1517
    %2014 = vmatpush1.bf16.msra.mxu0 %v1516
    %2015 = vmatprep.subr.bf16.mxu0 %v1513
    %2016 = vmatpush1.bf16.msra.mxu0 %v1512
    %2017 = vmatprep.subr.bf16.mxu0 %v1509
    %2018 = vmatpush1.bf16.msra.mxu0 %v1508
    %2019 = vmatprep.subr.bf16.mxu0 %v1505
    %2020 = vmatpush1.bf16.msra.mxu0 %v1504
    %2021 = vmatprep.subr.bf16.mxu0 %v1501
    %2022 = vmatpush1.bf16.msra.mxu0 %v1500
    %2023 = vmatprep.subr.bf16.mxu0 %v1497
    %2024 = vmatpush1.bf16.msra.mxu0 %v1496
    %2025 = vmatprep.subr.bf16.mxu0 %v1557
    %2026 = vmatpush2.bf16.msra.mxu0 %v1556
    %2027 = vmatprep.subr.bf16.mxu0 %v1553
    %2028 = vmatpush2.bf16.msra.mxu0 %v1552
    %2029 = vmatprep.subr.bf16.mxu0 %v1549
    %2030 = vmatpush2.bf16.msra.mxu0 %v1548
    %2031 = vmatprep.subr.bf16.mxu0 %v1545
    %2032 = vmatpush2.bf16.msra.mxu0 %v1544
    %2033 = vmatprep.subr.bf16.mxu0 %v1541
    %2034 = vmatpush2.bf16.msra.mxu0 %v1540
    %2035 = vmatprep.subr.bf16.mxu0 %v1537
    %2036 = vmatpush2.bf16.msra.mxu0 %v1536
    %2037 = vmatprep.subr.bf16.mxu0 %v1533
    %2038 = vmatpush2.bf16.msra.mxu0 %v1532
    %2039 = vmatprep.subr.bf16.mxu0 %v1529
    %2040 = vmatpush2.bf16.msra.mxu0 %v1528
    %2041 = vmatprep.mubr.bf16.mxu0 %v128
    %2042 = vmatmul.mubr.bf16.gmra.mxu0 %v127
    %v2043 = vpop.f32.mrf.mxu0
    %v2044 = vadd.f32 %v2001, %v2043
    %v2045 = vpop.f32.mrf.mxu0
    %v2046 = vadd.f32 %v2003, %v2045
    %v2047 = vpop.f32.mrf.mxu0
    %v2048 = vadd.f32 %v2005, %v2047
    %v2049 = vpop.f32.mrf.mxu0
    %v2050 = vadd.f32 %v2007, %v2049
    %2051 = vdwg.mxu0
    %2052 = vmatprep.subr.bf16.mxu0 %v1589
    %2053 = vmatpush1.bf16.msra.mxu0 %v1588
    %2054 = vmatprep.subr.bf16.mxu0 %v1585
    %2055 = vmatpush1.bf16.msra.mxu0 %v1584
    %2056 = vmatprep.subr.bf16.mxu0 %v1581
    %2057 = vmatpush1.bf16.msra.mxu0 %v1580
    %2058 = vmatprep.subr.bf16.mxu0 %v1577
    %2059 = vmatpush1.bf16.msra.mxu0 %v1576
    %2060 = vmatprep.subr.bf16.mxu0 %v1573
    %2061 = vmatpush1.bf16.msra.mxu0 %v1572
    %2062 = vmatprep.subr.bf16.mxu0 %v1569
    %2063 = vmatpush1.bf16.msra.mxu0 %v1568
    %2064 = vmatprep.subr.bf16.mxu0 %v1565
    %2065 = vmatpush1.bf16.msra.mxu0 %v1564
    %2066 = vmatprep.subr.bf16.mxu0 %v1561
    %2067 = vmatpush1.bf16.msra.mxu0 %v1560
    %2068 = vmatprep.subr.bf16.mxu0 0
    %2069 = vmatpush2.bf16.msra.mxu0 0
    %2070 = vmatprep.subr.bf16.mxu0 0
    %2071 = vmatpush2.bf16.msra.mxu0 0
    %2072 = vmatprep.subr.bf16.mxu0 0
    %2073 = vmatpush2.bf16.msra.mxu0 0
    %2074 = vmatprep.subr.bf16.mxu0 0
    %2075 = vmatpush2.bf16.msra.mxu0 0
    %2076 = vmatprep.subr.bf16.mxu0 0
    %2077 = vmatpush2.bf16.msra.mxu0 0
    %2078 = vmatprep.subr.bf16.mxu0 0
    %2079 = vmatpush2.bf16.msra.mxu0 0
    %2080 = vmatprep.subr.bf16.mxu0 0
    %2081 = vmatpush2.bf16.msra.mxu0 0
    %2082 = vmatprep.subr.bf16.mxu0 0
    %2083 = vmatpush2.bf16.msra.mxu0 0
    %2084 = vmatprep.mubr.bf16.mxu0 0
    %2085 = vmatmul.mubr.bf16.gmra.mxu0 %v129
    %v2086 = vpop.f32.mrf.mxu0
    %v2087 = vadd.f32 %v2044, %v2086
    %v2088 = vpop.f32.mrf.mxu0
    %v2089 = vadd.f32 %v2046, %v2088
    %v2090 = vpop.f32.mrf.mxu0
    %v2091 = vadd.f32 %v2048, %v2090
    %v2092 = vpop.f32.mrf.mxu0
    %v2093 = vadd.f32 %v2050, %v2092
    %2094 = vdwg.mxu0
    %2095 = vmatprep.subr.bf16.mxu0 %v1335
    %2096 = vmatpush1.bf16.msra.mxu0 %v1334
    %2097 = vmatprep.subr.bf16.mxu0 %v1331
    %2098 = vmatpush1.bf16.msra.mxu0 %v1330
    %2099 = vmatprep.subr.bf16.mxu0 %v1327
    %2100 = vmatpush1.bf16.msra.mxu0 %v1326
    %2101 = vmatprep.subr.bf16.mxu0 %v1323
    %2102 = vmatpush1.bf16.msra.mxu0 %v1322
    %2103 = vmatprep.subr.bf16.mxu0 %v1319
    %2104 = vmatpush1.bf16.msra.mxu0 %v1318
    %2105 = vmatprep.subr.bf16.mxu0 %v1315
    %2106 = vmatpush1.bf16.msra.mxu0 %v1314
    %2107 = vmatprep.subr.bf16.mxu0 %v1311
    %2108 = vmatpush1.bf16.msra.mxu0 %v1310
    %2109 = vmatprep.subr.bf16.mxu0 %v1307
    %2110 = vmatpush1.bf16.msra.mxu0 %v1306
    %2111 = vmatprep.subr.bf16.mxu0 %v1367
    %2112 = vmatpush2.bf16.msra.mxu0 %v1366
    %2113 = vmatprep.subr.bf16.mxu0 %v1363
    %2114 = vmatpush2.bf16.msra.mxu0 %v1362
    %2115 = vmatprep.subr.bf16.mxu0 %v1359
    %2116 = vmatpush2.bf16.msra.mxu0 %v1358
    %2117 = vmatprep.subr.bf16.mxu0 %v1355
    %2118 = vmatpush2.bf16.msra.mxu0 %v1354
    %2119 = vmatprep.subr.bf16.mxu0 %v1351
    %2120 = vmatpush2.bf16.msra.mxu0 %v1350
    %2121 = vmatprep.subr.bf16.mxu0 %v1347
    %2122 = vmatpush2.bf16.msra.mxu0 %v1346
    %2123 = vmatprep.subr.bf16.mxu0 %v1343
    %2124 = vmatpush2.bf16.msra.mxu0 %v1342
    %2125 = vmatprep.subr.bf16.mxu0 %v1339
    %2126 = vmatpush2.bf16.msra.mxu0 %v1338
    %2127 = vmatprep.mubr.bf16.mxu0 %v122
    %2128 = vmatmul.mubr.bf16.gmra.mxu0 %v121
    %v2129 = vpop.f32.mrf.mxu0
    %v2130 = vadd.f32 %v431, %v2129
    %v2131 = vpop.f32.mrf.mxu0
    %v2132 = vadd.f32 %v435, %v2131
    %v2133 = vpop.f32.mrf.mxu0
    %v2134 = vadd.f32 %v431, %v2133
    %v2135 = vpop.f32.mrf.mxu0
    %v2136 = vadd.f32 %v435, %v2135
    %2137 = vdwg.mxu0
    %2138 = vmatprep.subr.bf16.mxu0 %v1399
    %2139 = vmatpush1.bf16.msra.mxu0 %v1398
    %2140 = vmatprep.subr.bf16.mxu0 %v1395
    %2141 = vmatpush1.bf16.msra.mxu0 %v1394
    %2142 = vmatprep.subr.bf16.mxu0 %v1391
    %2143 = vmatpush1.bf16.msra.mxu0 %v1390
    %2144 = vmatprep.subr.bf16.mxu0 %v1387
    %2145 = vmatpush1.bf16.msra.mxu0 %v1386
    %2146 = vmatprep.subr.bf16.mxu0 %v1383
    %2147 = vmatpush1.bf16.msra.mxu0 %v1382
    %2148 = vmatprep.subr.bf16.mxu0 %v1379
    %2149 = vmatpush1.bf16.msra.mxu0 %v1378
    %2150 = vmatprep.subr.bf16.mxu0 %v1375
    %2151 = vmatpush1.bf16.msra.mxu0 %v1374
    %2152 = vmatprep.subr.bf16.mxu0 %v1371
    %2153 = vmatpush1.bf16.msra.mxu0 %v1370
    %2154 = vmatprep.subr.bf16.mxu0 %v1431
    %2155 = vmatpush2.bf16.msra.mxu0 %v1430
    %2156 = vmatprep.subr.bf16.mxu0 %v1427
    %2157 = vmatpush2.bf16.msra.mxu0 %v1426
    %2158 = vmatprep.subr.bf16.mxu0 %v1423
    %2159 = vmatpush2.bf16.msra.mxu0 %v1422
    %2160 = vmatprep.subr.bf16.mxu0 %v1419
    %2161 = vmatpush2.bf16.msra.mxu0 %v1418
    %2162 = vmatprep.subr.bf16.mxu0 %v1415
    %2163 = vmatpush2.bf16.msra.mxu0 %v1414
    %2164 = vmatprep.subr.bf16.mxu0 %v1411
    %2165 = vmatpush2.bf16.msra.mxu0 %v1410
    %2166 = vmatprep.subr.bf16.mxu0 %v1407
    %2167 = vmatpush2.bf16.msra.mxu0 %v1406
    %2168 = vmatprep.subr.bf16.mxu0 %v1403
    %2169 = vmatpush2.bf16.msra.mxu0 %v1402
    %2170 = vmatprep.mubr.bf16.mxu0 %v124
    %2171 = vmatmul.mubr.bf16.gmra.mxu0 %v123
    %v2172 = vpop.f32.mrf.mxu0
    %v2173 = vadd.f32 %v2130, %v2172
    %v2174 = vpop.f32.mrf.mxu0
    %v2175 = vadd.f32 %v2132, %v2174
    %v2176 = vpop.f32.mrf.mxu0
    %v2177 = vadd.f32 %v2134, %v2176
    %v2178 = vpop.f32.mrf.mxu0
    %v2179 = vadd.f32 %v2136, %v2178
    %2180 = vdwg.mxu0
    %2181 = vmatprep.subr.bf16.mxu0 %v1463
    %2182 = vmatpush1.bf16.msra.mxu0 %v1462
    %2183 = vmatprep.subr.bf16.mxu0 %v1459
    %2184 = vmatpush1.bf16.msra.mxu0 %v1458
    %2185 = vmatprep.subr.bf16.mxu0 %v1455
    %2186 = vmatpush1.bf16.msra.mxu0 %v1454
    %2187 = vmatprep.subr.bf16.mxu0 %v1451
    %2188 = vmatpush1.bf16.msra.mxu0 %v1450
    %2189 = vmatprep.subr.bf16.mxu0 %v1447
    %2190 = vmatpush1.bf16.msra.mxu0 %v1446
    %2191 = vmatprep.subr.bf16.mxu0 %v1443
    %2192 = vmatpush1.bf16.msra.mxu0 %v1442
    %2193 = vmatprep.subr.bf16.mxu0 %v1439
    %2194 = vmatpush1.bf16.msra.mxu0 %v1438
    %2195 = vmatprep.subr.bf16.mxu0 %v1435
    %2196 = vmatpush1.bf16.msra.mxu0 %v1434
    %2197 = vmatprep.subr.bf16.mxu0 %v1495
    %2198 = vmatpush2.bf16.msra.mxu0 %v1494
    %2199 = vmatprep.subr.bf16.mxu0 %v1491
    %2200 = vmatpush2.bf16.msra.mxu0 %v1490
    %2201 = vmatprep.subr.bf16.mxu0 %v1487
    %2202 = vmatpush2.bf16.msra.mxu0 %v1486
    %2203 = vmatprep.subr.bf16.mxu0 %v1483
    %2204 = vmatpush2.bf16.msra.mxu0 %v1482
    %2205 = vmatprep.subr.bf16.mxu0 %v1479
    %2206 = vmatpush2.bf16.msra.mxu0 %v1478
    %2207 = vmatprep.subr.bf16.mxu0 %v1475
    %2208 = vmatpush2.bf16.msra.mxu0 %v1474
    %2209 = vmatprep.subr.bf16.mxu0 %v1471
    %2210 = vmatpush2.bf16.msra.mxu0 %v1470
    %2211 = vmatprep.subr.bf16.mxu0 %v1467
    %2212 = vmatpush2.bf16.msra.mxu0 %v1466
    %2213 = vmatprep.mubr.bf16.mxu0 %v126
    %2214 = vmatmul.mubr.bf16.gmra.mxu0 %v125
    %v2215 = vpop.f32.mrf.mxu0
    %v2216 = vadd.f32 %v2173, %v2215
    %v2217 = vpop.f32.mrf.mxu0
    %v2218 = vadd.f32 %v2175, %v2217
    %v2219 = vpop.f32.mrf.mxu0
    %v2220 = vadd.f32 %v2177, %v2219
    %v2221 = vpop.f32.mrf.mxu0
    %v2222 = vadd.f32 %v2179, %v2221
    %2223 = vdwg.mxu0
    %2224 = vmatprep.subr.bf16.mxu0 %v1527
    %2225 = vmatpush1.bf16.msra.mxu0 %v1526
    %2226 = vmatprep.subr.bf16.mxu0 %v1523
    %2227 = vmatpush1.bf16.msra.mxu0 %v1522
    %2228 = vmatprep.subr.bf16.mxu0 %v1519
    %2229 = vmatpush1.bf16.msra.mxu0 %v1518
    %2230 = vmatprep.subr.bf16.mxu0 %v1515
    %2231 = vmatpush1.bf16.msra.mxu0 %v1514
    %2232 = vmatprep.subr.bf16.mxu0 %v1511
    %2233 = vmatpush1.bf16.msra.mxu0 %v1510
    %2234 = vmatprep.subr.bf16.mxu0 %v1507
    %2235 = vmatpush1.bf16.msra.mxu0 %v1506
    %2236 = vmatprep.subr.bf16.mxu0 %v1503
    %2237 = vmatpush1.bf16.msra.mxu0 %v1502
    %2238 = vmatprep.subr.bf16.mxu0 %v1499
    %2239 = vmatpush1.bf16.msra.mxu0 %v1498
    %2240 = vmatprep.subr.bf16.mxu0 %v1559
    %2241 = vmatpush2.bf16.msra.mxu0 %v1558
    %2242 = vmatprep.subr.bf16.mxu0 %v1555
    %2243 = vmatpush2.bf16.msra.mxu0 %v1554
    %2244 = vmatprep.subr.bf16.mxu0 %v1551
    %2245 = vmatpush2.bf16.msra.mxu0 %v1550
    %2246 = vmatprep.subr.bf16.mxu0 %v1547
    %2247 = vmatpush2.bf16.msra.mxu0 %v1546
    %2248 = vmatprep.subr.bf16.mxu0 %v1543
    %2249 = vmatpush2.bf16.msra.mxu0 %v1542
    %2250 = vmatprep.subr.bf16.mxu0 %v1539
    %2251 = vmatpush2.bf16.msra.mxu0 %v1538
    %2252 = vmatprep.subr.bf16.mxu0 %v1535
    %2253 = vmatpush2.bf16.msra.mxu0 %v1534
    %2254 = vmatprep.subr.bf16.mxu0 %v1531
    %2255 = vmatpush2.bf16.msra.mxu0 %v1530
    %2256 = vmatprep.mubr.bf16.mxu0 %v128
    %2257 = vmatmul.mubr.bf16.gmra.mxu0 %v127
    %v2258 = vpop.f32.mrf.mxu0
    %v2259 = vadd.f32 %v2216, %v2258
    %v2260 = vpop.f32.mrf.mxu0
    %v2261 = vadd.f32 %v2218, %v2260
    %v2262 = vpop.f32.mrf.mxu0
    %v2263 = vadd.f32 %v2220, %v2262
    %v2264 = vpop.f32.mrf.mxu0
    %v2265 = vadd.f32 %v2222, %v2264
    %2266 = vdwg.mxu0
    %2267 = vmatprep.subr.bf16.mxu0 %v1591
    %2268 = vmatpush1.bf16.msra.mxu0 %v1590
    %2269 = vmatprep.subr.bf16.mxu0 %v1587
    %2270 = vmatpush1.bf16.msra.mxu0 %v1586
    %2271 = vmatprep.subr.bf16.mxu0 %v1583
    %2272 = vmatpush1.bf16.msra.mxu0 %v1582
    %2273 = vmatprep.subr.bf16.mxu0 %v1579
    %2274 = vmatpush1.bf16.msra.mxu0 %v1578
    %2275 = vmatprep.subr.bf16.mxu0 %v1575
    %2276 = vmatpush1.bf16.msra.mxu0 %v1574
    %2277 = vmatprep.subr.bf16.mxu0 %v1571
    %2278 = vmatpush1.bf16.msra.mxu0 %v1570
    %2279 = vmatprep.subr.bf16.mxu0 %v1567
    %2280 = vmatpush1.bf16.msra.mxu0 %v1566
    %2281 = vmatprep.subr.bf16.mxu0 %v1563
    %2282 = vmatpush1.bf16.msra.mxu0 %v1562
    %2283 = vmatprep.subr.bf16.mxu0 0
    %2284 = vmatpush2.bf16.msra.mxu0 0
    %2285 = vmatprep.subr.bf16.mxu0 0
    %2286 = vmatpush2.bf16.msra.mxu0 0
    %2287 = vmatprep.subr.bf16.mxu0 0
    %2288 = vmatpush2.bf16.msra.mxu0 0
    %2289 = vmatprep.subr.bf16.mxu0 0
    %2290 = vmatpush2.bf16.msra.mxu0 0
    %2291 = vmatprep.subr.bf16.mxu0 0
    %2292 = vmatpush2.bf16.msra.mxu0 0
    %2293 = vmatprep.subr.bf16.mxu0 0
    %2294 = vmatpush2.bf16.msra.mxu0 0
    %2295 = vmatprep.subr.bf16.mxu0 0
    %2296 = vmatpush2.bf16.msra.mxu0 0
    %2297 = vmatprep.subr.bf16.mxu0 0
    %2298 = vmatpush2.bf16.msra.mxu0 0
    %2299 = vmatprep.mubr.bf16.mxu0 0
    %2300 = vmatmul.mubr.bf16.gmra.mxu0 %v129
    %v2301 = vpop.f32.mrf.mxu0
    %v2302 = vadd.f32 %v2259, %v2301
    %v2303 = vpop.f32.mrf.mxu0
    %v2304 = vadd.f32 %v2261, %v2303
    %v2305 = vpop.f32.mrf.mxu0
    %v2306 = vadd.f32 %v2263, %v2305
    %v2307 = vpop.f32.mrf.mxu0
    %v2308 = vadd.f32 %v2265, %v2307
    %2309 = vdwg.mxu0
    %v2310 = vmax.f32 %v2087, 0.0
    %v2311 = vmax.f32 %v2089, 0.0
    %v2312 = vmax.f32 %v2302, 0.0
    %v2313 = vmax.f32 %v2304, 0.0
    %v2314 = vmax.f32 %v2091, 0.0
    %v2315 = vmax.f32 %v2093, 0.0
    %v2316 = vmax.f32 %v2306, 0.0
    %v2317 = vmax.f32 %v2308, 0.0
    %v2318 = vpack.c.bf16 %v2314, %v2310
    %v2319 = vpack.c.bf16 %v2315, %v2311
    %v2320 = vpack.c.bf16 %v2316, %v2312
    %v2321 = vpack.c.bf16 %v2317, %v2313
    %v2322 = vld [vmem:[#allocation6] sm:$0xff]
    %v2323 = vld [vmem:[#allocation6 + $0x8] sm:$0xff]
    %v2324 = vld [vmem:[#allocation6 + $0x10] sm:$0xff]
    %v2325 = vld [vmem:[#allocation6 + $0x18] sm:$0xff]
    %v2326 = vld [vmem:[#allocation6 + $0x20] sm:$0xff]
    %v2327 = vld [vmem:[#allocation6 + $0x28] sm:$0xff]
    %v2328 = vld [vmem:[#allocation6 + $0x30] sm:$0xff]
    %v2329 = vld [vmem:[#allocation6 + $0x38] sm:$0xff]
    %v2330 = vld [vmem:[#allocation6 + $0x40] sm:$0xff]
    %v2331 = vld [vmem:[#allocation6 + $0x48] sm:$0xff]
    %v2332 = vld [vmem:[#allocation6 + $0x50] sm:$0xff]
    %v2333 = vld [vmem:[#allocation6 + $0x58] sm:$0xff]
    %v2334 = vld [vmem:[#allocation6 + $0x60] sm:$0xff]
    %v2335 = vld [vmem:[#allocation6 + $0x68] sm:$0xff]
    %v2336 = vld [vmem:[#allocation6 + $0x70] sm:$0xff]
    %v2337 = vld [vmem:[#allocation6 + $0x78] sm:$0xff]
    %v2338 = vld [vmem:[#allocation6 + $0x80] sm:$0xff]
    %v2339 = vld [vmem:[#allocation6 + $0x88] sm:$0xff]
    %v2340 = vld [vmem:[#allocation6 + $0x90] sm:$0xff]
    %v2341 = vld [vmem:[#allocation6 + $0x98] sm:$0xff]
    %v2342 = vld [vmem:[#allocation6 + $0xa0] sm:$0xff]
    %v2343 = vld [vmem:[#allocation6 + $0xa8] sm:$0xff]
    %v2344 = vld [vmem:[#allocation6 + $0xb0] sm:$0xff]
    %v2345 = vld [vmem:[#allocation6 + $0xb8] sm:$0xff]
    %v2346 = vld [vmem:[#allocation6 + $0xc0] sm:$0xff]
    %v2347 = vld [vmem:[#allocation6 + $0xc8] sm:$0xff]
    %v2348 = vld [vmem:[#allocation6 + $0xd0] sm:$0xff]
    %v2349 = vld [vmem:[#allocation6 + $0xd8] sm:$0xff]
    %v2350 = vld [vmem:[#allocation6 + $0xe0] sm:$0xff]
    %v2351 = vld [vmem:[#allocation6 + $0xe8] sm:$0xff]
    %v2352 = vld [vmem:[#allocation6 + $0xf0] sm:$0xff]
    %v2353 = vld [vmem:[#allocation6 + $0xf8] sm:$0xff]
    %v2354 = vld [vmem:[#allocation6 + $0x100] sm:$0xff]
    %v2355 = vld [vmem:[#allocation6 + $0x108] sm:$0xff]
    %v2356 = vld [vmem:[#allocation6 + $0x110] sm:$0xff]
    %v2357 = vld [vmem:[#allocation6 + $0x118] sm:$0xff]
    %v2358 = vld [vmem:[#allocation6 + $0x120] sm:$0xff]
    %v2359 = vld [vmem:[#allocation6 + $0x128] sm:$0xff]
    %v2360 = vld [vmem:[#allocation6 + $0x130] sm:$0xff]
    %v2361 = vld [vmem:[#allocation6 + $0x138] sm:$0xff]
    %v2362 = vld [vmem:[#allocation6 + $0x140] sm:$0xff]
    %v2363 = vld [vmem:[#allocation6 + $0x148] sm:$0xff]
    %v2364 = vld [vmem:[#allocation6 + $0x150] sm:$0xff]
    %v2365 = vld [vmem:[#allocation6 + $0x158] sm:$0xff]
    %v2366 = vld [vmem:[#allocation6 + $0x160] sm:$0xff]
    %v2367 = vld [vmem:[#allocation6 + $0x168] sm:$0xff]
    %v2368 = vld [vmem:[#allocation6 + $0x170] sm:$0xff]
    %v2369 = vld [vmem:[#allocation6 + $0x178] sm:$0xff]
    %v2370 = vld [vmem:[#allocation6 + $0x180] sm:$0xff]
    %v2371 = vld [vmem:[#allocation6 + $0x188] sm:$0xff]
    %v2372 = vld [vmem:[#allocation6 + $0x190] sm:$0xff]
    %v2373 = vld [vmem:[#allocation6 + $0x198] sm:$0xff]
    %v2374 = vld [vmem:[#allocation6 + $0x1a0] sm:$0xff]
    %v2375 = vld [vmem:[#allocation6 + $0x1a8] sm:$0xff]
    %v2376 = vld [vmem:[#allocation6 + $0x1b0] sm:$0xff]
    %v2377 = vld [vmem:[#allocation6 + $0x1b8] sm:$0xff]
    %v2378 = vld [vmem:[#allocation6 + $0x1c0] sm:$0xff]
    %v2379 = vld [vmem:[#allocation6 + $0x1c8] sm:$0xff]
    %v2380 = vld [vmem:[#allocation6 + $0x1d0] sm:$0xff]
    %v2381 = vld [vmem:[#allocation6 + $0x1d8] sm:$0xff]
    %v2382 = vld [vmem:[#allocation6 + $0x1e0] sm:$0xff]
    %v2383 = vld [vmem:[#allocation6 + $0x1e8] sm:$0xff]
    %v2384 = vld [vmem:[#allocation6 + $0x1f0] sm:$0xff]
    %v2385 = vld [vmem:[#allocation6 + $0x1f8] sm:$0xff]
    %v2386 = vld [vmem:[#allocation6 + $0x200] sm:$0xff]
    %v2387 = vld [vmem:[#allocation6 + $0x208] sm:$0xff]
    %v2388 = vld [vmem:[#allocation6 + $0x210] sm:$0xff]
    %v2389 = vld [vmem:[#allocation6 + $0x218] sm:$0xff]
    %v2390 = vld [vmem:[#allocation6 + $0x220] sm:$0xff]
    %v2391 = vld [vmem:[#allocation6 + $0x228] sm:$0xff]
    %v2392 = vld [vmem:[#allocation6 + $0x230] sm:$0xff]
    %v2393 = vld [vmem:[#allocation6 + $0x238] sm:$0xff]
    %v2394 = vld [vmem:[#allocation6 + $0x240] sm:$0xff]
    %v2395 = vld [vmem:[#allocation6 + $0x248] sm:$0xff]
    %v2396 = vld [vmem:[#allocation6 + $0x250] sm:$0xff]
    %v2397 = vld [vmem:[#allocation6 + $0x258] sm:$0xff]
    %v2398 = vld [vmem:[#allocation6 + $0x260] sm:$0xff]
    %v2399 = vld [vmem:[#allocation6 + $0x268] sm:$0xff]
    %v2400 = vld [vmem:[#allocation6 + $0x270] sm:$0xff]
    %v2401 = vld [vmem:[#allocation6 + $0x278] sm:$0xff]
    %v2402 = vld [vmem:[#allocation6 + $0x280] sm:$0xff]
    %v2403 = vld [vmem:[#allocation6 + $0x288] sm:$0xff]
    %v2404 = vld [vmem:[#allocation6 + $0x290] sm:$0xff]
    %v2405 = vld [vmem:[#allocation6 + $0x298] sm:$0xff]
    %v2406 = vld [vmem:[#allocation6 + $0x2a0] sm:$0xff]
    %v2407 = vld [vmem:[#allocation6 + $0x2a8] sm:$0xff]
    %v2408 = vld [vmem:[#allocation6 + $0x2b0] sm:$0xff]
    %v2409 = vld [vmem:[#allocation6 + $0x2b8] sm:$0xff]
    %v2410 = vld [vmem:[#allocation6 + $0x2c0] sm:$0xff]
    %v2411 = vld [vmem:[#allocation6 + $0x2c8] sm:$0xff]
    %v2412 = vld [vmem:[#allocation6 + $0x2d0] sm:$0xff]
    %v2413 = vld [vmem:[#allocation6 + $0x2d8] sm:$0xff]
    %v2414 = vld [vmem:[#allocation6 + $0x2e0] sm:$0xff]
    %v2415 = vld [vmem:[#allocation6 + $0x2e8] sm:$0xff]
    %v2416 = vld [vmem:[#allocation6 + $0x2f0] sm:$0xff]
    %v2417 = vld [vmem:[#allocation6 + $0x2f8] sm:$0xff]
    %v2418 = vld [vmem:[#allocation6 + $0x300] sm:$0xff]
    %v2419 = vld [vmem:[#allocation6 + $0x308] sm:$0xff]
    %v2420 = vld [vmem:[#allocation6 + $0x310] sm:$0xff]
    %v2421 = vld [vmem:[#allocation6 + $0x318] sm:$0xff]
    %v2422 = vld [vmem:[#allocation6 + $0x320] sm:$0xff]
    %v2423 = vld [vmem:[#allocation6 + $0x328] sm:$0xff]
    %v2424 = vld [vmem:[#allocation6 + $0x330] sm:$0xff]
    %v2425 = vld [vmem:[#allocation6 + $0x338] sm:$0xff]
    %v2426 = vld [vmem:[#allocation6 + $0x340] sm:$0xff]
    %v2427 = vld [vmem:[#allocation6 + $0x348] sm:$0xff]
    %v2428 = vld [vmem:[#allocation6 + $0x350] sm:$0xff]
    %v2429 = vld [vmem:[#allocation6 + $0x358] sm:$0xff]
    %v2430 = vld [vmem:[#allocation6 + $0x360] sm:$0xff]
    %v2431 = vld [vmem:[#allocation6 + $0x368] sm:$0xff]
    %v2432 = vld [vmem:[#allocation6 + $0x370] sm:$0xff]
    %v2433 = vld [vmem:[#allocation6 + $0x378] sm:$0xff]
    %v2434 = vld [vmem:[#allocation6 + $0x380] sm:$0xff]
    %v2435 = vld [vmem:[#allocation6 + $0x388] sm:$0xff]
    %v2436 = vld [vmem:[#allocation6 + $0x390] sm:$0xff]
    %v2437 = vld [vmem:[#allocation6 + $0x398] sm:$0xff]
    %v2438 = vld [vmem:[#allocation6 + $0x3a0] sm:$0xff]
    %v2439 = vld [vmem:[#allocation6 + $0x3a8] sm:$0xff]
    %v2440 = vld [vmem:[#allocation6 + $0x3b0] sm:$0xff]
    %v2441 = vld [vmem:[#allocation6 + $0x3b8] sm:$0xff]
    %v2442 = vld [vmem:[#allocation6 + $0x3c0] sm:$0xff]
    %v2443 = vld [vmem:[#allocation6 + $0x3c8] sm:$0xff]
    %v2444 = vld [vmem:[#allocation6 + $0x3d0] sm:$0xff]
    %v2445 = vld [vmem:[#allocation6 + $0x3d8] sm:$0xff]
    %v2446 = vld [vmem:[#allocation6 + $0x3e0] sm:$0xff]
    %v2447 = vld [vmem:[#allocation6 + $0x3e8] sm:$0xff]
    %v2448 = vld [vmem:[#allocation6 + $0x3f0] sm:$0xff]
    %v2449 = vld [vmem:[#allocation6 + $0x3f8] sm:$0xff]
    %v2450 = vld [vmem:[#allocation7] sm:$0xf]
    %v2452 = vlaneseq
    %v2453 = vshrl.u32 %v2452, 7
    %v2454 = vsub.s32 0, %v2453
    %v2455 = vrot.slane %v2450, %v2454
    %v2456 = vlaneseq
    %v2457 = vshrl.u32 %v2456, 7
    %v2458 = vsub.s32 1, %v2457
    %v2459 = vrot.slane %v2450, %v2458
    %v2460 = vlaneseq
    %v2461 = vshrl.u32 %v2460, 7
    %v2462 = vsub.s32 2, %v2461
    %v2463 = vrot.slane %v2450, %v2462
    %v2464 = vlaneseq
    %v2465 = vshrl.u32 %v2464, 7
    %v2466 = vsub.s32 3, %v2465
    %v2467 = vrot.slane %v2450, %v2466
    %v2600 = vunpack.c.l.b16 %v2322
    %v2601 = vunpack.c.h.b16 %v2322
    %v2602 = vunpack.c.l.b16 %v2323
    %v2603 = vunpack.c.h.b16 %v2323
    %v2604 = vunpack.c.l.b16 %v2324
    %v2605 = vunpack.c.h.b16 %v2324
    %v2606 = vunpack.c.l.b16 %v2325
    %v2607 = vunpack.c.h.b16 %v2325
    %v2608 = vunpack.c.l.b16 %v2326
    %v2609 = vunpack.c.h.b16 %v2326
    %v2610 = vunpack.c.l.b16 %v2327
    %v2611 = vunpack.c.h.b16 %v2327
    %v2612 = vunpack.c.l.b16 %v2328
    %v2613 = vunpack.c.h.b16 %v2328
    %v2614 = vunpack.c.l.b16 %v2329
    %v2615 = vunpack.c.h.b16 %v2329
    %v2616 = vunpack.c.l.b16 %v2330
    %v2617 = vunpack.c.h.b16 %v2330
    %v2618 = vunpack.c.l.b16 %v2331
    %v2619 = vunpack.c.h.b16 %v2331
    %v2620 = vunpack.c.l.b16 %v2332
    %v2621 = vunpack.c.h.b16 %v2332
    %v2622 = vunpack.c.l.b16 %v2333
    %v2623 = vunpack.c.h.b16 %v2333
    %v2624 = vunpack.c.l.b16 %v2334
    %v2625 = vunpack.c.h.b16 %v2334
    %v2626 = vunpack.c.l.b16 %v2335
    %v2627 = vunpack.c.h.b16 %v2335
    %v2628 = vunpack.c.l.b16 %v2336
    %v2629 = vunpack.c.h.b16 %v2336
    %v2630 = vunpack.c.l.b16 %v2337
    %v2631 = vunpack.c.h.b16 %v2337
    %v2632 = vunpack.c.l.b16 %v2338
    %v2633 = vunpack.c.h.b16 %v2338
    %v2634 = vunpack.c.l.b16 %v2339
    %v2635 = vunpack.c.h.b16 %v2339
    %v2636 = vunpack.c.l.b16 %v2340
    %v2637 = vunpack.c.h.b16 %v2340
    %v2638 = vunpack.c.l.b16 %v2341
    %v2639 = vunpack.c.h.b16 %v2341
    %v2640 = vunpack.c.l.b16 %v2342
    %v2641 = vunpack.c.h.b16 %v2342
    %v2642 = vunpack.c.l.b16 %v2343
    %v2643 = vunpack.c.h.b16 %v2343
    %v2644 = vunpack.c.l.b16 %v2344
    %v2645 = vunpack.c.h.b16 %v2344
    %v2646 = vunpack.c.l.b16 %v2345
    %v2647 = vunpack.c.h.b16 %v2345
    %v2648 = vunpack.c.l.b16 %v2346
    %v2649 = vunpack.c.h.b16 %v2346
    %v2650 = vunpack.c.l.b16 %v2347
    %v2651 = vunpack.c.h.b16 %v2347
    %v2652 = vunpack.c.l.b16 %v2348
    %v2653 = vunpack.c.h.b16 %v2348
    %v2654 = vunpack.c.l.b16 %v2349
    %v2655 = vunpack.c.h.b16 %v2349
    %v2656 = vunpack.c.l.b16 %v2350
    %v2657 = vunpack.c.h.b16 %v2350
    %v2658 = vunpack.c.l.b16 %v2351
    %v2659 = vunpack.c.h.b16 %v2351
    %v2660 = vunpack.c.l.b16 %v2352
    %v2661 = vunpack.c.h.b16 %v2352
    %v2662 = vunpack.c.l.b16 %v2353
    %v2663 = vunpack.c.h.b16 %v2353
    %v2664 = vunpack.c.l.b16 %v2354
    %v2665 = vunpack.c.h.b16 %v2354
    %v2666 = vunpack.c.l.b16 %v2355
    %v2667 = vunpack.c.h.b16 %v2355
    %v2668 = vunpack.c.l.b16 %v2356
    %v2669 = vunpack.c.h.b16 %v2356
    %v2670 = vunpack.c.l.b16 %v2357
    %v2671 = vunpack.c.h.b16 %v2357
    %v2672 = vunpack.c.l.b16 %v2358
    %v2673 = vunpack.c.h.b16 %v2358
    %v2674 = vunpack.c.l.b16 %v2359
    %v2675 = vunpack.c.h.b16 %v2359
    %v2676 = vunpack.c.l.b16 %v2360
    %v2677 = vunpack.c.h.b16 %v2360
    %v2678 = vunpack.c.l.b16 %v2361
    %v2679 = vunpack.c.h.b16 %v2361
    %v2680 = vunpack.c.l.b16 %v2362
    %v2681 = vunpack.c.h.b16 %v2362
    %v2682 = vunpack.c.l.b16 %v2363
    %v2683 = vunpack.c.h.b16 %v2363
    %v2684 = vunpack.c.l.b16 %v2364
    %v2685 = vunpack.c.h.b16 %v2364
    %v2686 = vunpack.c.l.b16 %v2365
    %v2687 = vunpack.c.h.b16 %v2365
    %v2688 = vunpack.c.l.b16 %v2366
    %v2689 = vunpack.c.h.b16 %v2366
    %v2690 = vunpack.c.l.b16 %v2367
    %v2691 = vunpack.c.h.b16 %v2367
    %v2692 = vunpack.c.l.b16 %v2368
    %v2693 = vunpack.c.h.b16 %v2368
    %v2694 = vunpack.c.l.b16 %v2369
    %v2695 = vunpack.c.h.b16 %v2369
    %v2696 = vunpack.c.l.b16 %v2370
    %v2697 = vunpack.c.h.b16 %v2370
    %v2698 = vunpack.c.l.b16 %v2371
    %v2699 = vunpack.c.h.b16 %v2371
    %v2700 = vunpack.c.l.b16 %v2372
    %v2701 = vunpack.c.h.b16 %v2372
    %v2702 = vunpack.c.l.b16 %v2373
    %v2703 = vunpack.c.h.b16 %v2373
    %v2704 = vunpack.c.l.b16 %v2374
    %v2705 = vunpack.c.h.b16 %v2374
    %v2706 = vunpack.c.l.b16 %v2375
    %v2707 = vunpack.c.h.b16 %v2375
    %v2708 = vunpack.c.l.b16 %v2376
    %v2709 = vunpack.c.h.b16 %v2376
    %v2710 = vunpack.c.l.b16 %v2377
    %v2711 = vunpack.c.h.b16 %v2377
    %v2712 = vunpack.c.l.b16 %v2378
    %v2713 = vunpack.c.h.b16 %v2378
    %v2714 = vunpack.c.l.b16 %v2379
    %v2715 = vunpack.c.h.b16 %v2379
    %v2716 = vunpack.c.l.b16 %v2380
    %v2717 = vunpack.c.h.b16 %v2380
    %v2718 = vunpack.c.l.b16 %v2381
    %v2719 = vunpack.c.h.b16 %v2381
    %v2720 = vunpack.c.l.b16 %v2382
    %v2721 = vunpack.c.h.b16 %v2382
    %v2722 = vunpack.c.l.b16 %v2383
    %v2723 = vunpack.c.h.b16 %v2383
    %v2724 = vunpack.c.l.b16 %v2384
    %v2725 = vunpack.c.h.b16 %v2384
    %v2726 = vunpack.c.l.b16 %v2385
    %v2727 = vunpack.c.h.b16 %v2385
    %v2728 = vunpack.c.l.b16 %v2386
    %v2729 = vunpack.c.h.b16 %v2386
    %v2730 = vunpack.c.l.b16 %v2387
    %v2731 = vunpack.c.h.b16 %v2387
    %v2732 = vunpack.c.l.b16 %v2388
    %v2733 = vunpack.c.h.b16 %v2388
    %v2734 = vunpack.c.l.b16 %v2389
    %v2735 = vunpack.c.h.b16 %v2389
    %v2736 = vunpack.c.l.b16 %v2390
    %v2737 = vunpack.c.h.b16 %v2390
    %v2738 = vunpack.c.l.b16 %v2391
    %v2739 = vunpack.c.h.b16 %v2391
    %v2740 = vunpack.c.l.b16 %v2392
    %v2741 = vunpack.c.h.b16 %v2392
    %v2742 = vunpack.c.l.b16 %v2393
    %v2743 = vunpack.c.h.b16 %v2393
    %v2744 = vunpack.c.l.b16 %v2394
    %v2745 = vunpack.c.h.b16 %v2394
    %v2746 = vunpack.c.l.b16 %v2395
    %v2747 = vunpack.c.h.b16 %v2395
    %v2748 = vunpack.c.l.b16 %v2396
    %v2749 = vunpack.c.h.b16 %v2396
    %v2750 = vunpack.c.l.b16 %v2397
    %v2751 = vunpack.c.h.b16 %v2397
    %v2752 = vunpack.c.l.b16 %v2398
    %v2753 = vunpack.c.h.b16 %v2398
    %v2754 = vunpack.c.l.b16 %v2399
    %v2755 = vunpack.c.h.b16 %v2399
    %v2756 = vunpack.c.l.b16 %v2400
    %v2757 = vunpack.c.h.b16 %v2400
    %v2758 = vunpack.c.l.b16 %v2401
    %v2759 = vunpack.c.h.b16 %v2401
    %v2760 = vunpack.c.l.b16 %v2402
    %v2761 = vunpack.c.h.b16 %v2402
    %v2762 = vunpack.c.l.b16 %v2403
    %v2763 = vunpack.c.h.b16 %v2403
    %v2764 = vunpack.c.l.b16 %v2404
    %v2765 = vunpack.c.h.b16 %v2404
    %v2766 = vunpack.c.l.b16 %v2405
    %v2767 = vunpack.c.h.b16 %v2405
    %v2768 = vunpack.c.l.b16 %v2406
    %v2769 = vunpack.c.h.b16 %v2406
    %v2770 = vunpack.c.l.b16 %v2407
    %v2771 = vunpack.c.h.b16 %v2407
    %v2772 = vunpack.c.l.b16 %v2408
    %v2773 = vunpack.c.h.b16 %v2408
    %v2774 = vunpack.c.l.b16 %v2409
    %v2775 = vunpack.c.h.b16 %v2409
    %v2776 = vunpack.c.l.b16 %v2410
    %v2777 = vunpack.c.h.b16 %v2410
    %v2778 = vunpack.c.l.b16 %v2411
    %v2779 = vunpack.c.h.b16 %v2411
    %v2780 = vunpack.c.l.b16 %v2412
    %v2781 = vunpack.c.h.b16 %v2412
    %v2782 = vunpack.c.l.b16 %v2413
    %v2783 = vunpack.c.h.b16 %v2413
    %v2784 = vunpack.c.l.b16 %v2414
    %v2785 = vunpack.c.h.b16 %v2414
    %v2786 = vunpack.c.l.b16 %v2415
    %v2787 = vunpack.c.h.b16 %v2415
    %v2788 = vunpack.c.l.b16 %v2416
    %v2789 = vunpack.c.h.b16 %v2416
    %v2790 = vunpack.c.l.b16 %v2417
    %v2791 = vunpack.c.h.b16 %v2417
    %v2792 = vunpack.c.l.b16 %v2418
    %v2793 = vunpack.c.h.b16 %v2418
    %v2794 = vunpack.c.l.b16 %v2419
    %v2795 = vunpack.c.h.b16 %v2419
    %v2796 = vunpack.c.l.b16 %v2420
    %v2797 = vunpack.c.h.b16 %v2420
    %v2798 = vunpack.c.l.b16 %v2421
    %v2799 = vunpack.c.h.b16 %v2421
    %v2800 = vunpack.c.l.b16 %v2422
    %v2801 = vunpack.c.h.b16 %v2422
    %v2802 = vunpack.c.l.b16 %v2423
    %v2803 = vunpack.c.h.b16 %v2423
    %v2804 = vunpack.c.l.b16 %v2424
    %v2805 = vunpack.c.h.b16 %v2424
    %v2806 = vunpack.c.l.b16 %v2425
    %v2807 = vunpack.c.h.b16 %v2425
    %v2808 = vunpack.c.l.b16 %v2426
    %v2809 = vunpack.c.h.b16 %v2426
    %v2810 = vunpack.c.l.b16 %v2427
    %v2811 = vunpack.c.h.b16 %v2427
    %v2812 = vunpack.c.l.b16 %v2428
    %v2813 = vunpack.c.h.b16 %v2428
    %v2814 = vunpack.c.l.b16 %v2429
    %v2815 = vunpack.c.h.b16 %v2429
    %v2816 = vunpack.c.l.b16 %v2430
    %v2817 = vunpack.c.h.b16 %v2430
    %v2818 = vunpack.c.l.b16 %v2431
    %v2819 = vunpack.c.h.b16 %v2431
    %v2820 = vunpack.c.l.b16 %v2432
    %v2821 = vunpack.c.h.b16 %v2432
    %v2822 = vunpack.c.l.b16 %v2433
    %v2823 = vunpack.c.h.b16 %v2433
    %v2824 = vunpack.c.l.b16 %v2434
    %v2825 = vunpack.c.h.b16 %v2434
    %v2826 = vunpack.c.l.b16 %v2435
    %v2827 = vunpack.c.h.b16 %v2435
    %v2828 = vunpack.c.l.b16 %v2436
    %v2829 = vunpack.c.h.b16 %v2436
    %v2830 = vunpack.c.l.b16 %v2437
    %v2831 = vunpack.c.h.b16 %v2437
    %v2832 = vunpack.c.l.b16 %v2438
    %v2833 = vunpack.c.h.b16 %v2438
    %v2834 = vunpack.c.l.b16 %v2439
    %v2835 = vunpack.c.h.b16 %v2439
    %v2836 = vunpack.c.l.b16 %v2440
    %v2837 = vunpack.c.h.b16 %v2440
    %v2838 = vunpack.c.l.b16 %v2441
    %v2839 = vunpack.c.h.b16 %v2441
    %v2840 = vunpack.c.l.b16 %v2442
    %v2841 = vunpack.c.h.b16 %v2442
    %v2842 = vunpack.c.l.b16 %v2443
    %v2843 = vunpack.c.h.b16 %v2443
    %v2844 = vunpack.c.l.b16 %v2444
    %v2845 = vunpack.c.h.b16 %v2444
    %v2846 = vunpack.c.l.b16 %v2445
    %v2847 = vunpack.c.h.b16 %v2445
    %v2848 = vunpack.c.l.b16 %v2446
    %v2849 = vunpack.c.h.b16 %v2446
    %v2850 = vunpack.c.l.b16 %v2447
    %v2851 = vunpack.c.h.b16 %v2447
    %v2852 = vunpack.c.l.b16 %v2448
    %v2853 = vunpack.c.h.b16 %v2448
    %v2854 = vunpack.c.l.b16 %v2449
    %v2855 = vunpack.c.h.b16 %v2449
    %v2856 = vpack.c.b16 %v2604, %v2600
    %v2857 = vpack.c.b16 %v2605, %v2601
    %v2858 = vpack.c.b16 %v2606, %v2602
    %v2859 = vpack.c.b16 %v2607, %v2603
    %v2860 = vpack.c.b16 %v2612, %v2608
    %v2861 = vpack.c.b16 %v2613, %v2609
    %v2862 = vpack.c.b16 %v2614, %v2610
    %v2863 = vpack.c.b16 %v2615, %v2611
    %v2864 = vpack.c.b16 %v2620, %v2616
    %v2865 = vpack.c.b16 %v2621, %v2617
    %v2866 = vpack.c.b16 %v2622, %v2618
    %v2867 = vpack.c.b16 %v2623, %v2619
    %v2868 = vpack.c.b16 %v2628, %v2624
    %v2869 = vpack.c.b16 %v2629, %v2625
    %v2870 = vpack.c.b16 %v2630, %v2626
    %v2871 = vpack.c.b16 %v2631, %v2627
    %v2872 = vpack.c.b16 %v2636, %v2632
    %v2873 = vpack.c.b16 %v2637, %v2633
    %v2874 = vpack.c.b16 %v2638, %v2634
    %v2875 = vpack.c.b16 %v2639, %v2635
    %v2876 = vpack.c.b16 %v2644, %v2640
    %v2877 = vpack.c.b16 %v2645, %v2641
    %v2878 = vpack.c.b16 %v2646, %v2642
    %v2879 = vpack.c.b16 %v2647, %v2643
    %v2880 = vpack.c.b16 %v2652, %v2648
    %v2881 = vpack.c.b16 %v2653, %v2649
    %v2882 = vpack.c.b16 %v2654, %v2650
    %v2883 = vpack.c.b16 %v2655, %v2651
    %v2884 = vpack.c.b16 %v2660, %v2656
    %v2885 = vpack.c.b16 %v2661, %v2657
    %v2886 = vpack.c.b16 %v2662, %v2658
    %v2887 = vpack.c.b16 %v2663, %v2659
    %v2888 = vpack.c.b16 %v2668, %v2664
    %v2889 = vpack.c.b16 %v2669, %v2665
    %v2890 = vpack.c.b16 %v2670, %v2666
    %v2891 = vpack.c.b16 %v2671, %v2667
    %v2892 = vpack.c.b16 %v2676, %v2672
    %v2893 = vpack.c.b16 %v2677, %v2673
    %v2894 = vpack.c.b16 %v2678, %v2674
    %v2895 = vpack.c.b16 %v2679, %v2675
    %v2896 = vpack.c.b16 %v2684, %v2680
    %v2897 = vpack.c.b16 %v2685, %v2681
    %v2898 = vpack.c.b16 %v2686, %v2682
    %v2899 = vpack.c.b16 %v2687, %v2683
    %v2900 = vpack.c.b16 %v2692, %v2688
    %v2901 = vpack.c.b16 %v2693, %v2689
    %v2902 = vpack.c.b16 %v2694, %v2690
    %v2903 = vpack.c.b16 %v2695, %v2691
    %v2904 = vpack.c.b16 %v2700, %v2696
    %v2905 = vpack.c.b16 %v2701, %v2697
    %v2906 = vpack.c.b16 %v2702, %v2698
    %v2907 = vpack.c.b16 %v2703, %v2699
    %v2908 = vpack.c.b16 %v2708, %v2704
    %v2909 = vpack.c.b16 %v2709, %v2705
    %v2910 = vpack.c.b16 %v2710, %v2706
    %v2911 = vpack.c.b16 %v2711, %v2707
    %v2912 = vpack.c.b16 %v2716, %v2712
    %v2913 = vpack.c.b16 %v2717, %v2713
    %v2914 = vpack.c.b16 %v2718, %v2714
    %v2915 = vpack.c.b16 %v2719, %v2715
    %v2916 = vpack.c.b16 %v2724, %v2720
    %v2917 = vpack.c.b16 %v2725, %v2721
    %v2918 = vpack.c.b16 %v2726, %v2722
    %v2919 = vpack.c.b16 %v2727, %v2723
    %v2920 = vpack.c.b16 %v2732, %v2728
    %v2921 = vpack.c.b16 %v2733, %v2729
    %v2922 = vpack.c.b16 %v2734, %v2730
    %v2923 = vpack.c.b16 %v2735, %v2731
    %v2924 = vpack.c.b16 %v2740, %v2736
    %v2925 = vpack.c.b16 %v2741, %v2737
    %v2926 = vpack.c.b16 %v2742, %v2738
    %v2927 = vpack.c.b16 %v2743, %v2739
    %v2928 = vpack.c.b16 %v2748, %v2744
    %v2929 = vpack.c.b16 %v2749, %v2745
    %v2930 = vpack.c.b16 %v2750, %v2746
    %v2931 = vpack.c.b16 %v2751, %v2747
    %v2932 = vpack.c.b16 %v2756, %v2752
    %v2933 = vpack.c.b16 %v2757, %v2753
    %v2934 = vpack.c.b16 %v2758, %v2754
    %v2935 = vpack.c.b16 %v2759, %v2755
    %v2936 = vpack.c.b16 %v2764, %v2760
    %v2937 = vpack.c.b16 %v2765, %v2761
    %v2938 = vpack.c.b16 %v2766, %v2762
    %v2939 = vpack.c.b16 %v2767, %v2763
    %v2940 = vpack.c.b16 %v2772, %v2768
    %v2941 = vpack.c.b16 %v2773, %v2769
    %v2942 = vpack.c.b16 %v2774, %v2770
    %v2943 = vpack.c.b16 %v2775, %v2771
    %v2944 = vpack.c.b16 %v2780, %v2776
    %v2945 = vpack.c.b16 %v2781, %v2777
    %v2946 = vpack.c.b16 %v2782, %v2778
    %v2947 = vpack.c.b16 %v2783, %v2779
    %v2948 = vpack.c.b16 %v2788, %v2784
    %v2949 = vpack.c.b16 %v2789, %v2785
    %v2950 = vpack.c.b16 %v2790, %v2786
    %v2951 = vpack.c.b16 %v2791, %v2787
    %v2952 = vpack.c.b16 %v2796, %v2792
    %v2953 = vpack.c.b16 %v2797, %v2793
    %v2954 = vpack.c.b16 %v2798, %v2794
    %v2955 = vpack.c.b16 %v2799, %v2795
    %v2956 = vpack.c.b16 %v2804, %v2800
    %v2957 = vpack.c.b16 %v2805, %v2801
    %v2958 = vpack.c.b16 %v2806, %v2802
    %v2959 = vpack.c.b16 %v2807, %v2803
    %v2960 = vpack.c.b16 %v2812, %v2808
    %v2961 = vpack.c.b16 %v2813, %v2809
    %v2962 = vpack.c.b16 %v2814, %v2810
    %v2963 = vpack.c.b16 %v2815, %v2811
    %v2964 = vpack.c.b16 %v2820, %v2816
    %v2965 = vpack.c.b16 %v2821, %v2817
    %v2966 = vpack.c.b16 %v2822, %v2818
    %v2967 = vpack.c.b16 %v2823, %v2819
    %v2968 = vpack.c.b16 %v2828, %v2824
    %v2969 = vpack.c.b16 %v2829, %v2825
    %v2970 = vpack.c.b16 %v2830, %v2826
    %v2971 = vpack.c.b16 %v2831, %v2827
    %v2972 = vpack.c.b16 %v2836, %v2832
    %v2973 = vpack.c.b16 %v2837, %v2833
    %v2974 = vpack.c.b16 %v2838, %v2834
    %v2975 = vpack.c.b16 %v2839, %v2835
    %v2976 = vpack.c.b16 %v2844, %v2840
    %v2977 = vpack.c.b16 %v2845, %v2841
    %v2978 = vpack.c.b16 %v2846, %v2842
    %v2979 = vpack.c.b16 %v2847, %v2843
    %v2980 = vpack.c.b16 %v2852, %v2848
    %v2981 = vpack.c.b16 %v2853, %v2849
    %v2982 = vpack.c.b16 %v2854, %v2850
    %v2983 = vpack.c.b16 %v2855, %v2851
    %3112 = vmatprep.subr.bf16.mxu0 %v2885
    %3113 = vmatpush1.bf16.msra.mxu0 %v2884
    %3114 = vmatprep.subr.bf16.mxu0 %v2881
    %3115 = vmatpush1.bf16.msra.mxu0 %v2880
    %3116 = vmatprep.subr.bf16.mxu0 %v2877
    %3117 = vmatpush1.bf16.msra.mxu0 %v2876
    %3118 = vmatprep.subr.bf16.mxu0 %v2873
    %3119 = vmatpush1.bf16.msra.mxu0 %v2872
    %3120 = vmatprep.subr.bf16.mxu0 %v2869
    %3121 = vmatpush1.bf16.msra.mxu0 %v2868
    %3122 = vmatprep.subr.bf16.mxu0 %v2865
    %3123 = vmatpush1.bf16.msra.mxu0 %v2864
    %3124 = vmatprep.subr.bf16.mxu0 %v2861
    %3125 = vmatpush1.bf16.msra.mxu0 %v2860
    %3126 = vmatprep.subr.bf16.mxu0 %v2857
    %3127 = vmatpush1.bf16.msra.mxu0 %v2856
    %3128 = vmatprep.subr.bf16.mxu0 %v2917
    %3129 = vmatpush2.bf16.msra.mxu0 %v2916
    %3130 = vmatprep.subr.bf16.mxu0 %v2913
    %3131 = vmatpush2.bf16.msra.mxu0 %v2912
    %3132 = vmatprep.subr.bf16.mxu0 %v2909
    %3133 = vmatpush2.bf16.msra.mxu0 %v2908
    %3134 = vmatprep.subr.bf16.mxu0 %v2905
    %3135 = vmatpush2.bf16.msra.mxu0 %v2904
    %3136 = vmatprep.subr.bf16.mxu0 %v2901
    %3137 = vmatpush2.bf16.msra.mxu0 %v2900
    %3138 = vmatprep.subr.bf16.mxu0 %v2897
    %3139 = vmatpush2.bf16.msra.mxu0 %v2896
    %3140 = vmatprep.subr.bf16.mxu0 %v2893
    %3141 = vmatpush2.bf16.msra.mxu0 %v2892
    %3142 = vmatprep.subr.bf16.mxu0 %v2889
    %3143 = vmatpush2.bf16.msra.mxu0 %v2888
    %3144 = vmatprep.mubr.bf16.mxu0 %v2319
    %3145 = vmatmul.mubr.bf16.gmra.mxu0 %v2318
    %v3146 = vpop.f32.mrf.mxu0
    %v3147 = vadd.f32 %v2455, %v3146
    %v3148 = vpop.f32.mrf.mxu0
    %v3149 = vadd.f32 %v2459, %v3148
    %v3150 = vpop.f32.mrf.mxu0
    %v3151 = vadd.f32 %v2455, %v3150
    %v3152 = vpop.f32.mrf.mxu0
    %v3153 = vadd.f32 %v2459, %v3152
    %3154 = vdwg.mxu0
    %3155 = vmatprep.subr.bf16.mxu0 %v2949
    %3156 = vmatpush1.bf16.msra.mxu0 %v2948
    %3157 = vmatprep.subr.bf16.mxu0 %v2945
    %3158 = vmatpush1.bf16.msra.mxu0 %v2944
    %3159 = vmatprep.subr.bf16.mxu0 %v2941
    %3160 = vmatpush1.bf16.msra.mxu0 %v2940
    %3161 = vmatprep.subr.bf16.mxu0 %v2937
    %3162 = vmatpush1.bf16.msra.mxu0 %v2936
    %3163 = vmatprep.subr.bf16.mxu0 %v2933
    %3164 = vmatpush1.bf16.msra.mxu0 %v2932
    %3165 = vmatprep.subr.bf16.mxu0 %v2929
    %3166 = vmatpush1.bf16.msra.mxu0 %v2928
    %3167 = vmatprep.subr.bf16.mxu0 %v2925
    %3168 = vmatpush1.bf16.msra.mxu0 %v2924
    %3169 = vmatprep.subr.bf16.mxu0 %v2921
    %3170 = vmatpush1.bf16.msra.mxu0 %v2920
    %3171 = vmatprep.subr.bf16.mxu0 %v2981
    %3172 = vmatpush2.bf16.msra.mxu0 %v2980
    %3173 = vmatprep.subr.bf16.mxu0 %v2977
    %3174 = vmatpush2.bf16.msra.mxu0 %v2976
    %3175 = vmatprep.subr.bf16.mxu0 %v2973
    %3176 = vmatpush2.bf16.msra.mxu0 %v2972
    %3177 = vmatprep.subr.bf16.mxu0 %v2969
    %3178 = vmatpush2.bf16.msra.mxu0 %v2968
    %3179 = vmatprep.subr.bf16.mxu0 %v2965
    %3180 = vmatpush2.bf16.msra.mxu0 %v2964
    %3181 = vmatprep.subr.bf16.mxu0 %v2961
    %3182 = vmatpush2.bf16.msra.mxu0 %v2960
    %3183 = vmatprep.subr.bf16.mxu0 %v2957
    %3184 = vmatpush2.bf16.msra.mxu0 %v2956
    %3185 = vmatprep.subr.bf16.mxu0 %v2953
    %3186 = vmatpush2.bf16.msra.mxu0 %v2952
    %3187 = vmatprep.mubr.bf16.mxu0 %v2321
    %3188 = vmatmul.mubr.bf16.gmra.mxu0 %v2320
    %v3189 = vpop.f32.mrf.mxu0
    %v3190 = vadd.f32 %v3147, %v3189
    %v3191 = vpop.f32.mrf.mxu0
    %v3192 = vadd.f32 %v3149, %v3191
    %v3193 = vpop.f32.mrf.mxu0
    %v3194 = vadd.f32 %v3151, %v3193
    %v3195 = vpop.f32.mrf.mxu0
    %v3196 = vadd.f32 %v3153, %v3195
    %3197 = vdwg.mxu0
    %3198 = vmatprep.subr.bf16.mxu0 %v2887
    %3199 = vmatpush1.bf16.msra.mxu0 %v2886
    %3200 = vmatprep.subr.bf16.mxu0 %v2883
    %3201 = vmatpush1.bf16.msra.mxu0 %v2882
    %3202 = vmatprep.subr.bf16.mxu0 %v2879
    %3203 = vmatpush1.bf16.msra.mxu0 %v2878
    %3204 = vmatprep.subr.bf16.mxu0 %v2875
    %3205 = vmatpush1.bf16.msra.mxu0 %v2874
    %3206 = vmatprep.subr.bf16.mxu0 %v2871
    %3207 = vmatpush1.bf16.msra.mxu0 %v2870
    %3208 = vmatprep.subr.bf16.mxu0 %v2867
    %3209 = vmatpush1.bf16.msra.mxu0 %v2866
    %3210 = vmatprep.subr.bf16.mxu0 %v2863
    %3211 = vmatpush1.bf16.msra.mxu0 %v2862
    %3212 = vmatprep.subr.bf16.mxu0 %v2859
    %3213 = vmatpush1.bf16.msra.mxu0 %v2858
    %3214 = vmatprep.subr.bf16.mxu0 %v2919
    %3215 = vmatpush2.bf16.msra.mxu0 %v2918
    %3216 = vmatprep.subr.bf16.mxu0 %v2915
    %3217 = vmatpush2.bf16.msra.mxu0 %v2914
    %3218 = vmatprep.subr.bf16.mxu0 %v2911
    %3219 = vmatpush2.bf16.msra.mxu0 %v2910
    %3220 = vmatprep.subr.bf16.mxu0 %v2907
    %3221 = vmatpush2.bf16.msra.mxu0 %v2906
    %3222 = vmatprep.subr.bf16.mxu0 %v2903
    %3223 = vmatpush2.bf16.msra.mxu0 %v2902
    %3224 = vmatprep.subr.bf16.mxu0 %v2899
    %3225 = vmatpush2.bf16.msra.mxu0 %v2898
    %3226 = vmatprep.subr.bf16.mxu0 %v2895
    %3227 = vmatpush2.bf16.msra.mxu0 %v2894
    %3228 = vmatprep.subr.bf16.mxu0 %v2891
    %3229 = vmatpush2.bf16.msra.mxu0 %v2890
    %3230 = vmatprep.mubr.bf16.mxu0 %v2319
    %3231 = vmatmul.mubr.bf16.gmra.mxu0 %v2318
    %v3232 = vpop.f32.mrf.mxu0
    %v3233 = vadd.f32 %v2463, %v3232
    %v3234 = vpop.f32.mrf.mxu0
    %v3235 = vadd.f32 %v2467, %v3234
    %v3236 = vpop.f32.mrf.mxu0
    %v3237 = vadd.f32 %v2463, %v3236
    %v3238 = vpop.f32.mrf.mxu0
    %v3239 = vadd.f32 %v2467, %v3238
    %3240 = vdwg.mxu0
    %3241 = vmatprep.subr.bf16.mxu0 %v2951
    %3242 = vmatpush1.bf16.msra.mxu0 %v2950
    %3243 = vmatprep.subr.bf16.mxu0 %v2947
    %3244 = vmatpush1.bf16.msra.mxu0 %v2946
    %3245 = vmatprep.subr.bf16.mxu0 %v2943
    %3246 = vmatpush1.bf16.msra.mxu0 %v2942
    %3247 = vmatprep.subr.bf16.mxu0 %v2939
    %3248 = vmatpush1.bf16.msra.mxu0 %v2938
    %3249 = vmatprep.subr.bf16.mxu0 %v2935
    %3250 = vmatpush1.bf16.msra.mxu0 %v2934
    %3251 = vmatprep.subr.bf16.mxu0 %v2931
    %3252 = vmatpush1.bf16.msra.mxu0 %v2930
    %3253 = vmatprep.subr.bf16.mxu0 %v2927
    %3254 = vmatpush1.bf16.msra.mxu0 %v2926
    %3255 = vmatprep.subr.bf16.mxu0 %v2923
    %3256 = vmatpush1.bf16.msra.mxu0 %v2922
    %3257 = vmatprep.subr.bf16.mxu0 %v2983
    %3258 = vmatpush2.bf16.msra.mxu0 %v2982
    %3259 = vmatprep.subr.bf16.mxu0 %v2979
    %3260 = vmatpush2.bf16.msra.mxu0 %v2978
    %3261 = vmatprep.subr.bf16.mxu0 %v2975
    %3262 = vmatpush2.bf16.msra.mxu0 %v2974
    %3263 = vmatprep.subr.bf16.mxu0 %v2971
    %3264 = vmatpush2.bf16.msra.mxu0 %v2970
    %3265 = vmatprep.subr.bf16.mxu0 %v2967
    %3266 = vmatpush2.bf16.msra.mxu0 %v2966
    %3267 = vmatprep.subr.bf16.mxu0 %v2963
    %3268 = vmatpush2.bf16.msra.mxu0 %v2962
    %3269 = vmatprep.subr.bf16.mxu0 %v2959
    %3270 = vmatpush2.bf16.msra.mxu0 %v2958
    %3271 = vmatprep.subr.bf16.mxu0 %v2955
    %3272 = vmatpush2.bf16.msra.mxu0 %v2954
    %3273 = vmatprep.mubr.bf16.mxu0 %v2321
    %3274 = vmatmul.mubr.bf16.gmra.mxu0 %v2320
    %v3275 = vpop.f32.mrf.mxu0
    %v3276 = vadd.f32 %v3233, %v3275
    %v3277 = vpop.f32.mrf.mxu0
    %v3278 = vadd.f32 %v3235, %v3277
    %v3279 = vpop.f32.mrf.mxu0
    %v3280 = vadd.f32 %v3237, %v3279
    %v3281 = vpop.f32.mrf.mxu0
    %v3282 = vadd.f32 %v3239, %v3281
    %3283 = vdwg.mxu0
    %v3284 = vmax.f32 %v3190, 0.0
    %v3285 = vmax.f32 %v3192, 0.0
    %v3286 = vmax.f32 %v3276, 0.0
    %v3287 = vmax.f32 %v3278, 0.0
    %v3288 = vmax.f32 %v3194, 0.0
    %v3289 = vmax.f32 %v3196, 0.0
    %v3290 = vmax.f32 %v3280, 0.0
    %v3291 = vmax.f32 %v3282, 0.0
    %v3292 = vpack.c.bf16 %v3288, %v3284
    %v3293 = vpack.c.bf16 %v3289, %v3285
    %v3294 = vpack.c.bf16 %v3290, %v3286
    %v3295 = vpack.c.bf16 %v3291, %v3287
    %v3296 = vld [vmem:[#allocation9] sm:$0xff]
    %v3297 = vld [vmem:[#allocation9 + $0x8] sm:$0xff]
    %v3298 = vld [vmem:[#allocation9 + $0x10] sm:$0xff]
    %v3299 = vld [vmem:[#allocation9 + $0x18] sm:$0xff]
    %v3300 = vld [vmem:[#allocation9 + $0x20] sm:$0xff]
    %v3301 = vld [vmem:[#allocation9 + $0x28] sm:$0xff]
    %v3302 = vld [vmem:[#allocation9 + $0x30] sm:$0xff]
    %v3303 = vld [vmem:[#allocation9 + $0x38] sm:$0xff]
    %v3304 = vld [vmem:[#allocation9 + $0x40] sm:$0xff]
    %v3305 = vld [vmem:[#allocation9 + $0x48] sm:$0xff]
    %v3306 = vld [vmem:[#allocation9 + $0x50] sm:$0xff]
    %v3307 = vld [vmem:[#allocation9 + $0x58] sm:$0xff]
    %v3308 = vld [vmem:[#allocation9 + $0x60] sm:$0xff]
    %v3309 = vld [vmem:[#allocation9 + $0x68] sm:$0xff]
    %v3310 = vld [vmem:[#allocation9 + $0x70] sm:$0xff]
    %v3311 = vld [vmem:[#allocation9 + $0x78] sm:$0xff]
    %v3312 = vld [vmem:[#allocation9 + $0x80] sm:$0xff]
    %v3313 = vld [vmem:[#allocation9 + $0x88] sm:$0xff]
    %v3314 = vld [vmem:[#allocation9 + $0x90] sm:$0xff]
    %v3315 = vld [vmem:[#allocation9 + $0x98] sm:$0xff]
    %v3316 = vld [vmem:[#allocation9 + $0xa0] sm:$0xff]
    %v3317 = vld [vmem:[#allocation9 + $0xa8] sm:$0xff]
    %v3318 = vld [vmem:[#allocation9 + $0xb0] sm:$0xff]
    %v3319 = vld [vmem:[#allocation9 + $0xb8] sm:$0xff]
    %v3320 = vld [vmem:[#allocation9 + $0xc0] sm:$0xff]
    %v3321 = vld [vmem:[#allocation9 + $0xc8] sm:$0xff]
    %v3322 = vld [vmem:[#allocation9 + $0xd0] sm:$0xff]
    %v3323 = vld [vmem:[#allocation9 + $0xd8] sm:$0xff]
    %v3324 = vld [vmem:[#allocation9 + $0xe0] sm:$0xff]
    %v3325 = vld [vmem:[#allocation9 + $0xe8] sm:$0xff]
    %v3326 = vld [vmem:[#allocation9 + $0xf0] sm:$0xff]
    %v3327 = vld [vmem:[#allocation9 + $0xf8] sm:$0xff]
    %v3328 = vld [vmem:[#allocation9 + $0x100] sm:$0xff]
    %v3329 = vld [vmem:[#allocation9 + $0x108] sm:$0xff]
    %v3330 = vld [vmem:[#allocation9 + $0x110] sm:$0xff]
    %v3331 = vld [vmem:[#allocation9 + $0x118] sm:$0xff]
    %v3332 = vld [vmem:[#allocation9 + $0x120] sm:$0xff]
    %v3333 = vld [vmem:[#allocation9 + $0x128] sm:$0xff]
    %v3334 = vld [vmem:[#allocation9 + $0x130] sm:$0xff]
    %v3335 = vld [vmem:[#allocation9 + $0x138] sm:$0xff]
    %v3336 = vld [vmem:[#allocation9 + $0x140] sm:$0xff]
    %v3337 = vld [vmem:[#allocation9 + $0x148] sm:$0xff]
    %v3338 = vld [vmem:[#allocation9 + $0x150] sm:$0xff]
    %v3339 = vld [vmem:[#allocation9 + $0x158] sm:$0xff]
    %v3340 = vld [vmem:[#allocation9 + $0x160] sm:$0xff]
    %v3341 = vld [vmem:[#allocation9 + $0x168] sm:$0xff]
    %v3342 = vld [vmem:[#allocation9 + $0x170] sm:$0xff]
    %v3343 = vld [vmem:[#allocation9 + $0x178] sm:$0xff]
    %v3344 = vld [vmem:[#allocation9 + $0x180] sm:$0xff]
    %v3345 = vld [vmem:[#allocation9 + $0x188] sm:$0xff]
    %v3346 = vld [vmem:[#allocation9 + $0x190] sm:$0xff]
    %v3347 = vld [vmem:[#allocation9 + $0x198] sm:$0xff]
    %v3348 = vld [vmem:[#allocation9 + $0x1a0] sm:$0xff]
    %v3349 = vld [vmem:[#allocation9 + $0x1a8] sm:$0xff]
    %v3350 = vld [vmem:[#allocation9 + $0x1b0] sm:$0xff]
    %v3351 = vld [vmem:[#allocation9 + $0x1b8] sm:$0xff]
    %v3352 = vld [vmem:[#allocation9 + $0x1c0] sm:$0xff]
    %v3353 = vld [vmem:[#allocation9 + $0x1c8] sm:$0xff]
    %v3354 = vld [vmem:[#allocation9 + $0x1d0] sm:$0xff]
    %v3355 = vld [vmem:[#allocation9 + $0x1d8] sm:$0xff]
    %v3356 = vld [vmem:[#allocation9 + $0x1e0] sm:$0xff]
    %v3357 = vld [vmem:[#allocation9 + $0x1e8] sm:$0xff]
    %v3358 = vld [vmem:[#allocation9 + $0x1f0] sm:$0xff]
    %v3359 = vld [vmem:[#allocation9 + $0x1f8] sm:$0xff]
    %v3360 = vld [vmem:[#allocation9 + $0x200] sm:$0xff]
    %v3361 = vld [vmem:[#allocation9 + $0x208] sm:$0xff]
    %v3362 = vld [vmem:[#allocation9 + $0x210] sm:$0xff]
    %v3363 = vld [vmem:[#allocation9 + $0x218] sm:$0xff]
    %v3364 = vld [vmem:[#allocation9 + $0x220] sm:$0xff]
    %v3365 = vld [vmem:[#allocation9 + $0x228] sm:$0xff]
    %v3366 = vld [vmem:[#allocation9 + $0x230] sm:$0xff]
    %v3367 = vld [vmem:[#allocation9 + $0x238] sm:$0xff]
    %v3368 = vld [vmem:[#allocation9 + $0x240] sm:$0xff]
    %v3369 = vld [vmem:[#allocation9 + $0x248] sm:$0xff]
    %v3370 = vld [vmem:[#allocation9 + $0x250] sm:$0xff]
    %v3371 = vld [vmem:[#allocation9 + $0x258] sm:$0xff]
    %v3372 = vld [vmem:[#allocation9 + $0x260] sm:$0xff]
    %v3373 = vld [vmem:[#allocation9 + $0x268] sm:$0xff]
    %v3374 = vld [vmem:[#allocation9 + $0x270] sm:$0xff]
    %v3375 = vld [vmem:[#allocation9 + $0x278] sm:$0xff]
    %v3376 = vld [vmem:[#allocation9 + $0x280] sm:$0xff]
    %v3377 = vld [vmem:[#allocation9 + $0x288] sm:$0xff]
    %v3378 = vld [vmem:[#allocation9 + $0x290] sm:$0xff]
    %v3379 = vld [vmem:[#allocation9 + $0x298] sm:$0xff]
    %v3380 = vld [vmem:[#allocation9 + $0x2a0] sm:$0xff]
    %v3381 = vld [vmem:[#allocation9 + $0x2a8] sm:$0xff]
    %v3382 = vld [vmem:[#allocation9 + $0x2b0] sm:$0xff]
    %v3383 = vld [vmem:[#allocation9 + $0x2b8] sm:$0xff]
    %v3384 = vld [vmem:[#allocation9 + $0x2c0] sm:$0xff]
    %v3385 = vld [vmem:[#allocation9 + $0x2c8] sm:$0xff]
    %v3386 = vld [vmem:[#allocation9 + $0x2d0] sm:$0xff]
    %v3387 = vld [vmem:[#allocation9 + $0x2d8] sm:$0xff]
    %v3388 = vld [vmem:[#allocation9 + $0x2e0] sm:$0xff]
    %v3389 = vld [vmem:[#allocation9 + $0x2e8] sm:$0xff]
    %v3390 = vld [vmem:[#allocation9 + $0x2f0] sm:$0xff]
    %v3391 = vld [vmem:[#allocation9 + $0x2f8] sm:$0xff]
    %v3392 = vld [vmem:[#allocation9 + $0x300] sm:$0xff]
    %v3393 = vld [vmem:[#allocation9 + $0x308] sm:$0xff]
    %v3394 = vld [vmem:[#allocation9 + $0x310] sm:$0xff]
    %v3395 = vld [vmem:[#allocation9 + $0x318] sm:$0xff]
    %v3396 = vld [vmem:[#allocation9 + $0x320] sm:$0xff]
    %v3397 = vld [vmem:[#allocation9 + $0x328] sm:$0xff]
    %v3398 = vld [vmem:[#allocation9 + $0x330] sm:$0xff]
    %v3399 = vld [vmem:[#allocation9 + $0x338] sm:$0xff]
    %v3400 = vld [vmem:[#allocation9 + $0x340] sm:$0xff]
    %v3401 = vld [vmem:[#allocation9 + $0x348] sm:$0xff]
    %v3402 = vld [vmem:[#allocation9 + $0x350] sm:$0xff]
    %v3403 = vld [vmem:[#allocation9 + $0x358] sm:$0xff]
    %v3404 = vld [vmem:[#allocation9 + $0x360] sm:$0xff]
    %v3405 = vld [vmem:[#allocation9 + $0x368] sm:$0xff]
    %v3406 = vld [vmem:[#allocation9 + $0x370] sm:$0xff]
    %v3407 = vld [vmem:[#allocation9 + $0x378] sm:$0xff]
    %v3408 = vld [vmem:[#allocation9 + $0x380] sm:$0xff]
    %v3409 = vld [vmem:[#allocation9 + $0x388] sm:$0xff]
    %v3410 = vld [vmem:[#allocation9 + $0x390] sm:$0xff]
    %v3411 = vld [vmem:[#allocation9 + $0x398] sm:$0xff]
    %v3412 = vld [vmem:[#allocation9 + $0x3a0] sm:$0xff]
    %v3413 = vld [vmem:[#allocation9 + $0x3a8] sm:$0xff]
    %v3414 = vld [vmem:[#allocation9 + $0x3b0] sm:$0xff]
    %v3415 = vld [vmem:[#allocation9 + $0x3b8] sm:$0xff]
    %v3416 = vld [vmem:[#allocation9 + $0x3c0] sm:$0xff]
    %v3417 = vld [vmem:[#allocation9 + $0x3c8] sm:$0xff]
    %v3418 = vld [vmem:[#allocation9 + $0x3d0] sm:$0xff]
    %v3419 = vld [vmem:[#allocation9 + $0x3d8] sm:$0xff]
    %v3420 = vld [vmem:[#allocation9 + $0x3e0] sm:$0xff]
    %v3421 = vld [vmem:[#allocation9 + $0x3e8] sm:$0xff]
    %v3422 = vld [vmem:[#allocation9 + $0x3f0] sm:$0xff]
    %v3423 = vld [vmem:[#allocation9 + $0x3f8] sm:$0xff]
    %v3424 = vld [vmem:[#allocation9 + $0x400] sm:$0xff]
    %v3425 = vld [vmem:[#allocation9 + $0x408] sm:$0xff]
    %v3426 = vld [vmem:[#allocation9 + $0x410] sm:$0xff]
    %v3427 = vld [vmem:[#allocation9 + $0x418] sm:$0xff]
    %v3428 = vld [vmem:[#allocation9 + $0x420] sm:$0xff]
    %v3429 = vld [vmem:[#allocation9 + $0x428] sm:$0xff]
    %v3430 = vld [vmem:[#allocation9 + $0x430] sm:$0xff]
    %v3431 = vld [vmem:[#allocation9 + $0x438] sm:$0xff]
    %v3432 = vld [vmem:[#allocation9 + $0x440] sm:$0xff]
    %v3433 = vld [vmem:[#allocation9 + $0x448] sm:$0xff]
    %v3434 = vld [vmem:[#allocation9 + $0x450] sm:$0xff]
    %v3435 = vld [vmem:[#allocation9 + $0x458] sm:$0xff]
    %v3436 = vld [vmem:[#allocation9 + $0x460] sm:$0xff]
    %v3437 = vld [vmem:[#allocation9 + $0x468] sm:$0xff]
    %v3438 = vld [vmem:[#allocation9 + $0x470] sm:$0xff]
    %v3439 = vld [vmem:[#allocation9 + $0x478] sm:$0xff]
    %v3440 = vld [vmem:[#allocation9 + $0x480] sm:$0xff]
    %v3441 = vld [vmem:[#allocation9 + $0x488] sm:$0xff]
    %v3442 = vld [vmem:[#allocation9 + $0x490] sm:$0xff]
    %v3443 = vld [vmem:[#allocation9 + $0x498] sm:$0xff]
    %v3444 = vld [vmem:[#allocation9 + $0x4a0] sm:$0xff]
    %v3445 = vld [vmem:[#allocation9 + $0x4a8] sm:$0xff]
    %v3446 = vld [vmem:[#allocation9 + $0x4b0] sm:$0xff]
    %v3447 = vld [vmem:[#allocation9 + $0x4b8] sm:$0xff]
    %v3448 = vld [vmem:[#allocation9 + $0x4c0] sm:$0xff]
    %v3449 = vld [vmem:[#allocation9 + $0x4c8] sm:$0xff]
    %v3450 = vld [vmem:[#allocation9 + $0x4d0] sm:$0xff]
    %v3451 = vld [vmem:[#allocation9 + $0x4d8] sm:$0xff]
    %v3452 = vld [vmem:[#allocation9 + $0x4e0] sm:$0xff]
    %v3453 = vld [vmem:[#allocation9 + $0x4e8] sm:$0xff]
    %v3454 = vld [vmem:[#allocation9 + $0x4f0] sm:$0xff]
    %v3455 = vld [vmem:[#allocation9 + $0x4f8] sm:$0xff]
    %v3456 = vld [vmem:[#allocation9 + $0x500] sm:$0xff]
    %v3457 = vld [vmem:[#allocation9 + $0x508] sm:$0xff]
    %v3458 = vld [vmem:[#allocation9 + $0x510] sm:$0xff]
    %v3459 = vld [vmem:[#allocation9 + $0x518] sm:$0xff]
    %v3460 = vld [vmem:[#allocation9 + $0x520] sm:$0xff]
    %v3461 = vld [vmem:[#allocation9 + $0x528] sm:$0xff]
    %v3462 = vld [vmem:[#allocation9 + $0x530] sm:$0xff]
    %v3463 = vld [vmem:[#allocation9 + $0x538] sm:$0xff]
    %v3464 = vld [vmem:[#allocation9 + $0x540] sm:$0xff]
    %v3465 = vld [vmem:[#allocation9 + $0x548] sm:$0xff]
    %v3466 = vld [vmem:[#allocation9 + $0x550] sm:$0xff]
    %v3467 = vld [vmem:[#allocation9 + $0x558] sm:$0xff]
    %v3468 = vld [vmem:[#allocation9 + $0x560] sm:$0xff]
    %v3469 = vld [vmem:[#allocation9 + $0x568] sm:$0xff]
    %v3470 = vld [vmem:[#allocation9 + $0x570] sm:$0xff]
    %v3471 = vld [vmem:[#allocation9 + $0x578] sm:$0xff]
    %v3472 = vld [vmem:[#allocation9 + $0x580] sm:$0xff]
    %v3473 = vld [vmem:[#allocation9 + $0x588] sm:$0xff]
    %v3474 = vld [vmem:[#allocation9 + $0x590] sm:$0xff]
    %v3475 = vld [vmem:[#allocation9 + $0x598] sm:$0xff]
    %v3476 = vld [vmem:[#allocation9 + $0x5a0] sm:$0xff]
    %v3477 = vld [vmem:[#allocation9 + $0x5a8] sm:$0xff]
    %v3478 = vld [vmem:[#allocation9 + $0x5b0] sm:$0xff]
    %v3479 = vld [vmem:[#allocation9 + $0x5b8] sm:$0xff]
    %v3480 = vld [vmem:[#allocation9 + $0x5c0] sm:$0xff]
    %v3481 = vld [vmem:[#allocation9 + $0x5c8] sm:$0xff]
    %v3482 = vld [vmem:[#allocation9 + $0x5d0] sm:$0xff]
    %v3483 = vld [vmem:[#allocation9 + $0x5d8] sm:$0xff]
    %v3484 = vld [vmem:[#allocation9 + $0x5e0] sm:$0xff]
    %v3485 = vld [vmem:[#allocation9 + $0x5e8] sm:$0xff]
    %v3486 = vld [vmem:[#allocation9 + $0x5f0] sm:$0xff]
    %v3487 = vld [vmem:[#allocation9 + $0x5f8] sm:$0xff]
    %v3488 = vld [vmem:[#allocation9 + $0x600] sm:$0xff]
    %v3489 = vld [vmem:[#allocation9 + $0x608] sm:$0xff]
    %v3490 = vld [vmem:[#allocation9 + $0x610] sm:$0xff]
    %v3491 = vld [vmem:[#allocation9 + $0x618] sm:$0xff]
    %v3492 = vld [vmem:[#allocation9 + $0x620] sm:$0xff]
    %v3493 = vld [vmem:[#allocation9 + $0x628] sm:$0xff]
    %v3494 = vld [vmem:[#allocation9 + $0x630] sm:$0xff]
    %v3495 = vld [vmem:[#allocation9 + $0x638] sm:$0xff]
    %v3496 = vld [vmem:[#allocation9 + $0x640] sm:$0xff]
    %v3497 = vld [vmem:[#allocation9 + $0x648] sm:$0xff]
    %v3498 = vld [vmem:[#allocation9 + $0x650] sm:$0xff]
    %v3499 = vld [vmem:[#allocation9 + $0x658] sm:$0xff]
    %v3500 = vld [vmem:[#allocation9 + $0x660] sm:$0xff]
    %v3501 = vld [vmem:[#allocation9 + $0x668] sm:$0xff]
    %v3502 = vld [vmem:[#allocation9 + $0x670] sm:$0xff]
    %v3503 = vld [vmem:[#allocation9 + $0x678] sm:$0xff]
    %v3504 = vld [vmem:[#allocation9 + $0x680] sm:$0xff]
    %v3505 = vld [vmem:[#allocation9 + $0x688] sm:$0xff]
    %v3506 = vld [vmem:[#allocation9 + $0x690] sm:$0xff]
    %v3507 = vld [vmem:[#allocation9 + $0x698] sm:$0xff]
    %v3508 = vld [vmem:[#allocation9 + $0x6a0] sm:$0xff]
    %v3509 = vld [vmem:[#allocation9 + $0x6a8] sm:$0xff]
    %v3510 = vld [vmem:[#allocation9 + $0x6b0] sm:$0xff]
    %v3511 = vld [vmem:[#allocation9 + $0x6b8] sm:$0xff]
    %v3512 = vld [vmem:[#allocation9 + $0x6c0] sm:$0xff]
    %v3513 = vld [vmem:[#allocation9 + $0x6c8] sm:$0xff]
    %v3514 = vld [vmem:[#allocation9 + $0x6d0] sm:$0xff]
    %v3515 = vld [vmem:[#allocation9 + $0x6d8] sm:$0xff]
    %v3516 = vld [vmem:[#allocation9 + $0x6e0] sm:$0xff]
    %v3517 = vld [vmem:[#allocation9 + $0x6e8] sm:$0xff]
    %v3518 = vld [vmem:[#allocation9 + $0x6f0] sm:$0xff]
    %v3519 = vld [vmem:[#allocation9 + $0x6f8] sm:$0xff]
    %v3520 = vld [vmem:[#allocation9 + $0x700] sm:$0xff]
    %v3521 = vld [vmem:[#allocation9 + $0x708] sm:$0xff]
    %v3522 = vld [vmem:[#allocation9 + $0x710] sm:$0xff]
    %v3523 = vld [vmem:[#allocation9 + $0x718] sm:$0xff]
    %v3524 = vld [vmem:[#allocation9 + $0x720] sm:$0xff]
    %v3525 = vld [vmem:[#allocation9 + $0x728] sm:$0xff]
    %v3526 = vld [vmem:[#allocation9 + $0x730] sm:$0xff]
    %v3527 = vld [vmem:[#allocation9 + $0x738] sm:$0xff]
    %v3528 = vld [vmem:[#allocation9 + $0x740] sm:$0xff]
    %v3529 = vld [vmem:[#allocation9 + $0x748] sm:$0xff]
    %v3530 = vld [vmem:[#allocation9 + $0x750] sm:$0xff]
    %v3531 = vld [vmem:[#allocation9 + $0x758] sm:$0xff]
    %v3532 = vld [vmem:[#allocation9 + $0x760] sm:$0xff]
    %v3533 = vld [vmem:[#allocation9 + $0x768] sm:$0xff]
    %v3534 = vld [vmem:[#allocation9 + $0x770] sm:$0xff]
    %v3535 = vld [vmem:[#allocation9 + $0x778] sm:$0xff]
    %v3536 = vld [vmem:[#allocation9 + $0x780] sm:$0xff]
    %v3537 = vld [vmem:[#allocation9 + $0x788] sm:$0xff]
    %v3538 = vld [vmem:[#allocation9 + $0x790] sm:$0xff]
    %v3539 = vld [vmem:[#allocation9 + $0x798] sm:$0xff]
    %v3540 = vld [vmem:[#allocation9 + $0x7a0] sm:$0xff]
    %v3541 = vld [vmem:[#allocation9 + $0x7a8] sm:$0xff]
    %v3542 = vld [vmem:[#allocation9 + $0x7b0] sm:$0xff]
    %v3543 = vld [vmem:[#allocation9 + $0x7b8] sm:$0xff]
    %v3544 = vld [vmem:[#allocation9 + $0x7c0] sm:$0xff]
    %v3545 = vld [vmem:[#allocation9 + $0x7c8] sm:$0xff]
    %v3546 = vld [vmem:[#allocation9 + $0x7d0] sm:$0xff]
    %v3547 = vld [vmem:[#allocation9 + $0x7d8] sm:$0xff]
    %v3548 = vld [vmem:[#allocation9 + $0x7e0] sm:$0xff]
    %v3549 = vld [vmem:[#allocation9 + $0x7e8] sm:$0xff]
    %v3550 = vld [vmem:[#allocation9 + $0x7f0] sm:$0xff]
    %v3551 = vld [vmem:[#allocation9 + $0x7f8] sm:$0xff]
    %v3808 = vunpack.c.l.b16 %v3296
    %v3809 = vunpack.c.h.b16 %v3296
    %v3810 = vunpack.c.l.b16 %v3297
    %v3811 = vunpack.c.h.b16 %v3297
    %v3812 = vunpack.c.l.b16 %v3298
    %v3813 = vunpack.c.h.b16 %v3298
    %v3814 = vunpack.c.l.b16 %v3299
    %v3815 = vunpack.c.h.b16 %v3299
    %v3816 = vunpack.c.l.b16 %v3300
    %v3817 = vunpack.c.h.b16 %v3300
    %v3818 = vunpack.c.l.b16 %v3301
    %v3819 = vunpack.c.h.b16 %v3301
    %v3820 = vunpack.c.l.b16 %v3302
    %v3821 = vunpack.c.h.b16 %v3302
    %v3822 = vunpack.c.l.b16 %v3303
    %v3823 = vunpack.c.h.b16 %v3303
    %v3824 = vunpack.c.l.b16 %v3304
    %v3825 = vunpack.c.h.b16 %v3304
    %v3826 = vunpack.c.l.b16 %v3305
    %v3827 = vunpack.c.h.b16 %v3305
    %v3828 = vunpack.c.l.b16 %v3306
    %v3829 = vunpack.c.h.b16 %v3306
    %v3830 = vunpack.c.l.b16 %v3307
    %v3831 = vunpack.c.h.b16 %v3307
    %v3832 = vunpack.c.l.b16 %v3308
    %v3833 = vunpack.c.h.b16 %v3308
    %v3834 = vunpack.c.l.b16 %v3309
    %v3835 = vunpack.c.h.b16 %v3309
    %v3836 = vunpack.c.l.b16 %v3310
    %v3837 = vunpack.c.h.b16 %v3310
    %v3838 = vunpack.c.l.b16 %v3311
    %v3839 = vunpack.c.h.b16 %v3311
    %v3840 = vunpack.c.l.b16 %v3312
    %v3841 = vunpack.c.h.b16 %v3312
    %v3842 = vunpack.c.l.b16 %v3313
    %v3843 = vunpack.c.h.b16 %v3313
    %v3844 = vunpack.c.l.b16 %v3314
    %v3845 = vunpack.c.h.b16 %v3314
    %v3846 = vunpack.c.l.b16 %v3315
    %v3847 = vunpack.c.h.b16 %v3315
    %v3848 = vunpack.c.l.b16 %v3316
    %v3849 = vunpack.c.h.b16 %v3316
    %v3850 = vunpack.c.l.b16 %v3317
    %v3851 = vunpack.c.h.b16 %v3317
    %v3852 = vunpack.c.l.b16 %v3318
    %v3853 = vunpack.c.h.b16 %v3318
    %v3854 = vunpack.c.l.b16 %v3319
    %v3855 = vunpack.c.h.b16 %v3319
    %v3856 = vunpack.c.l.b16 %v3320
    %v3857 = vunpack.c.h.b16 %v3320
    %v3858 = vunpack.c.l.b16 %v3321
    %v3859 = vunpack.c.h.b16 %v3321
    %v3860 = vunpack.c.l.b16 %v3322
    %v3861 = vunpack.c.h.b16 %v3322
    %v3862 = vunpack.c.l.b16 %v3323
    %v3863 = vunpack.c.h.b16 %v3323
    %v3864 = vunpack.c.l.b16 %v3324
    %v3865 = vunpack.c.h.b16 %v3324
    %v3866 = vunpack.c.l.b16 %v3325
    %v3867 = vunpack.c.h.b16 %v3325
    %v3868 = vunpack.c.l.b16 %v3326
    %v3869 = vunpack.c.h.b16 %v3326
    %v3870 = vunpack.c.l.b16 %v3327
    %v3871 = vunpack.c.h.b16 %v3327
    %v3872 = vunpack.c.l.b16 %v3328
    %v3873 = vunpack.c.h.b16 %v3328
    %v3874 = vunpack.c.l.b16 %v3329
    %v3875 = vunpack.c.h.b16 %v3329
    %v3876 = vunpack.c.l.b16 %v3330
    %v3877 = vunpack.c.h.b16 %v3330
    %v3878 = vunpack.c.l.b16 %v3331
    %v3879 = vunpack.c.h.b16 %v3331
    %v3880 = vunpack.c.l.b16 %v3332
    %v3881 = vunpack.c.h.b16 %v3332
    %v3882 = vunpack.c.l.b16 %v3333
    %v3883 = vunpack.c.h.b16 %v3333
    %v3884 = vunpack.c.l.b16 %v3334
    %v3885 = vunpack.c.h.b16 %v3334
    %v3886 = vunpack.c.l.b16 %v3335
    %v3887 = vunpack.c.h.b16 %v3335
    %v3888 = vunpack.c.l.b16 %v3336
    %v3889 = vunpack.c.h.b16 %v3336
    %v3890 = vunpack.c.l.b16 %v3337
    %v3891 = vunpack.c.h.b16 %v3337
    %v3892 = vunpack.c.l.b16 %v3338
    %v3893 = vunpack.c.h.b16 %v3338
    %v3894 = vunpack.c.l.b16 %v3339
    %v3895 = vunpack.c.h.b16 %v3339
    %v3896 = vunpack.c.l.b16 %v3340
    %v3897 = vunpack.c.h.b16 %v3340
    %v3898 = vunpack.c.l.b16 %v3341
    %v3899 = vunpack.c.h.b16 %v3341
    %v3900 = vunpack.c.l.b16 %v3342
    %v3901 = vunpack.c.h.b16 %v3342
    %v3902 = vunpack.c.l.b16 %v3343
    %v3903 = vunpack.c.h.b16 %v3343
    %v3904 = vunpack.c.l.b16 %v3344
    %v3905 = vunpack.c.h.b16 %v3344
    %v3906 = vunpack.c.l.b16 %v3345
    %v3907 = vunpack.c.h.b16 %v3345
    %v3908 = vunpack.c.l.b16 %v3346
    %v3909 = vunpack.c.h.b16 %v3346
    %v3910 = vunpack.c.l.b16 %v3347
    %v3911 = vunpack.c.h.b16 %v3347
    %v3912 = vunpack.c.l.b16 %v3348
    %v3913 = vunpack.c.h.b16 %v3348
    %v3914 = vunpack.c.l.b16 %v3349
    %v3915 = vunpack.c.h.b16 %v3349
    %v3916 = vunpack.c.l.b16 %v3350
    %v3917 = vunpack.c.h.b16 %v3350
    %v3918 = vunpack.c.l.b16 %v3351
    %v3919 = vunpack.c.h.b16 %v3351
    %v3920 = vunpack.c.l.b16 %v3352
    %v3921 = vunpack.c.h.b16 %v3352
    %v3922 = vunpack.c.l.b16 %v3353
    %v3923 = vunpack.c.h.b16 %v3353
    %v3924 = vunpack.c.l.b16 %v3354
    %v3925 = vunpack.c.h.b16 %v3354
    %v3926 = vunpack.c.l.b16 %v3355
    %v3927 = vunpack.c.h.b16 %v3355
    %v3928 = vunpack.c.l.b16 %v3356
    %v3929 = vunpack.c.h.b16 %v3356
    %v3930 = vunpack.c.l.b16 %v3357
    %v3931 = vunpack.c.h.b16 %v3357
    %v3932 = vunpack.c.l.b16 %v3358
    %v3933 = vunpack.c.h.b16 %v3358
    %v3934 = vunpack.c.l.b16 %v3359
    %v3935 = vunpack.c.h.b16 %v3359
    %v3936 = vunpack.c.l.b16 %v3360
    %v3937 = vunpack.c.h.b16 %v3360
    %v3938 = vunpack.c.l.b16 %v3361
    %v3939 = vunpack.c.h.b16 %v3361
    %v3940 = vunpack.c.l.b16 %v3362
    %v3941 = vunpack.c.h.b16 %v3362
    %v3942 = vunpack.c.l.b16 %v3363
    %v3943 = vunpack.c.h.b16 %v3363
    %v3944 = vunpack.c.l.b16 %v3364
    %v3945 = vunpack.c.h.b16 %v3364
    %v3946 = vunpack.c.l.b16 %v3365
    %v3947 = vunpack.c.h.b16 %v3365
    %v3948 = vunpack.c.l.b16 %v3366
    %v3949 = vunpack.c.h.b16 %v3366
    %v3950 = vunpack.c.l.b16 %v3367
    %v3951 = vunpack.c.h.b16 %v3367
    %v3952 = vunpack.c.l.b16 %v3368
    %v3953 = vunpack.c.h.b16 %v3368
    %v3954 = vunpack.c.l.b16 %v3369
    %v3955 = vunpack.c.h.b16 %v3369
    %v3956 = vunpack.c.l.b16 %v3370
    %v3957 = vunpack.c.h.b16 %v3370
    %v3958 = vunpack.c.l.b16 %v3371
    %v3959 = vunpack.c.h.b16 %v3371
    %v3960 = vunpack.c.l.b16 %v3372
    %v3961 = vunpack.c.h.b16 %v3372
    %v3962 = vunpack.c.l.b16 %v3373
    %v3963 = vunpack.c.h.b16 %v3373
    %v3964 = vunpack.c.l.b16 %v3374
    %v3965 = vunpack.c.h.b16 %v3374
    %v3966 = vunpack.c.l.b16 %v3375
    %v3967 = vunpack.c.h.b16 %v3375
    %v3968 = vunpack.c.l.b16 %v3376
    %v3969 = vunpack.c.h.b16 %v3376
    %v3970 = vunpack.c.l.b16 %v3377
    %v3971 = vunpack.c.h.b16 %v3377
    %v3972 = vunpack.c.l.b16 %v3378
    %v3973 = vunpack.c.h.b16 %v3378
    %v3974 = vunpack.c.l.b16 %v3379
    %v3975 = vunpack.c.h.b16 %v3379
    %v3976 = vunpack.c.l.b16 %v3380
    %v3977 = vunpack.c.h.b16 %v3380
    %v3978 = vunpack.c.l.b16 %v3381
    %v3979 = vunpack.c.h.b16 %v3381
    %v3980 = vunpack.c.l.b16 %v3382
    %v3981 = vunpack.c.h.b16 %v3382
    %v3982 = vunpack.c.l.b16 %v3383
    %v3983 = vunpack.c.h.b16 %v3383
    %v3984 = vunpack.c.l.b16 %v3384
    %v3985 = vunpack.c.h.b16 %v3384
    %v3986 = vunpack.c.l.b16 %v3385
    %v3987 = vunpack.c.h.b16 %v3385
    %v3988 = vunpack.c.l.b16 %v3386
    %v3989 = vunpack.c.h.b16 %v3386
    %v3990 = vunpack.c.l.b16 %v3387
    %v3991 = vunpack.c.h.b16 %v3387
    %v3992 = vunpack.c.l.b16 %v3388
    %v3993 = vunpack.c.h.b16 %v3388
    %v3994 = vunpack.c.l.b16 %v3389
    %v3995 = vunpack.c.h.b16 %v3389
    %v3996 = vunpack.c.l.b16 %v3390
    %v3997 = vunpack.c.h.b16 %v3390
    %v3998 = vunpack.c.l.b16 %v3391
    %v3999 = vunpack.c.h.b16 %v3391
    %v4000 = vunpack.c.l.b16 %v3392
    %v4001 = vunpack.c.h.b16 %v3392
    %v4002 = vunpack.c.l.b16 %v3393
    %v4003 = vunpack.c.h.b16 %v3393
    %v4004 = vunpack.c.l.b16 %v3394
    %v4005 = vunpack.c.h.b16 %v3394
    %v4006 = vunpack.c.l.b16 %v3395
    %v4007 = vunpack.c.h.b16 %v3395
    %v4008 = vunpack.c.l.b16 %v3396
    %v4009 = vunpack.c.h.b16 %v3396
    %v4010 = vunpack.c.l.b16 %v3397
    %v4011 = vunpack.c.h.b16 %v3397
    %v4012 = vunpack.c.l.b16 %v3398
    %v4013 = vunpack.c.h.b16 %v3398
    %v4014 = vunpack.c.l.b16 %v3399
    %v4015 = vunpack.c.h.b16 %v3399
    %v4016 = vunpack.c.l.b16 %v3400
    %v4017 = vunpack.c.h.b16 %v3400
    %v4018 = vunpack.c.l.b16 %v3401
    %v4019 = vunpack.c.h.b16 %v3401
    %v4020 = vunpack.c.l.b16 %v3402
    %v4021 = vunpack.c.h.b16 %v3402
    %v4022 = vunpack.c.l.b16 %v3403
    %v4023 = vunpack.c.h.b16 %v3403
    %v4024 = vunpack.c.l.b16 %v3404
    %v4025 = vunpack.c.h.b16 %v3404
    %v4026 = vunpack.c.l.b16 %v3405
    %v4027 = vunpack.c.h.b16 %v3405
    %v4028 = vunpack.c.l.b16 %v3406
    %v4029 = vunpack.c.h.b16 %v3406
    %v4030 = vunpack.c.l.b16 %v3407
    %v4031 = vunpack.c.h.b16 %v3407
    %v4032 = vunpack.c.l.b16 %v3408
    %v4033 = vunpack.c.h.b16 %v3408
    %v4034 = vunpack.c.l.b16 %v3409
    %v4035 = vunpack.c.h.b16 %v3409
    %v4036 = vunpack.c.l.b16 %v3410
    %v4037 = vunpack.c.h.b16 %v3410
    %v4038 = vunpack.c.l.b16 %v3411
    %v4039 = vunpack.c.h.b16 %v3411
    %v4040 = vunpack.c.l.b16 %v3412
    %v4041 = vunpack.c.h.b16 %v3412
    %v4042 = vunpack.c.l.b16 %v3413
    %v4043 = vunpack.c.h.b16 %v3413
    %v4044 = vunpack.c.l.b16 %v3414
    %v4045 = vunpack.c.h.b16 %v3414
    %v4046 = vunpack.c.l.b16 %v3415
    %v4047 = vunpack.c.h.b16 %v3415
    %v4048 = vunpack.c.l.b16 %v3416
    %v4049 = vunpack.c.h.b16 %v3416
    %v4050 = vunpack.c.l.b16 %v3417
    %v4051 = vunpack.c.h.b16 %v3417
    %v4052 = vunpack.c.l.b16 %v3418
    %v4053 = vunpack.c.h.b16 %v3418
    %v4054 = vunpack.c.l.b16 %v3419
    %v4055 = vunpack.c.h.b16 %v3419
    %v4056 = vunpack.c.l.b16 %v3420
    %v4057 = vunpack.c.h.b16 %v3420
    %v4058 = vunpack.c.l.b16 %v3421
    %v4059 = vunpack.c.h.b16 %v3421
    %v4060 = vunpack.c.l.b16 %v3422
    %v4061 = vunpack.c.h.b16 %v3422
    %v4062 = vunpack.c.l.b16 %v3423
    %v4063 = vunpack.c.h.b16 %v3423
    %v4064 = vunpack.c.l.b16 %v3424
    %v4065 = vunpack.c.h.b16 %v3424
    %v4066 = vunpack.c.l.b16 %v3425
    %v4067 = vunpack.c.h.b16 %v3425
    %v4068 = vunpack.c.l.b16 %v3426
    %v4069 = vunpack.c.h.b16 %v3426
    %v4070 = vunpack.c.l.b16 %v3427
    %v4071 = vunpack.c.h.b16 %v3427
    %v4072 = vunpack.c.l.b16 %v3428
    %v4073 = vunpack.c.h.b16 %v3428
    %v4074 = vunpack.c.l.b16 %v3429
    %v4075 = vunpack.c.h.b16 %v3429
    %v4076 = vunpack.c.l.b16 %v3430
    %v4077 = vunpack.c.h.b16 %v3430
    %v4078 = vunpack.c.l.b16 %v3431
    %v4079 = vunpack.c.h.b16 %v3431
    %v4080 = vunpack.c.l.b16 %v3432
    %v4081 = vunpack.c.h.b16 %v3432
    %v4082 = vunpack.c.l.b16 %v3433
    %v4083 = vunpack.c.h.b16 %v3433
    %v4084 = vunpack.c.l.b16 %v3434
    %v4085 = vunpack.c.h.b16 %v3434
    %v4086 = vunpack.c.l.b16 %v3435
    %v4087 = vunpack.c.h.b16 %v3435
    %v4088 = vunpack.c.l.b16 %v3436
    %v4089 = vunpack.c.h.b16 %v3436
    %v4090 = vunpack.c.l.b16 %v3437
    %v4091 = vunpack.c.h.b16 %v3437
    %v4092 = vunpack.c.l.b16 %v3438
    %v4093 = vunpack.c.h.b16 %v3438
    %v4094 = vunpack.c.l.b16 %v3439
    %v4095 = vunpack.c.h.b16 %v3439
    %v4096 = vunpack.c.l.b16 %v3440
    %v4097 = vunpack.c.h.b16 %v3440
    %v4098 = vunpack.c.l.b16 %v3441
    %v4099 = vunpack.c.h.b16 %v3441
    %v4100 = vunpack.c.l.b16 %v3442
    %v4101 = vunpack.c.h.b16 %v3442
    %v4102 = vunpack.c.l.b16 %v3443
    %v4103 = vunpack.c.h.b16 %v3443
    %v4104 = vunpack.c.l.b16 %v3444
    %v4105 = vunpack.c.h.b16 %v3444
    %v4106 = vunpack.c.l.b16 %v3445
    %v4107 = vunpack.c.h.b16 %v3445
    %v4108 = vunpack.c.l.b16 %v3446
    %v4109 = vunpack.c.h.b16 %v3446
    %v4110 = vunpack.c.l.b16 %v3447
    %v4111 = vunpack.c.h.b16 %v3447
    %v4112 = vunpack.c.l.b16 %v3448
    %v4113 = vunpack.c.h.b16 %v3448
    %v4114 = vunpack.c.l.b16 %v3449
    %v4115 = vunpack.c.h.b16 %v3449
    %v4116 = vunpack.c.l.b16 %v3450
    %v4117 = vunpack.c.h.b16 %v3450
    %v4118 = vunpack.c.l.b16 %v3451
    %v4119 = vunpack.c.h.b16 %v3451
    %v4120 = vunpack.c.l.b16 %v3452
    %v4121 = vunpack.c.h.b16 %v3452
    %v4122 = vunpack.c.l.b16 %v3453
    %v4123 = vunpack.c.h.b16 %v3453
    %v4124 = vunpack.c.l.b16 %v3454
    %v4125 = vunpack.c.h.b16 %v3454
    %v4126 = vunpack.c.l.b16 %v3455
    %v4127 = vunpack.c.h.b16 %v3455
    %v4128 = vunpack.c.l.b16 %v3456
    %v4129 = vunpack.c.h.b16 %v3456
    %v4130 = vunpack.c.l.b16 %v3457
    %v4131 = vunpack.c.h.b16 %v3457
    %v4132 = vunpack.c.l.b16 %v3458
    %v4133 = vunpack.c.h.b16 %v3458
    %v4134 = vunpack.c.l.b16 %v3459
    %v4135 = vunpack.c.h.b16 %v3459
    %v4136 = vunpack.c.l.b16 %v3460
    %v4137 = vunpack.c.h.b16 %v3460
    %v4138 = vunpack.c.l.b16 %v3461
    %v4139 = vunpack.c.h.b16 %v3461
    %v4140 = vunpack.c.l.b16 %v3462
    %v4141 = vunpack.c.h.b16 %v3462
    %v4142 = vunpack.c.l.b16 %v3463
    %v4143 = vunpack.c.h.b16 %v3463
    %v4144 = vunpack.c.l.b16 %v3464
    %v4145 = vunpack.c.h.b16 %v3464
    %v4146 = vunpack.c.l.b16 %v3465
    %v4147 = vunpack.c.h.b16 %v3465
    %v4148 = vunpack.c.l.b16 %v3466
    %v4149 = vunpack.c.h.b16 %v3466
    %v4150 = vunpack.c.l.b16 %v3467
    %v4151 = vunpack.c.h.b16 %v3467
    %v4152 = vunpack.c.l.b16 %v3468
    %v4153 = vunpack.c.h.b16 %v3468
    %v4154 = vunpack.c.l.b16 %v3469
    %v4155 = vunpack.c.h.b16 %v3469
    %v4156 = vunpack.c.l.b16 %v3470
    %v4157 = vunpack.c.h.b16 %v3470
    %v4158 = vunpack.c.l.b16 %v3471
    %v4159 = vunpack.c.h.b16 %v3471
    %v4160 = vunpack.c.l.b16 %v3472
    %v4161 = vunpack.c.h.b16 %v3472
    %v4162 = vunpack.c.l.b16 %v3473
    %v4163 = vunpack.c.h.b16 %v3473
    %v4164 = vunpack.c.l.b16 %v3474
    %v4165 = vunpack.c.h.b16 %v3474
    %v4166 = vunpack.c.l.b16 %v3475
    %v4167 = vunpack.c.h.b16 %v3475
    %v4168 = vunpack.c.l.b16 %v3476
    %v4169 = vunpack.c.h.b16 %v3476
    %v4170 = vunpack.c.l.b16 %v3477
    %v4171 = vunpack.c.h.b16 %v3477
    %v4172 = vunpack.c.l.b16 %v3478
    %v4173 = vunpack.c.h.b16 %v3478
    %v4174 = vunpack.c.l.b16 %v3479
    %v4175 = vunpack.c.h.b16 %v3479
    %v4176 = vunpack.c.l.b16 %v3480
    %v4177 = vunpack.c.h.b16 %v3480
    %v4178 = vunpack.c.l.b16 %v3481
    %v4179 = vunpack.c.h.b16 %v3481
    %v4180 = vunpack.c.l.b16 %v3482
    %v4181 = vunpack.c.h.b16 %v3482
    %v4182 = vunpack.c.l.b16 %v3483
    %v4183 = vunpack.c.h.b16 %v3483
    %v4184 = vunpack.c.l.b16 %v3484
    %v4185 = vunpack.c.h.b16 %v3484
    %v4186 = vunpack.c.l.b16 %v3485
    %v4187 = vunpack.c.h.b16 %v3485
    %v4188 = vunpack.c.l.b16 %v3486
    %v4189 = vunpack.c.h.b16 %v3486
    %v4190 = vunpack.c.l.b16 %v3487
    %v4191 = vunpack.c.h.b16 %v3487
    %v4192 = vunpack.c.l.b16 %v3488
    %v4193 = vunpack.c.h.b16 %v3488
    %v4194 = vunpack.c.l.b16 %v3489
    %v4195 = vunpack.c.h.b16 %v3489
    %v4196 = vunpack.c.l.b16 %v3490
    %v4197 = vunpack.c.h.b16 %v3490
    %v4198 = vunpack.c.l.b16 %v3491
    %v4199 = vunpack.c.h.b16 %v3491
    %v4200 = vunpack.c.l.b16 %v3492
    %v4201 = vunpack.c.h.b16 %v3492
    %v4202 = vunpack.c.l.b16 %v3493
    %v4203 = vunpack.c.h.b16 %v3493
    %v4204 = vunpack.c.l.b16 %v3494
    %v4205 = vunpack.c.h.b16 %v3494
    %v4206 = vunpack.c.l.b16 %v3495
    %v4207 = vunpack.c.h.b16 %v3495
    %v4208 = vunpack.c.l.b16 %v3496
    %v4209 = vunpack.c.h.b16 %v3496
    %v4210 = vunpack.c.l.b16 %v3497
    %v4211 = vunpack.c.h.b16 %v3497
    %v4212 = vunpack.c.l.b16 %v3498
    %v4213 = vunpack.c.h.b16 %v3498
    %v4214 = vunpack.c.l.b16 %v3499
    %v4215 = vunpack.c.h.b16 %v3499
    %v4216 = vunpack.c.l.b16 %v3500
    %v4217 = vunpack.c.h.b16 %v3500
    %v4218 = vunpack.c.l.b16 %v3501
    %v4219 = vunpack.c.h.b16 %v3501
    %v4220 = vunpack.c.l.b16 %v3502
    %v4221 = vunpack.c.h.b16 %v3502
    %v4222 = vunpack.c.l.b16 %v3503
    %v4223 = vunpack.c.h.b16 %v3503
    %v4224 = vunpack.c.l.b16 %v3504
    %v4225 = vunpack.c.h.b16 %v3504
    %v4226 = vunpack.c.l.b16 %v3505
    %v4227 = vunpack.c.h.b16 %v3505
    %v4228 = vunpack.c.l.b16 %v3506
    %v4229 = vunpack.c.h.b16 %v3506
    %v4230 = vunpack.c.l.b16 %v3507
    %v4231 = vunpack.c.h.b16 %v3507
    %v4232 = vunpack.c.l.b16 %v3508
    %v4233 = vunpack.c.h.b16 %v3508
    %v4234 = vunpack.c.l.b16 %v3509
    %v4235 = vunpack.c.h.b16 %v3509
    %v4236 = vunpack.c.l.b16 %v3510
    %v4237 = vunpack.c.h.b16 %v3510
    %v4238 = vunpack.c.l.b16 %v3511
    %v4239 = vunpack.c.h.b16 %v3511
    %v4240 = vunpack.c.l.b16 %v3512
    %v4241 = vunpack.c.h.b16 %v3512
    %v4242 = vunpack.c.l.b16 %v3513
    %v4243 = vunpack.c.h.b16 %v3513
    %v4244 = vunpack.c.l.b16 %v3514
    %v4245 = vunpack.c.h.b16 %v3514
    %v4246 = vunpack.c.l.b16 %v3515
    %v4247 = vunpack.c.h.b16 %v3515
    %v4248 = vunpack.c.l.b16 %v3516
    %v4249 = vunpack.c.h.b16 %v3516
    %v4250 = vunpack.c.l.b16 %v3517
    %v4251 = vunpack.c.h.b16 %v3517
    %v4252 = vunpack.c.l.b16 %v3518
    %v4253 = vunpack.c.h.b16 %v3518
    %v4254 = vunpack.c.l.b16 %v3519
    %v4255 = vunpack.c.h.b16 %v3519
    %v4256 = vunpack.c.l.b16 %v3520
    %v4257 = vunpack.c.h.b16 %v3520
    %v4258 = vunpack.c.l.b16 %v3521
    %v4259 = vunpack.c.h.b16 %v3521
    %v4260 = vunpack.c.l.b16 %v3522
    %v4261 = vunpack.c.h.b16 %v3522
    %v4262 = vunpack.c.l.b16 %v3523
    %v4263 = vunpack.c.h.b16 %v3523
    %v4264 = vunpack.c.l.b16 %v3524
    %v4265 = vunpack.c.h.b16 %v3524
    %v4266 = vunpack.c.l.b16 %v3525
    %v4267 = vunpack.c.h.b16 %v3525
    %v4268 = vunpack.c.l.b16 %v3526
    %v4269 = vunpack.c.h.b16 %v3526
    %v4270 = vunpack.c.l.b16 %v3527
    %v4271 = vunpack.c.h.b16 %v3527
    %v4272 = vunpack.c.l.b16 %v3528
    %v4273 = vunpack.c.h.b16 %v3528
    %v4274 = vunpack.c.l.b16 %v3529
    %v4275 = vunpack.c.h.b16 %v3529
    %v4276 = vunpack.c.l.b16 %v3530
    %v4277 = vunpack.c.h.b16 %v3530
    %v4278 = vunpack.c.l.b16 %v3531
    %v4279 = vunpack.c.h.b16 %v3531
    %v4280 = vunpack.c.l.b16 %v3532
    %v4281 = vunpack.c.h.b16 %v3532
    %v4282 = vunpack.c.l.b16 %v3533
    %v4283 = vunpack.c.h.b16 %v3533
    %v4284 = vunpack.c.l.b16 %v3534
    %v4285 = vunpack.c.h.b16 %v3534
    %v4286 = vunpack.c.l.b16 %v3535
    %v4287 = vunpack.c.h.b16 %v3535
    %v4288 = vunpack.c.l.b16 %v3536
    %v4289 = vunpack.c.h.b16 %v3536
    %v4290 = vunpack.c.l.b16 %v3537
    %v4291 = vunpack.c.h.b16 %v3537
    %v4292 = vunpack.c.l.b16 %v3538
    %v4293 = vunpack.c.h.b16 %v3538
    %v4294 = vunpack.c.l.b16 %v3539
    %v4295 = vunpack.c.h.b16 %v3539
    %v4296 = vunpack.c.l.b16 %v3540
    %v4297 = vunpack.c.h.b16 %v3540
    %v4298 = vunpack.c.l.b16 %v3541
    %v4299 = vunpack.c.h.b16 %v3541
    %v4300 = vunpack.c.l.b16 %v3542
    %v4301 = vunpack.c.h.b16 %v3542
    %v4302 = vunpack.c.l.b16 %v3543
    %v4303 = vunpack.c.h.b16 %v3543
    %v4304 = vunpack.c.l.b16 %v3544
    %v4305 = vunpack.c.h.b16 %v3544
    %v4306 = vunpack.c.l.b16 %v3545
    %v4307 = vunpack.c.h.b16 %v3545
    %v4308 = vunpack.c.l.b16 %v3546
    %v4309 = vunpack.c.h.b16 %v3546
    %v4310 = vunpack.c.l.b16 %v3547
    %v4311 = vunpack.c.h.b16 %v3547
    %v4312 = vunpack.c.l.b16 %v3548
    %v4313 = vunpack.c.h.b16 %v3548
    %v4314 = vunpack.c.l.b16 %v3549
    %v4315 = vunpack.c.h.b16 %v3549
    %v4316 = vunpack.c.l.b16 %v3550
    %v4317 = vunpack.c.h.b16 %v3550
    %v4318 = vunpack.c.l.b16 %v3551
    %v4319 = vunpack.c.h.b16 %v3551
    %v4320 = vpack.c.b16 %v3816, %v3808
    %v4321 = vpack.c.b16 %v3817, %v3809
    %v4322 = vpack.c.b16 %v3818, %v3810
    %v4323 = vpack.c.b16 %v3819, %v3811
    %v4324 = vpack.c.b16 %v3820, %v3812
    %v4325 = vpack.c.b16 %v3821, %v3813
    %v4326 = vpack.c.b16 %v3822, %v3814
    %v4327 = vpack.c.b16 %v3823, %v3815
    %v4328 = vpack.c.b16 %v3832, %v3824
    %v4329 = vpack.c.b16 %v3833, %v3825
    %v4330 = vpack.c.b16 %v3834, %v3826
    %v4331 = vpack.c.b16 %v3835, %v3827
    %v4332 = vpack.c.b16 %v3836, %v3828
    %v4333 = vpack.c.b16 %v3837, %v3829
    %v4334 = vpack.c.b16 %v3838, %v3830
    %v4335 = vpack.c.b16 %v3839, %v3831
    %v4336 = vpack.c.b16 %v3848, %v3840
    %v4337 = vpack.c.b16 %v3849, %v3841
    %v4338 = vpack.c.b16 %v3850, %v3842
    %v4339 = vpack.c.b16 %v3851, %v3843
    %v4340 = vpack.c.b16 %v3852, %v3844
    %v4341 = vpack.c.b16 %v3853, %v3845
    %v4342 = vpack.c.b16 %v3854, %v3846
    %v4343 = vpack.c.b16 %v3855, %v3847
    %v4344 = vpack.c.b16 %v3864, %v3856
    %v4345 = vpack.c.b16 %v3865, %v3857
    %v4346 = vpack.c.b16 %v3866, %v3858
    %v4347 = vpack.c.b16 %v3867, %v3859
    %v4348 = vpack.c.b16 %v3868, %v3860
    %v4349 = vpack.c.b16 %v3869, %v3861
    %v4350 = vpack.c.b16 %v3870, %v3862
    %v4351 = vpack.c.b16 %v3871, %v3863
    %v4352 = vpack.c.b16 %v3880, %v3872
    %v4353 = vpack.c.b16 %v3881, %v3873
    %v4354 = vpack.c.b16 %v3882, %v3874
    %v4355 = vpack.c.b16 %v3883, %v3875
    %v4356 = vpack.c.b16 %v3884, %v3876
    %v4357 = vpack.c.b16 %v3885, %v3877
    %v4358 = vpack.c.b16 %v3886, %v3878
    %v4359 = vpack.c.b16 %v3887, %v3879
    %v4360 = vpack.c.b16 %v3896, %v3888
    %v4361 = vpack.c.b16 %v3897, %v3889
    %v4362 = vpack.c.b16 %v3898, %v3890
    %v4363 = vpack.c.b16 %v3899, %v3891
    %v4364 = vpack.c.b16 %v3900, %v3892
    %v4365 = vpack.c.b16 %v3901, %v3893
    %v4366 = vpack.c.b16 %v3902, %v3894
    %v4367 = vpack.c.b16 %v3903, %v3895
    %v4368 = vpack.c.b16 %v3912, %v3904
    %v4369 = vpack.c.b16 %v3913, %v3905
    %v4370 = vpack.c.b16 %v3914, %v3906
    %v4371 = vpack.c.b16 %v3915, %v3907
    %v4372 = vpack.c.b16 %v3916, %v3908
    %v4373 = vpack.c.b16 %v3917, %v3909
    %v4374 = vpack.c.b16 %v3918, %v3910
    %v4375 = vpack.c.b16 %v3919, %v3911
    %v4376 = vpack.c.b16 %v3928, %v3920
    %v4377 = vpack.c.b16 %v3929, %v3921
    %v4378 = vpack.c.b16 %v3930, %v3922
    %v4379 = vpack.c.b16 %v3931, %v3923
    %v4380 = vpack.c.b16 %v3932, %v3924
    %v4381 = vpack.c.b16 %v3933, %v3925
    %v4382 = vpack.c.b16 %v3934, %v3926
    %v4383 = vpack.c.b16 %v3935, %v3927
    %v4384 = vpack.c.b16 %v3944, %v3936
    %v4385 = vpack.c.b16 %v3945, %v3937
    %v4386 = vpack.c.b16 %v3946, %v3938
    %v4387 = vpack.c.b16 %v3947, %v3939
    %v4388 = vpack.c.b16 %v3948, %v3940
    %v4389 = vpack.c.b16 %v3949, %v3941
    %v4390 = vpack.c.b16 %v3950, %v3942
    %v4391 = vpack.c.b16 %v3951, %v3943
    %v4392 = vpack.c.b16 %v3960, %v3952
    %v4393 = vpack.c.b16 %v3961, %v3953
    %v4394 = vpack.c.b16 %v3962, %v3954
    %v4395 = vpack.c.b16 %v3963, %v3955
    %v4396 = vpack.c.b16 %v3964, %v3956
    %v4397 = vpack.c.b16 %v3965, %v3957
    %v4398 = vpack.c.b16 %v3966, %v3958
    %v4399 = vpack.c.b16 %v3967, %v3959
    %v4400 = vpack.c.b16 %v3976, %v3968
    %v4401 = vpack.c.b16 %v3977, %v3969
    %v4402 = vpack.c.b16 %v3978, %v3970
    %v4403 = vpack.c.b16 %v3979, %v3971
    %v4404 = vpack.c.b16 %v3980, %v3972
    %v4405 = vpack.c.b16 %v3981, %v3973
    %v4406 = vpack.c.b16 %v3982, %v3974
    %v4407 = vpack.c.b16 %v3983, %v3975
    %v4408 = vpack.c.b16 %v3992, %v3984
    %v4409 = vpack.c.b16 %v3993, %v3985
    %v4410 = vpack.c.b16 %v3994, %v3986
    %v4411 = vpack.c.b16 %v3995, %v3987
    %v4412 = vpack.c.b16 %v3996, %v3988
    %v4413 = vpack.c.b16 %v3997, %v3989
    %v4414 = vpack.c.b16 %v3998, %v3990
    %v4415 = vpack.c.b16 %v3999, %v3991
    %v4416 = vpack.c.b16 %v4008, %v4000
    %v4417 = vpack.c.b16 %v4009, %v4001
    %v4418 = vpack.c.b16 %v4010, %v4002
    %v4419 = vpack.c.b16 %v4011, %v4003
    %v4420 = vpack.c.b16 %v4012, %v4004
    %v4421 = vpack.c.b16 %v4013, %v4005
    %v4422 = vpack.c.b16 %v4014, %v4006
    %v4423 = vpack.c.b16 %v4015, %v4007
    %v4424 = vpack.c.b16 %v4024, %v4016
    %v4425 = vpack.c.b16 %v4025, %v4017
    %v4426 = vpack.c.b16 %v4026, %v4018
    %v4427 = vpack.c.b16 %v4027, %v4019
    %v4428 = vpack.c.b16 %v4028, %v4020
    %v4429 = vpack.c.b16 %v4029, %v4021
    %v4430 = vpack.c.b16 %v4030, %v4022
    %v4431 = vpack.c.b16 %v4031, %v4023
    %v4432 = vpack.c.b16 %v4040, %v4032
    %v4433 = vpack.c.b16 %v4041, %v4033
    %v4434 = vpack.c.b16 %v4042, %v4034
    %v4435 = vpack.c.b16 %v4043, %v4035
    %v4436 = vpack.c.b16 %v4044, %v4036
    %v4437 = vpack.c.b16 %v4045, %v4037
    %v4438 = vpack.c.b16 %v4046, %v4038
    %v4439 = vpack.c.b16 %v4047, %v4039
    %v4440 = vpack.c.b16 %v4056, %v4048
    %v4441 = vpack.c.b16 %v4057, %v4049
    %v4442 = vpack.c.b16 %v4058, %v4050
    %v4443 = vpack.c.b16 %v4059, %v4051
    %v4444 = vpack.c.b16 %v4060, %v4052
    %v4445 = vpack.c.b16 %v4061, %v4053
    %v4446 = vpack.c.b16 %v4062, %v4054
    %v4447 = vpack.c.b16 %v4063, %v4055
    %v4448 = vpack.c.b16 %v4072, %v4064
    %v4449 = vpack.c.b16 %v4073, %v4065
    %v4450 = vpack.c.b16 %v4074, %v4066
    %v4451 = vpack.c.b16 %v4075, %v4067
    %v4452 = vpack.c.b16 %v4076, %v4068
    %v4453 = vpack.c.b16 %v4077, %v4069
    %v4454 = vpack.c.b16 %v4078, %v4070
    %v4455 = vpack.c.b16 %v4079, %v4071
    %v4456 = vpack.c.b16 %v4088, %v4080
    %v4457 = vpack.c.b16 %v4089, %v4081
    %v4458 = vpack.c.b16 %v4090, %v4082
    %v4459 = vpack.c.b16 %v4091, %v4083
    %v4460 = vpack.c.b16 %v4092, %v4084
    %v4461 = vpack.c.b16 %v4093, %v4085
    %v4462 = vpack.c.b16 %v4094, %v4086
    %v4463 = vpack.c.b16 %v4095, %v4087
    %v4464 = vpack.c.b16 %v4104, %v4096
    %v4465 = vpack.c.b16 %v4105, %v4097
    %v4466 = vpack.c.b16 %v4106, %v4098
    %v4467 = vpack.c.b16 %v4107, %v4099
    %v4468 = vpack.c.b16 %v4108, %v4100
    %v4469 = vpack.c.b16 %v4109, %v4101
    %v4470 = vpack.c.b16 %v4110, %v4102
    %v4471 = vpack.c.b16 %v4111, %v4103
    %v4472 = vpack.c.b16 %v4120, %v4112
    %v4473 = vpack.c.b16 %v4121, %v4113
    %v4474 = vpack.c.b16 %v4122, %v4114
    %v4475 = vpack.c.b16 %v4123, %v4115
    %v4476 = vpack.c.b16 %v4124, %v4116
    %v4477 = vpack.c.b16 %v4125, %v4117
    %v4478 = vpack.c.b16 %v4126, %v4118
    %v4479 = vpack.c.b16 %v4127, %v4119
    %v4480 = vpack.c.b16 %v4136, %v4128
    %v4481 = vpack.c.b16 %v4137, %v4129
    %v4482 = vpack.c.b16 %v4138, %v4130
    %v4483 = vpack.c.b16 %v4139, %v4131
    %v4484 = vpack.c.b16 %v4140, %v4132
    %v4485 = vpack.c.b16 %v4141, %v4133
    %v4486 = vpack.c.b16 %v4142, %v4134
    %v4487 = vpack.c.b16 %v4143, %v4135
    %v4488 = vpack.c.b16 %v4152, %v4144
    %v4489 = vpack.c.b16 %v4153, %v4145
    %v4490 = vpack.c.b16 %v4154, %v4146
    %v4491 = vpack.c.b16 %v4155, %v4147
    %v4492 = vpack.c.b16 %v4156, %v4148
    %v4493 = vpack.c.b16 %v4157, %v4149
    %v4494 = vpack.c.b16 %v4158, %v4150
    %v4495 = vpack.c.b16 %v4159, %v4151
    %v4496 = vpack.c.b16 %v4168, %v4160
    %v4497 = vpack.c.b16 %v4169, %v4161
    %v4498 = vpack.c.b16 %v4170, %v4162
    %v4499 = vpack.c.b16 %v4171, %v4163
    %v4500 = vpack.c.b16 %v4172, %v4164
    %v4501 = vpack.c.b16 %v4173, %v4165
    %v4502 = vpack.c.b16 %v4174, %v4166
    %v4503 = vpack.c.b16 %v4175, %v4167
    %v4504 = vpack.c.b16 %v4184, %v4176
    %v4505 = vpack.c.b16 %v4185, %v4177
    %v4506 = vpack.c.b16 %v4186, %v4178
    %v4507 = vpack.c.b16 %v4187, %v4179
    %v4508 = vpack.c.b16 %v4188, %v4180
    %v4509 = vpack.c.b16 %v4189, %v4181
    %v4510 = vpack.c.b16 %v4190, %v4182
    %v4511 = vpack.c.b16 %v4191, %v4183
    %v4512 = vpack.c.b16 %v4200, %v4192
    %v4513 = vpack.c.b16 %v4201, %v4193
    %v4514 = vpack.c.b16 %v4202, %v4194
    %v4515 = vpack.c.b16 %v4203, %v4195
    %v4516 = vpack.c.b16 %v4204, %v4196
    %v4517 = vpack.c.b16 %v4205, %v4197
    %v4518 = vpack.c.b16 %v4206, %v4198
    %v4519 = vpack.c.b16 %v4207, %v4199
    %v4520 = vpack.c.b16 %v4216, %v4208
    %v4521 = vpack.c.b16 %v4217, %v4209
    %v4522 = vpack.c.b16 %v4218, %v4210
    %v4523 = vpack.c.b16 %v4219, %v4211
    %v4524 = vpack.c.b16 %v4220, %v4212
    %v4525 = vpack.c.b16 %v4221, %v4213
    %v4526 = vpack.c.b16 %v4222, %v4214
    %v4527 = vpack.c.b16 %v4223, %v4215
    %v4528 = vpack.c.b16 %v4232, %v4224
    %v4529 = vpack.c.b16 %v4233, %v4225
    %v4530 = vpack.c.b16 %v4234, %v4226
    %v4531 = vpack.c.b16 %v4235, %v4227
    %v4532 = vpack.c.b16 %v4236, %v4228
    %v4533 = vpack.c.b16 %v4237, %v4229
    %v4534 = vpack.c.b16 %v4238, %v4230
    %v4535 = vpack.c.b16 %v4239, %v4231
    %v4536 = vpack.c.b16 %v4248, %v4240
    %v4537 = vpack.c.b16 %v4249, %v4241
    %v4538 = vpack.c.b16 %v4250, %v4242
    %v4539 = vpack.c.b16 %v4251, %v4243
    %v4540 = vpack.c.b16 %v4252, %v4244
    %v4541 = vpack.c.b16 %v4253, %v4245
    %v4542 = vpack.c.b16 %v4254, %v4246
    %v4543 = vpack.c.b16 %v4255, %v4247
    %v4544 = vpack.c.b16 %v4264, %v4256
    %v4545 = vpack.c.b16 %v4265, %v4257
    %v4546 = vpack.c.b16 %v4266, %v4258
    %v4547 = vpack.c.b16 %v4267, %v4259
    %v4548 = vpack.c.b16 %v4268, %v4260
    %v4549 = vpack.c.b16 %v4269, %v4261
    %v4550 = vpack.c.b16 %v4270, %v4262
    %v4551 = vpack.c.b16 %v4271, %v4263
    %v4552 = vpack.c.b16 %v4280, %v4272
    %v4553 = vpack.c.b16 %v4281, %v4273
    %v4554 = vpack.c.b16 %v4282, %v4274
    %v4555 = vpack.c.b16 %v4283, %v4275
    %v4556 = vpack.c.b16 %v4284, %v4276
    %v4557 = vpack.c.b16 %v4285, %v4277
    %v4558 = vpack.c.b16 %v4286, %v4278
    %v4559 = vpack.c.b16 %v4287, %v4279
    %v4560 = vpack.c.b16 %v4296, %v4288
    %v4561 = vpack.c.b16 %v4297, %v4289
    %v4562 = vpack.c.b16 %v4298, %v4290
    %v4563 = vpack.c.b16 %v4299, %v4291
    %v4564 = vpack.c.b16 %v4300, %v4292
    %v4565 = vpack.c.b16 %v4301, %v4293
    %v4566 = vpack.c.b16 %v4302, %v4294
    %v4567 = vpack.c.b16 %v4303, %v4295
    %v4568 = vpack.c.b16 %v4312, %v4304
    %v4569 = vpack.c.b16 %v4313, %v4305
    %v4570 = vpack.c.b16 %v4314, %v4306
    %v4571 = vpack.c.b16 %v4315, %v4307
    %v4572 = vpack.c.b16 %v4316, %v4308
    %v4573 = vpack.c.b16 %v4317, %v4309
    %v4574 = vpack.c.b16 %v4318, %v4310
    %v4575 = vpack.c.b16 %v4319, %v4311
    %4832 = vmatprep.subr.bf16.mxu0 %v4377
    %4833 = vmatpush1.bf16.msra.mxu0 %v4376
    %4834 = vmatprep.subr.bf16.mxu0 %v4369
    %4835 = vmatpush1.bf16.msra.mxu0 %v4368
    %4836 = vmatprep.subr.bf16.mxu0 %v4361
    %4837 = vmatpush1.bf16.msra.mxu0 %v4360
    %4838 = vmatprep.subr.bf16.mxu0 %v4353
    %4839 = vmatpush1.bf16.msra.mxu0 %v4352
    %4840 = vmatprep.subr.bf16.mxu0 %v4345
    %4841 = vmatpush1.bf16.msra.mxu0 %v4344
    %4842 = vmatprep.subr.bf16.mxu0 %v4337
    %4843 = vmatpush1.bf16.msra.mxu0 %v4336
    %4844 = vmatprep.subr.bf16.mxu0 %v4329
    %4845 = vmatpush1.bf16.msra.mxu0 %v4328
    %4846 = vmatprep.subr.bf16.mxu0 %v4321
    %4847 = vmatpush1.bf16.msra.mxu0 %v4320
    %4848 = vmatprep.subr.bf16.mxu0 %v4441
    %4849 = vmatpush2.bf16.msra.mxu0 %v4440
    %4850 = vmatprep.subr.bf16.mxu0 %v4433
    %4851 = vmatpush2.bf16.msra.mxu0 %v4432
    %4852 = vmatprep.subr.bf16.mxu0 %v4425
    %4853 = vmatpush2.bf16.msra.mxu0 %v4424
    %4854 = vmatprep.subr.bf16.mxu0 %v4417
    %4855 = vmatpush2.bf16.msra.mxu0 %v4416
    %4856 = vmatprep.subr.bf16.mxu0 %v4409
    %4857 = vmatpush2.bf16.msra.mxu0 %v4408
    %4858 = vmatprep.subr.bf16.mxu0 %v4401
    %4859 = vmatpush2.bf16.msra.mxu0 %v4400
    %4860 = vmatprep.subr.bf16.mxu0 %v4393
    %4861 = vmatpush2.bf16.msra.mxu0 %v4392
    %4862 = vmatprep.subr.bf16.mxu0 %v4385
    %4863 = vmatpush2.bf16.msra.mxu0 %v4384
    %4864 = vmatprep.mubr.bf16.mxu0 %v3293
    %4865 = vmatmul.mubr.bf16.gmra.mxu0 %v3292
    %v4866 = vpop.f32.mrf.mxu0
    %v4867 = vadd.f32 0.0, %v4866
    %v4868 = vpop.f32.mrf.mxu0
    %v4869 = vadd.f32 0.0, %v4868
    %v4870 = vpop.f32.mrf.mxu0
    %v4871 = vadd.f32 0.0, %v4870
    %v4872 = vpop.f32.mrf.mxu0
    %v4873 = vadd.f32 0.0, %v4872
    %4874 = vdwg.mxu0
    %4875 = vmatprep.subr.bf16.mxu0 %v4505
    %4876 = vmatpush1.bf16.msra.mxu0 %v4504
    %4877 = vmatprep.subr.bf16.mxu0 %v4497
    %4878 = vmatpush1.bf16.msra.mxu0 %v4496
    %4879 = vmatprep.subr.bf16.mxu0 %v4489
    %4880 = vmatpush1.bf16.msra.mxu0 %v4488
    %4881 = vmatprep.subr.bf16.mxu0 %v4481
    %4882 = vmatpush1.bf16.msra.mxu0 %v4480
    %4883 = vmatprep.subr.bf16.mxu0 %v4473
    %4884 = vmatpush1.bf16.msra.mxu0 %v4472
    %4885 = vmatprep.subr.bf16.mxu0 %v4465
    %4886 = vmatpush1.bf16.msra.mxu0 %v4464
    %4887 = vmatprep.subr.bf16.mxu0 %v4457
    %4888 = vmatpush1.bf16.msra.mxu0 %v4456
    %4889 = vmatprep.subr.bf16.mxu0 %v4449
    %4890 = vmatpush1.bf16.msra.mxu0 %v4448
    %4891 = vmatprep.subr.bf16.mxu0 %v4569
    %4892 = vmatpush2.bf16.msra.mxu0 %v4568
    %4893 = vmatprep.subr.bf16.mxu0 %v4561
    %4894 = vmatpush2.bf16.msra.mxu0 %v4560
    %4895 = vmatprep.subr.bf16.mxu0 %v4553
    %4896 = vmatpush2.bf16.msra.mxu0 %v4552
    %4897 = vmatprep.subr.bf16.mxu0 %v4545
    %4898 = vmatpush2.bf16.msra.mxu0 %v4544
    %4899 = vmatprep.subr.bf16.mxu0 %v4537
    %4900 = vmatpush2.bf16.msra.mxu0 %v4536
    %4901 = vmatprep.subr.bf16.mxu0 %v4529
    %4902 = vmatpush2.bf16.msra.mxu0 %v4528
    %4903 = vmatprep.subr.bf16.mxu0 %v4521
    %4904 = vmatpush2.bf16.msra.mxu0 %v4520
    %4905 = vmatprep.subr.bf16.mxu0 %v4513
    %4906 = vmatpush2.bf16.msra.mxu0 %v4512
    %4907 = vmatprep.mubr.bf16.mxu0 %v3295
    %4908 = vmatmul.mubr.bf16.gmra.mxu0 %v3294
    %v4909 = vpop.f32.mrf.mxu0
    %v4910 = vadd.f32 %v4867, %v4909
    %v4911 = vpop.f32.mrf.mxu0
    %v4912 = vadd.f32 %v4869, %v4911
    %v4913 = vpop.f32.mrf.mxu0
    %v4914 = vadd.f32 %v4871, %v4913
    %v4915 = vpop.f32.mrf.mxu0
    %v4916 = vadd.f32 %v4873, %v4915
    %4917 = vdwg.mxu0
    %4918 = vmatprep.subr.bf16.mxu0 %v4379
    %4919 = vmatpush1.bf16.msra.mxu0 %v4378
    %4920 = vmatprep.subr.bf16.mxu0 %v4371
    %4921 = vmatpush1.bf16.msra.mxu0 %v4370
    %4922 = vmatprep.subr.bf16.mxu0 %v4363
    %4923 = vmatpush1.bf16.msra.mxu0 %v4362
    %4924 = vmatprep.subr.bf16.mxu0 %v4355
    %4925 = vmatpush1.bf16.msra.mxu0 %v4354
    %4926 = vmatprep.subr.bf16.mxu0 %v4347
    %4927 = vmatpush1.bf16.msra.mxu0 %v4346
    %4928 = vmatprep.subr.bf16.mxu0 %v4339
    %4929 = vmatpush1.bf16.msra.mxu0 %v4338
    %4930 = vmatprep.subr.bf16.mxu0 %v4331
    %4931 = vmatpush1.bf16.msra.mxu0 %v4330
    %4932 = vmatprep.subr.bf16.mxu0 %v4323
    %4933 = vmatpush1.bf16.msra.mxu0 %v4322
    %4934 = vmatprep.subr.bf16.mxu0 %v4443
    %4935 = vmatpush2.bf16.msra.mxu0 %v4442
    %4936 = vmatprep.subr.bf16.mxu0 %v4435
    %4937 = vmatpush2.bf16.msra.mxu0 %v4434
    %4938 = vmatprep.subr.bf16.mxu0 %v4427
    %4939 = vmatpush2.bf16.msra.mxu0 %v4426
    %4940 = vmatprep.subr.bf16.mxu0 %v4419
    %4941 = vmatpush2.bf16.msra.mxu0 %v4418
    %4942 = vmatprep.subr.bf16.mxu0 %v4411
    %4943 = vmatpush2.bf16.msra.mxu0 %v4410
    %4944 = vmatprep.subr.bf16.mxu0 %v4403
    %4945 = vmatpush2.bf16.msra.mxu0 %v4402
    %4946 = vmatprep.subr.bf16.mxu0 %v4395
    %4947 = vmatpush2.bf16.msra.mxu0 %v4394
    %4948 = vmatprep.subr.bf16.mxu0 %v4387
    %4949 = vmatpush2.bf16.msra.mxu0 %v4386
    %4950 = vmatprep.mubr.bf16.mxu0 %v3293
    %4951 = vmatmul.mubr.bf16.gmra.mxu0 %v3292
    %v4952 = vpop.f32.mrf.mxu0
    %v4953 = vadd.f32 0.0, %v4952
    %v4954 = vpop.f32.mrf.mxu0
    %v4955 = vadd.f32 0.0, %v4954
    %v4956 = vpop.f32.mrf.mxu0
    %v4957 = vadd.f32 0.0, %v4956
    %v4958 = vpop.f32.mrf.mxu0
    %v4959 = vadd.f32 0.0, %v4958
    %4960 = vdwg.mxu0
    %4961 = vmatprep.subr.bf16.mxu0 %v4507
    %4962 = vmatpush1.bf16.msra.mxu0 %v4506
    %4963 = vmatprep.subr.bf16.mxu0 %v4499
    %4964 = vmatpush1.bf16.msra.mxu0 %v4498
    %4965 = vmatprep.subr.bf16.mxu0 %v4491
    %4966 = vmatpush1.bf16.msra.mxu0 %v4490
    %4967 = vmatprep.subr.bf16.mxu0 %v4483
    %4968 = vmatpush1.bf16.msra.mxu0 %v4482
    %4969 = vmatprep.subr.bf16.mxu0 %v4475
    %4970 = vmatpush1.bf16.msra.mxu0 %v4474
    %4971 = vmatprep.subr.bf16.mxu0 %v4467
    %4972 = vmatpush1.bf16.msra.mxu0 %v4466
    %4973 = vmatprep.subr.bf16.mxu0 %v4459
    %4974 = vmatpush1.bf16.msra.mxu0 %v4458
    %4975 = vmatprep.subr.bf16.mxu0 %v4451
    %4976 = vmatpush1.bf16.msra.mxu0 %v4450
    %4977 = vmatprep.subr.bf16.mxu0 %v4571
    %4978 = vmatpush2.bf16.msra.mxu0 %v4570
    %4979 = vmatprep.subr.bf16.mxu0 %v4563
    %4980 = vmatpush2.bf16.msra.mxu0 %v4562
    %4981 = vmatprep.subr.bf16.mxu0 %v4555
    %4982 = vmatpush2.bf16.msra.mxu0 %v4554
    %4983 = vmatprep.subr.bf16.mxu0 %v4547
    %4984 = vmatpush2.bf16.msra.mxu0 %v4546
    %4985 = vmatprep.subr.bf16.mxu0 %v4539
    %4986 = vmatpush2.bf16.msra.mxu0 %v4538
    %4987 = vmatprep.subr.bf16.mxu0 %v4531
    %4988 = vmatpush2.bf16.msra.mxu0 %v4530
    %4989 = vmatprep.subr.bf16.mxu0 %v4523
    %4990 = vmatpush2.bf16.msra.mxu0 %v4522
    %4991 = vmatprep.subr.bf16.mxu0 %v4515
    %4992 = vmatpush2.bf16.msra.mxu0 %v4514
    %4993 = vmatprep.mubr.bf16.mxu0 %v3295
    %4994 = vmatmul.mubr.bf16.gmra.mxu0 %v3294
    %v4995 = vpop.f32.mrf.mxu0
    %v4996 = vadd.f32 %v4953, %v4995
    %v4997 = vpop.f32.mrf.mxu0
    %v4998 = vadd.f32 %v4955, %v4997
    %v4999 = vpop.f32.mrf.mxu0
    %v5000 = vadd.f32 %v4957, %v4999
    %v5001 = vpop.f32.mrf.mxu0
    %v5002 = vadd.f32 %v4959, %v5001
    %5003 = vdwg.mxu0
    %5004 = vmatprep.subr.bf16.mxu0 %v4381
    %5005 = vmatpush1.bf16.msra.mxu0 %v4380
    %5006 = vmatprep.subr.bf16.mxu0 %v4373
    %5007 = vmatpush1.bf16.msra.mxu0 %v4372
    %5008 = vmatprep.subr.bf16.mxu0 %v4365
    %5009 = vmatpush1.bf16.msra.mxu0 %v4364
    %5010 = vmatprep.subr.bf16.mxu0 %v4357
    %5011 = vmatpush1.bf16.msra.mxu0 %v4356
    %5012 = vmatprep.subr.bf16.mxu0 %v4349
    %5013 = vmatpush1.bf16.msra.mxu0 %v4348
    %5014 = vmatprep.subr.bf16.mxu0 %v4341
    %5015 = vmatpush1.bf16.msra.mxu0 %v4340
    %5016 = vmatprep.subr.bf16.mxu0 %v4333
    %5017 = vmatpush1.bf16.msra.mxu0 %v4332
    %5018 = vmatprep.subr.bf16.mxu0 %v4325
    %5019 = vmatpush1.bf16.msra.mxu0 %v4324
    %5020 = vmatprep.subr.bf16.mxu0 %v4445
    %5021 = vmatpush2.bf16.msra.mxu0 %v4444
    %5022 = vmatprep.subr.bf16.mxu0 %v4437
    %5023 = vmatpush2.bf16.msra.mxu0 %v4436
    %5024 = vmatprep.subr.bf16.mxu0 %v4429
    %5025 = vmatpush2.bf16.msra.mxu0 %v4428
    %5026 = vmatprep.subr.bf16.mxu0 %v4421
    %5027 = vmatpush2.bf16.msra.mxu0 %v4420
    %5028 = vmatprep.subr.bf16.mxu0 %v4413
    %5029 = vmatpush2.bf16.msra.mxu0 %v4412
    %5030 = vmatprep.subr.bf16.mxu0 %v4405
    %5031 = vmatpush2.bf16.msra.mxu0 %v4404
    %5032 = vmatprep.subr.bf16.mxu0 %v4397
    %5033 = vmatpush2.bf16.msra.mxu0 %v4396
    %5034 = vmatprep.subr.bf16.mxu0 %v4389
    %5035 = vmatpush2.bf16.msra.mxu0 %v4388
    %5036 = vmatprep.mubr.bf16.mxu0 %v3293
    %5037 = vmatmul.mubr.bf16.gmra.mxu0 %v3292
    %v5038 = vpop.f32.mrf.mxu0
    %v5039 = vadd.f32 0.0, %v5038
    %v5040 = vpop.f32.mrf.mxu0
    %v5041 = vadd.f32 0.0, %v5040
    %v5042 = vpop.f32.mrf.mxu0
    %v5043 = vadd.f32 0.0, %v5042
    %v5044 = vpop.f32.mrf.mxu0
    %v5045 = vadd.f32 0.0, %v5044
    %5046 = vdwg.mxu0
    %5047 = vmatprep.subr.bf16.mxu0 %v4509
    %5048 = vmatpush1.bf16.msra.mxu0 %v4508
    %5049 = vmatprep.subr.bf16.mxu0 %v4501
    %5050 = vmatpush1.bf16.msra.mxu0 %v4500
    %5051 = vmatprep.subr.bf16.mxu0 %v4493
    %5052 = vmatpush1.bf16.msra.mxu0 %v4492
    %5053 = vmatprep.subr.bf16.mxu0 %v4485
    %5054 = vmatpush1.bf16.msra.mxu0 %v4484
    %5055 = vmatprep.subr.bf16.mxu0 %v4477
    %5056 = vmatpush1.bf16.msra.mxu0 %v4476
    %5057 = vmatprep.subr.bf16.mxu0 %v4469
    %5058 = vmatpush1.bf16.msra.mxu0 %v4468
    %5059 = vmatprep.subr.bf16.mxu0 %v4461
    %5060 = vmatpush1.bf16.msra.mxu0 %v4460
    %5061 = vmatprep.subr.bf16.mxu0 %v4453
    %5062 = vmatpush1.bf16.msra.mxu0 %v4452
    %5063 = vmatprep.subr.bf16.mxu0 %v4573
    %5064 = vmatpush2.bf16.msra.mxu0 %v4572
    %5065 = vmatprep.subr.bf16.mxu0 %v4565
    %5066 = vmatpush2.bf16.msra.mxu0 %v4564
    %5067 = vmatprep.subr.bf16.mxu0 %v4557
    %5068 = vmatpush2.bf16.msra.mxu0 %v4556
    %5069 = vmatprep.subr.bf16.mxu0 %v4549
    %5070 = vmatpush2.bf16.msra.mxu0 %v4548
    %5071 = vmatprep.subr.bf16.mxu0 %v4541
    %5072 = vmatpush2.bf16.msra.mxu0 %v4540
    %5073 = vmatprep.subr.bf16.mxu0 %v4533
    %5074 = vmatpush2.bf16.msra.mxu0 %v4532
    %5075 = vmatprep.subr.bf16.mxu0 %v4525
    %5076 = vmatpush2.bf16.msra.mxu0 %v4524
    %5077 = vmatprep.subr.bf16.mxu0 %v4517
    %5078 = vmatpush2.bf16.msra.mxu0 %v4516
    %5079 = vmatprep.mubr.bf16.mxu0 %v3295
    %5080 = vmatmul.mubr.bf16.gmra.mxu0 %v3294
    %v5081 = vpop.f32.mrf.mxu0
    %v5082 = vadd.f32 %v5039, %v5081
    %v5083 = vpop.f32.mrf.mxu0
    %v5084 = vadd.f32 %v5041, %v5083
    %v5085 = vpop.f32.mrf.mxu0
    %v5086 = vadd.f32 %v5043, %v5085
    %v5087 = vpop.f32.mrf.mxu0
    %v5088 = vadd.f32 %v5045, %v5087
    %5089 = vdwg.mxu0
    %5090 = vmatprep.subr.bf16.mxu0 %v4383
    %5091 = vmatpush1.bf16.msra.mxu0 %v4382
    %5092 = vmatprep.subr.bf16.mxu0 %v4375
    %5093 = vmatpush1.bf16.msra.mxu0 %v4374
    %5094 = vmatprep.subr.bf16.mxu0 %v4367
    %5095 = vmatpush1.bf16.msra.mxu0 %v4366
    %5096 = vmatprep.subr.bf16.mxu0 %v4359
    %5097 = vmatpush1.bf16.msra.mxu0 %v4358
    %5098 = vmatprep.subr.bf16.mxu0 %v4351
    %5099 = vmatpush1.bf16.msra.mxu0 %v4350
    %5100 = vmatprep.subr.bf16.mxu0 %v4343
    %5101 = vmatpush1.bf16.msra.mxu0 %v4342
    %5102 = vmatprep.subr.bf16.mxu0 %v4335
    %5103 = vmatpush1.bf16.msra.mxu0 %v4334
    %5104 = vmatprep.subr.bf16.mxu0 %v4327
    %5105 = vmatpush1.bf16.msra.mxu0 %v4326
    %5106 = vmatprep.subr.bf16.mxu0 %v4447
    %5107 = vmatpush2.bf16.msra.mxu0 %v4446
    %5108 = vmatprep.subr.bf16.mxu0 %v4439
    %5109 = vmatpush2.bf16.msra.mxu0 %v4438
    %5110 = vmatprep.subr.bf16.mxu0 %v4431
    %5111 = vmatpush2.bf16.msra.mxu0 %v4430
    %5112 = vmatprep.subr.bf16.mxu0 %v4423
    %5113 = vmatpush2.bf16.msra.mxu0 %v4422
    %5114 = vmatprep.subr.bf16.mxu0 %v4415
    %5115 = vmatpush2.bf16.msra.mxu0 %v4414
    %5116 = vmatprep.subr.bf16.mxu0 %v4407
    %5117 = vmatpush2.bf16.msra.mxu0 %v4406
    %5118 = vmatprep.subr.bf16.mxu0 %v4399
    %5119 = vmatpush2.bf16.msra.mxu0 %v4398
    %5120 = vmatprep.subr.bf16.mxu0 %v4391
    %5121 = vmatpush2.bf16.msra.mxu0 %v4390
    %5122 = vmatprep.mubr.bf16.mxu0 %v3293
    %5123 = vmatmul.mubr.bf16.gmra.mxu0 %v3292
    %v5124 = vpop.f32.mrf.mxu0
    %v5125 = vadd.f32 0.0, %v5124
    %v5126 = vpop.f32.mrf.mxu0
    %v5127 = vadd.f32 0.0, %v5126
    %v5128 = vpop.f32.mrf.mxu0
    %v5129 = vadd.f32 0.0, %v5128
    %v5130 = vpop.f32.mrf.mxu0
    %v5131 = vadd.f32 0.0, %v5130
    %5132 = vdwg.mxu0
    %5133 = vmatprep.subr.bf16.mxu0 %v4511
    %5134 = vmatpush1.bf16.msra.mxu0 %v4510
    %5135 = vmatprep.subr.bf16.mxu0 %v4503
    %5136 = vmatpush1.bf16.msra.mxu0 %v4502
    %5137 = vmatprep.subr.bf16.mxu0 %v4495
    %5138 = vmatpush1.bf16.msra.mxu0 %v4494
    %5139 = vmatprep.subr.bf16.mxu0 %v4487
    %5140 = vmatpush1.bf16.msra.mxu0 %v4486
    %5141 = vmatprep.subr.bf16.mxu0 %v4479
    %5142 = vmatpush1.bf16.msra.mxu0 %v4478
    %5143 = vmatprep.subr.bf16.mxu0 %v4471
    %5144 = vmatpush1.bf16.msra.mxu0 %v4470
    %5145 = vmatprep.subr.bf16.mxu0 %v4463
    %5146 = vmatpush1.bf16.msra.mxu0 %v4462
    %5147 = vmatprep.subr.bf16.mxu0 %v4455
    %5148 = vmatpush1.bf16.msra.mxu0 %v4454
    %5149 = vmatprep.subr.bf16.mxu0 %v4575
    %5150 = vmatpush2.bf16.msra.mxu0 %v4574
    %5151 = vmatprep.subr.bf16.mxu0 %v4567
    %5152 = vmatpush2.bf16.msra.mxu0 %v4566
    %5153 = vmatprep.subr.bf16.mxu0 %v4559
    %5154 = vmatpush2.bf16.msra.mxu0 %v4558
    %5155 = vmatprep.subr.bf16.mxu0 %v4551
    %5156 = vmatpush2.bf16.msra.mxu0 %v4550
    %5157 = vmatprep.subr.bf16.mxu0 %v4543
    %5158 = vmatpush2.bf16.msra.mxu0 %v4542
    %5159 = vmatprep.subr.bf16.mxu0 %v4535
    %5160 = vmatpush2.bf16.msra.mxu0 %v4534
    %5161 = vmatprep.subr.bf16.mxu0 %v4527
    %5162 = vmatpush2.bf16.msra.mxu0 %v4526
    %5163 = vmatprep.subr.bf16.mxu0 %v4519
    %5164 = vmatpush2.bf16.msra.mxu0 %v4518
    %5165 = vmatprep.mubr.bf16.mxu0 %v3295
    %5166 = vmatmul.mubr.bf16.gmra.mxu0 %v3294
    %v5167 = vpop.f32.mrf.mxu0
    %v5168 = vadd.f32 %v5125, %v5167
    %v5169 = vpop.f32.mrf.mxu0
    %v5170 = vadd.f32 %v5127, %v5169
    %v5171 = vpop.f32.mrf.mxu0
    %v5172 = vadd.f32 %v5129, %v5171
    %v5173 = vpop.f32.mrf.mxu0
    %v5174 = vadd.f32 %v5131, %v5173
    %5175 = vdwg.mxu0
    %v5176 = vld [vmem:[#allocation10] sm:$0xff]
    %v5178 = vlaneseq
    %v5179 = vshrl.u32 %v5178, 7
    %v5180 = vsub.s32 0, %v5179
    %v5181 = vrot.slane %v5176, %v5180
    %v5182 = vlaneseq
    %v5183 = vshrl.u32 %v5182, 7
    %v5184 = vsub.s32 1, %v5183
    %v5185 = vrot.slane %v5176, %v5184
    %v5186 = vlaneseq
    %v5187 = vshrl.u32 %v5186, 7
    %v5188 = vsub.s32 2, %v5187
    %v5189 = vrot.slane %v5176, %v5188
    %v5190 = vlaneseq
    %v5191 = vshrl.u32 %v5190, 7
    %v5192 = vsub.s32 3, %v5191
    %v5193 = vrot.slane %v5176, %v5192
    %v5194 = vlaneseq
    %v5195 = vshrl.u32 %v5194, 7
    %v5196 = vsub.s32 4, %v5195
    %v5197 = vrot.slane %v5176, %v5196
    %v5198 = vlaneseq
    %v5199 = vshrl.u32 %v5198, 7
    %v5200 = vsub.s32 5, %v5199
    %v5201 = vrot.slane %v5176, %v5200
    %v5202 = vlaneseq
    %v5203 = vshrl.u32 %v5202, 7
    %v5204 = vsub.s32 6, %v5203
    %v5205 = vrot.slane %v5176, %v5204
    %v5206 = vlaneseq
    %v5207 = vshrl.u32 %v5206, 7
    %v5208 = vsub.s32 7, %v5207
    %v5209 = vrot.slane %v5176, %v5208
    %v5218 = vadd.f32 %v4910, %v5181
    %v5219 = vadd.f32 %v4912, %v5185
    %v5220 = vadd.f32 %v4996, %v5189
    %v5221 = vadd.f32 %v4998, %v5193
    %v5222 = vadd.f32 %v5082, %v5197
    %v5223 = vadd.f32 %v5084, %v5201
    %v5224 = vadd.f32 %v5168, %v5205
    %v5225 = vadd.f32 %v5170, %v5209
    %v5226 = vadd.f32 %v4914, %v5181
    %v5227 = vadd.f32 %v4916, %v5185
    %v5228 = vadd.f32 %v5000, %v5189
    %v5229 = vadd.f32 %v5002, %v5193
    %v5230 = vadd.f32 %v5086, %v5197
    %v5231 = vadd.f32 %v5088, %v5201
    %v5232 = vadd.f32 %v5172, %v5205
    %v5233 = vadd.f32 %v5174, %v5209
    %v5234 = vsub.f32 0.0, %v5218
    %v5235 = vsub.f32 0.0, %v5219
    %v5236 = vsub.f32 0.0, %v5220
    %v5237 = vsub.f32 0.0, %v5221
    %v5238 = vsub.f32 0.0, %v5222
    %v5239 = vsub.f32 0.0, %v5223
    %v5240 = vsub.f32 0.0, %v5224
    %v5241 = vsub.f32 0.0, %v5225
    %v5242 = vsub.f32 0.0, %v5226
    %v5243 = vsub.f32 0.0, %v5227
    %v5244 = vsub.f32 0.0, %v5228
    %v5245 = vsub.f32 0.0, %v5229
    %v5246 = vsub.f32 0.0, %v5230
    %v5247 = vsub.f32 0.0, %v5231
    %v5248 = vsub.f32 0.0, %v5232
    %v5249 = vsub.f32 0.0, %v5233
    %v5250 = vmul.f32 %v5234, 1.442695
    %v5251 = vpow.pop %v5250
    %v5252 = vmul.f32 %v5235, 1.442695
    %v5253 = vpow.pop %v5252
    %v5254 = vmul.f32 %v5236, 1.442695
    %v5255 = vpow.pop %v5254
    %v5256 = vmul.f32 %v5237, 1.442695
    %v5257 = vpow.pop %v5256
    %v5258 = vmul.f32 %v5238, 1.442695
    %v5259 = vpow.pop %v5258
    %v5260 = vmul.f32 %v5239, 1.442695
    %v5261 = vpow.pop %v5260
    %v5262 = vmul.f32 %v5240, 1.442695
    %v5263 = vpow.pop %v5262
    %v5264 = vmul.f32 %v5241, 1.442695
    %v5265 = vpow.pop %v5264
    %v5266 = vmul.f32 %v5242, 1.442695
    %v5267 = vpow.pop %v5266
    %v5268 = vmul.f32 %v5243, 1.442695
    %v5269 = vpow.pop %v5268
    %v5270 = vmul.f32 %v5244, 1.442695
    %v5271 = vpow.pop %v5270
    %v5272 = vmul.f32 %v5245, 1.442695
    %v5273 = vpow.pop %v5272
    %v5274 = vmul.f32 %v5246, 1.442695
    %v5275 = vpow.pop %v5274
    %v5276 = vmul.f32 %v5247, 1.442695
    %v5277 = vpow.pop %v5276
    %v5278 = vmul.f32 %v5248, 1.442695
    %v5279 = vpow.pop %v5278
    %v5280 = vmul.f32 %v5249, 1.442695
    %v5281 = vpow.pop %v5280
    %v5282 = vadd.f32 %v5251, 1.0
    %v5283 = vadd.f32 %v5253, 1.0
    %v5284 = vadd.f32 %v5255, 1.0
    %v5285 = vadd.f32 %v5257, 1.0
    %v5286 = vadd.f32 %v5259, 1.0
    %v5287 = vadd.f32 %v5261, 1.0
    %v5288 = vadd.f32 %v5263, 1.0
    %v5289 = vadd.f32 %v5265, 1.0
    %v5290 = vadd.f32 %v5267, 1.0
    %v5291 = vadd.f32 %v5269, 1.0
    %v5292 = vadd.f32 %v5271, 1.0
    %v5293 = vadd.f32 %v5273, 1.0
    %v5294 = vadd.f32 %v5275, 1.0
    %v5295 = vadd.f32 %v5277, 1.0
    %v5296 = vadd.f32 %v5279, 1.0
    %v5297 = vadd.f32 %v5281, 1.0
    %v5298 = vrcp.pop %v5282
    %v5299 = vrcp.pop %v5283
    %v5300 = vrcp.pop %v5284
    %v5301 = vrcp.pop %v5285
    %v5302 = vrcp.pop %v5286
    %v5303 = vrcp.pop %v5287
    %v5304 = vrcp.pop %v5288
    %v5305 = vrcp.pop %v5289
    %v5306 = vrcp.pop %v5290
    %v5307 = vrcp.pop %v5291
    %v5308 = vrcp.pop %v5292
    %v5309 = vrcp.pop %v5293
    %v5310 = vrcp.pop %v5294
    %v5311 = vrcp.pop %v5295
    %v5312 = vrcp.pop %v5296
    %v5313 = vrcp.pop %v5297
    %v5314 = vpack.c.bf16 %v5306, %v5298
    %v5315 = vpack.c.bf16 %v5307, %v5299
    %v5316 = vpack.c.bf16 %v5308, %v5300
    %v5317 = vpack.c.bf16 %v5309, %v5301
    %v5318 = vpack.c.bf16 %v5310, %v5302
    %v5319 = vpack.c.bf16 %v5311, %v5303
    %v5320 = vpack.c.bf16 %v5312, %v5304
    %v5321 = vpack.c.bf16 %v5313, %v5305
    %v5330 = vunpack.c.l.b16 %v5314
    %v5331 = vunpack.c.l.b16 %v5315
    %v5332 = vunpack.c.l.b16 %v5316
    %v5333 = vunpack.c.l.b16 %v5317
    %v5334 = vunpack.c.l.b16 %v5318
    %v5335 = vunpack.c.l.b16 %v5319
    %v5336 = vunpack.c.l.b16 %v5320
    %v5337 = vunpack.c.l.b16 %v5321
    %v5338 = vunpack.c.h.b16 %v5314
    %v5339 = vunpack.c.h.b16 %v5315
    %v5340 = vunpack.c.h.b16 %v5316
    %v5341 = vunpack.c.h.b16 %v5317
    %v5342 = vunpack.c.h.b16 %v5318
    %v5343 = vunpack.c.h.b16 %v5319
    %v5344 = vunpack.c.h.b16 %v5320
    %v5345 = vunpack.c.h.b16 %v5321
    %v5346 = vpack.c.b16 %v5331, %v5330
    %v5347 = vpack.c.b16 %v5333, %v5332
    %v5348 = vpack.c.b16 %v5335, %v5334
    %v5349 = vpack.c.b16 %v5337, %v5336
    %v5350 = vpack.c.b16 %v5339, %v5338
    %v5351 = vpack.c.b16 %v5341, %v5340
    %v5352 = vpack.c.b16 %v5343, %v5342
    %v5353 = vpack.c.b16 %v5345, %v5344
    %5362 = vst [vmem:[%s7] sm:$0xff] %v5346
    %5363 = vst [vmem:[%s7 + $0x8] sm:$0xff] %v5347
    %5364 = vst [vmem:[%s7 + $0x10] sm:$0xff] %v5348
    %vm5365 = vcmask 1043456
    %vm5366 = vcmask 850948
    %vm5367 = vmor %vm5366, %vm5365
    %5368 = vst.msk [vmem:[%s7 + $0x18] sm:$0xff] %vm5367, %v5349
    %5369 = vst [vmem:[%s7 + $0x20] sm:$0xff] %v5350
    %5370 = vst [vmem:[%s7 + $0x28] sm:$0xff] %v5351
    %5371 = vst [vmem:[%s7 + $0x30] sm:$0xff] %v5352
    %5372 = vst.msk [vmem:[%s7 + $0x38] sm:$0xff] %vm5367, %v5353
    // Predicated region
    $region54: #{tag_decoder_forward.1} parent=1 // pred_check
      _
    $region55: #{tag_decoder_forward.1} parent=1 // pred_check_branch
      %5374 = sbr.rel (0) target = $region57
    $region56: #{tag_decoder_forward.1} parent=1 // pred_region
      _
    $region57: #{tag_decoder_forward.1} parent=1 // pred_fallthru
      _
    // Predicated region
    $region58: #{tag_decoder_forward.1} parent=1 // pred_check
      _
    $region59: #{tag_decoder_forward.1} parent=1 // pred_check_branch
      %5376 = sbr.rel (0) target = $region61
    $region60: #{tag_decoder_forward.1} parent=1 // pred_region
      _
    $region61: #{tag_decoder_forward.1} parent=1 // pred_fallthru
      _
    %5377 = vsyncpa [#allocation3], 1
    %5378 = vsyncpa [#allocation5], 1
    %5379 = vsyncpa [#allocation8], 1
    %5380 = vsyncpa [#allocation11], 1

</llo_original>
